<compile_context>
chip_gen: v6e
topology: v6e:2x2x1
jax: 0.10.0
libtpu: 0.0.40
codegen_flags: <defaults>
</compile_context>

<pallas_src>
import jax
import jax.numpy as jnp
from jax.experimental import pallas as pl
from jax.experimental.pallas import tpu as pltpu

H_IN = 28          # required so that conv1 output is 26x26 (fc1 = Linear(26*26, 10))
H_OUT = 26
N_CLASSES = 10
EPS = 1e-5


def l_fused_kernel(scal_ref, x_ref, fcw_ref, fcb_ref, o_ref, y_scr):
    """Fused conv1+bn1+relu+conv2+bn2+flatten+fc1+softmax.

    scal_ref: SMEM f32[16]:
        [0:9]  conv1 3x3 weight, row-major (k[di, dj] at index di*3+dj)
        [9]    conv1 bias
        [10]   conv2 weight (1x1, 1->1 channel)
        [11]   bn1 gamma   [12] bn1 beta
        [13]   bn2 gamma   [14] bn2 beta
        [15]   padding
    x_ref:   VMEM f32[N, 28, 28]
    fcw_ref: VMEM f32[26, 26, 10]   fc1 weight in (h, w, out) layout
    fcb_ref: VMEM f32[1, 10]
    o_ref:   VMEM f32[N, 10]
    y_scr:   VMEM f32[N, 26, 26]    scratch for the post-bn2 activations
    """
    n = x_ref.shape[0]

    # ---- conv1: 3x3 valid convolution, single in/out channel -------------
    # One lane-shifted load per dj (3 loads instead of 9); di shifts are
    # sublane-range slices of the loaded value.
    acc = None
    for dj in range(3):
        xcol = x_ref[:, :, dj:dj + H_OUT]                      # (N, 28, 26)
        for di in range(3):
            term = scal_ref[di * 3 + dj] * xcol[:, di:di + H_OUT, :]
            acc = term if acc is None else acc + term
    acc = acc + scal_ref[9]                                    # conv1 bias

    cnt = float(n * H_OUT * H_OUT)
    inv_cnt = 1.0 / cnt

    # ---- bn1 (training mode, biased batch var): single-pass stats --------
    s1 = jnp.sum(acc)
    q1 = jnp.sum(acc * acc)
    mean1 = s1 * inv_cnt
    var1 = q1 * inv_cnt - mean1 * mean1
    a1 = scal_ref[11] * jax.lax.rsqrt(var1 + EPS)              # gamma1 * inv_std
    c1 = scal_ref[12] - mean1 * a1                             # beta1 - mean1*a1
    r = jnp.maximum(acc * a1 + c1, 0.0)                        # bn1 affine + ReLU

    # ---- conv2 (1x1, 1ch) + bn2 folded into one exact affine -------------
    #   z = w2*r + b2 ; mean_z = w2*mean_r + b2 ; var_z = w2^2 * var_r
    #   => bn2(z) = (r - mean_r) * w2*g2 / sqrt(w2^2*var_r + eps) + beta2
    # (conv2 bias cancels exactly — batch stats remove any constant offset.)
    s2 = jnp.sum(r)
    q2 = jnp.sum(r * r)
    mean_r = s2 * inv_cnt
    var_r = q2 * inv_cnt - mean_r * mean_r
    w2 = scal_ref[10]
    a2 = w2 * scal_ref[13] * jax.lax.rsqrt(w2 * w2 * var_r + EPS)
    c2 = scal_ref[14] - mean_r * a2
    y_scr[...] = r * a2 + c2                                   # (N, 26, 26) stays in VMEM

    # ---- fc1 (676 -> 10): flatten done in-kernel as 26 row matmuls --------
    #   logits[n, o] = sum_h  y[n, h, :] @ fcw[h, :, :]
    # (matches the PyTorch row-major .view(-1, 676) order)
    logits = jnp.zeros((n, N_CLASSES), jnp.float32)
    for h in range(H_OUT):
        logits = logits + jnp.dot(y_scr[:, h, :], fcw_ref[h],
                                  preferred_element_type=jnp.float32)
    logits = logits + fcb_ref[...]

    # ---- softmax over dim=1 ------------------------------------------------
    m = jnp.max(logits, axis=-1, keepdims=True)
    e = jnp.exp(logits - m)
    o_ref[...] = e / jnp.sum(e, axis=-1, keepdims=True)


def l_forward(x, params):
    """x: (N, 1, 28, 28) float32 (PyTorch NCHW). Returns (N, 10) softmax probs."""
    n = x.shape[0]
    x2 = x[:, 0].astype(jnp.float32)                           # (N, 28, 28)

    scal = jnp.concatenate([
        params["conv1_w"].reshape(9).astype(jnp.float32),
        jnp.stack([params["conv1_b"], params["conv2_w"],
                   params["bn1_g"], params["bn1_b"],
                   params["bn2_g"], params["bn2_b"]]).astype(jnp.float32),
        jnp.zeros((1,), jnp.float32),
    ])                                                         # (16,)

    # fc_w is stored pre-transposed as (676, 10); reshape (row-major) to
    # (26, 26, 10) so the kernel can contract row-by-row without a reshape.
    fcw = params["fc_w"].reshape(H_OUT, H_OUT, N_CLASSES).astype(jnp.float32)
    fcb = params["fc_b"].astype(jnp.float32)                   # (1, 10)

    out = pl.pallas_call(
        l_fused_kernel,
        out_shape=jax.ShapeDtypeStruct((n, N_CLASSES), jnp.float32),
        in_specs=[
            pl.BlockSpec(memory_space=pltpu.MemorySpace.SMEM),  # scalars
            pl.BlockSpec(memory_space=pltpu.MemorySpace.VMEM),  # x
            pl.BlockSpec(memory_space=pltpu.MemorySpace.VMEM),  # fc weight (26,26,10)
            pl.BlockSpec(memory_space=pltpu.MemorySpace.VMEM),  # fc bias (1,10)
        ],
        out_specs=pl.BlockSpec(memory_space=pltpu.MemorySpace.VMEM),
        scratch_shapes=[pltpu.VMEM((n, H_OUT, H_OUT), jnp.float32)],
    )(scal, x2, fcw, fcb)
    return out


def l_reference(x, params):
    """Straightforward pure-JAX reference of the PyTorch forward (for validation)."""
    xs = x[:, 0].astype(jnp.float32)
    n = xs.shape[0]
    acc = jnp.zeros((n, H_OUT, H_OUT), jnp.float32)
    for di in range(3):
        for dj in range(3):
            acc = acc + params["conv1_w"][di, dj] * xs[:, di:di + H_OUT, dj:dj + H_OUT]
    acc = acc + params["conv1_b"]
    mean1 = jnp.mean(acc)
    var1 = jnp.mean((acc - mean1) ** 2)
    y = (acc - mean1) / jnp.sqrt(var1 + EPS) * params["bn1_g"] + params["bn1_b"]
    y = jnp.maximum(y, 0.0)
    y = y * params["conv2_w"] + params["conv2_b"]
    mean2 = jnp.mean(y)
    var2 = jnp.mean((y - mean2) ** 2)
    y = (y - mean2) / jnp.sqrt(var2 + EPS) * params["bn2_g"] + params["bn2_b"]
    flat = y.reshape(n, H_OUT * H_OUT)
    logits = jnp.dot(flat, params["fc_w"],
                     precision=jax.lax.Precision.HIGHEST) + params["fc_b"]
    return jax.nn.softmax(logits, axis=-1)


def init_params(key):
    """Deterministic synthetic init matching the PyTorch parameter shapes.

    conv1: weight (1,1,3,3)->(3,3), bias (1,)->()
    conv2: weight (1,1,1,1)->(), bias (1,)->()
    bn1/bn2: gamma=1, beta=0 (PyTorch default)
    fc1: weight (10,676) stored pre-transposed as (676,10), bias (10,)->(1,10)
    """
    k1, k2, k3, k4, k5, k6 = jax.random.split(key, 6)
    b1 = 1.0 / 3.0          # 1/sqrt(fan_in=9)
    b2 = 1.0                # 1/sqrt(fan_in=1)
    b3 = 1.0 / 26.0         # 1/sqrt(fan_in=676)
    return {
        "conv1_w": jax.random.uniform(k1, (3, 3), jnp.float32, -b1, b1),
        "conv1_b": jax.random.uniform(k2, (), jnp.float32, -b1, b1),
        "conv2_w": jax.random.uniform(k3, (), jnp.float32, -b2, b2),
        "conv2_b": jax.random.uniform(k4, (), jnp.float32, -b2, b2),
        "bn1_g": jnp.float32(1.0),
        "bn1_b": jnp.float32(0.0),
        "bn2_g": jnp.float32(1.0),
        "bn2_b": jnp.float32(0.0),
        "fc_w": jax.random.uniform(k5, (676, 10), jnp.float32, -b3, b3),
        "fc_b": jax.random.uniform(k6, (1, 10), jnp.float32, -b3, b3),
    }


if __name__ == "__main__":
    key = jax.random.PRNGKey(0)
    kx, kp = jax.random.split(key)
    # Input shape is pinned by the module: fc1 expects 26*26 => 28x28 input, 1 channel.
    x = jax.random.normal(kx, (2, 1, H_IN, H_IN), jnp.float32)
    params = init_params(kp)

    out = jax.jit(l_forward)(x, params)
    out = jax.block_until_ready(out)

    assert out.shape == (2, N_CLASSES), out.shape
    # Softmax rows must sum to 1.
    assert bool(jnp.all(jnp.abs(jnp.sum(out, axis=-1) - 1.0) < 1e-5))
    # Validate against the straightforward pure-JAX reference.
    ref = jax.jit(l_reference)(x, params)
    ref = jax.block_until_ready(ref)
    assert bool(jnp.allclose(out, ref, atol=5e-4, rtol=0.0)), (out, ref)
    print("KERNEL_OK")
</pallas_src>

<mosaic_0001>
module attributes {stable_mosaic.version = 11 : i64} {
  func.func @l_fused_kernel(%arg0: memref<16xf32, #tpu.memory_space<smem>>, %arg1: memref<2x28x28xf32, #tpu.memory_space<vmem>>, %arg2: memref<26x26x10xf32, #tpu.memory_space<vmem>>, %arg3: memref<1x10xf32, #tpu.memory_space<vmem>>, %arg4: memref<2x10xf32, #tpu.memory_space<vmem>>, %arg5: memref<2x26x26xf32, #tpu.memory_space<vmem>>) attributes {dimension_semantics = [], scalar_prefetch = 0 : i64, scratch_operands = 1 : i64, tpu.core_type = #tpu.core_type<tc>} {
    %c0 = arith.constant 0 : index
    %c0_0 = arith.constant 0 : index
    %c0_1 = arith.constant 0 : index
    %0 = vector.load %arg1[%c0, %c0_0, %c0_1] : memref<2x28x28xf32, #tpu.memory_space<vmem>>, vector<2x28x26xf32>
    %c0_2 = arith.constant 0 : index
    %1 = memref.load %arg0[%c0_2] : memref<16xf32, #tpu.memory_space<smem>>
    %2 = vector.extract_strided_slice %0 {offsets = [0, 0, 0], sizes = [2, 26, 26], strides = [1, 1, 1]} : vector<2x28x26xf32> to vector<2x26x26xf32>
    %3 = vector.broadcast %1 : f32 to vector<2x26x26xf32>
    %4 = arith.mulf %3, %2 : vector<2x26x26xf32>
    %c3 = arith.constant 3 : index
    %5 = memref.load %arg0[%c3] : memref<16xf32, #tpu.memory_space<smem>>
    %6 = vector.extract_strided_slice %0 {offsets = [0, 1, 0], sizes = [2, 26, 26], strides = [1, 1, 1]} : vector<2x28x26xf32> to vector<2x26x26xf32>
    %7 = vector.broadcast %5 : f32 to vector<2x26x26xf32>
    %8 = arith.mulf %7, %6 : vector<2x26x26xf32>
    %9 = arith.addf %4, %8 : vector<2x26x26xf32>
    %c6 = arith.constant 6 : index
    %10 = memref.load %arg0[%c6] : memref<16xf32, #tpu.memory_space<smem>>
    %11 = vector.extract_strided_slice %0 {offsets = [0, 2, 0], sizes = [2, 26, 26], strides = [1, 1, 1]} : vector<2x28x26xf32> to vector<2x26x26xf32>
    %12 = vector.broadcast %10 : f32 to vector<2x26x26xf32>
    %13 = arith.mulf %12, %11 : vector<2x26x26xf32>
    %14 = arith.addf %9, %13 : vector<2x26x26xf32>
    %c0_3 = arith.constant 0 : index
    %c0_4 = arith.constant 0 : index
    %c1 = arith.constant 1 : index
    %15 = vector.load %arg1[%c0_3, %c0_4, %c1] : memref<2x28x28xf32, #tpu.memory_space<vmem>>, vector<2x28x26xf32>
    %c1_5 = arith.constant 1 : index
    %16 = memref.load %arg0[%c1_5] : memref<16xf32, #tpu.memory_space<smem>>
    %17 = vector.extract_strided_slice %15 {offsets = [0, 0, 0], sizes = [2, 26, 26], strides = [1, 1, 1]} : vector<2x28x26xf32> to vector<2x26x26xf32>
    %18 = vector.broadcast %16 : f32 to vector<2x26x26xf32>
    %19 = arith.mulf %18, %17 : vector<2x26x26xf32>
    %20 = arith.addf %14, %19 : vector<2x26x26xf32>
    %c4 = arith.constant 4 : index
    %21 = memref.load %arg0[%c4] : memref<16xf32, #tpu.memory_space<smem>>
    %22 = vector.extract_strided_slice %15 {offsets = [0, 1, 0], sizes = [2, 26, 26], strides = [1, 1, 1]} : vector<2x28x26xf32> to vector<2x26x26xf32>
    %23 = vector.broadcast %21 : f32 to vector<2x26x26xf32>
    %24 = arith.mulf %23, %22 : vector<2x26x26xf32>
    %25 = arith.addf %20, %24 : vector<2x26x26xf32>
    %c7 = arith.constant 7 : index
    %26 = memref.load %arg0[%c7] : memref<16xf32, #tpu.memory_space<smem>>
    %27 = vector.extract_strided_slice %15 {offsets = [0, 2, 0], sizes = [2, 26, 26], strides = [1, 1, 1]} : vector<2x28x26xf32> to vector<2x26x26xf32>
    %28 = vector.broadcast %26 : f32 to vector<2x26x26xf32>
    %29 = arith.mulf %28, %27 : vector<2x26x26xf32>
    %30 = arith.addf %25, %29 : vector<2x26x26xf32>
    %c0_6 = arith.constant 0 : index
    %c0_7 = arith.constant 0 : index
    %c2 = arith.constant 2 : index
    %31 = vector.load %arg1[%c0_6, %c0_7, %c2] : memref<2x28x28xf32, #tpu.memory_space<vmem>>, vector<2x28x26xf32>
    %c2_8 = arith.constant 2 : index
    %32 = memref.load %arg0[%c2_8] : memref<16xf32, #tpu.memory_space<smem>>
    %33 = vector.extract_strided_slice %31 {offsets = [0, 0, 0], sizes = [2, 26, 26], strides = [1, 1, 1]} : vector<2x28x26xf32> to vector<2x26x26xf32>
    %34 = vector.broadcast %32 : f32 to vector<2x26x26xf32>
    %35 = arith.mulf %34, %33 : vector<2x26x26xf32>
    %36 = arith.addf %30, %35 : vector<2x26x26xf32>
    %c5 = arith.constant 5 : index
    %37 = memref.load %arg0[%c5] : memref<16xf32, #tpu.memory_space<smem>>
    %38 = vector.extract_strided_slice %31 {offsets = [0, 1, 0], sizes = [2, 26, 26], strides = [1, 1, 1]} : vector<2x28x26xf32> to vector<2x26x26xf32>
    %39 = vector.broadcast %37 : f32 to vector<2x26x26xf32>
    %40 = arith.mulf %39, %38 : vector<2x26x26xf32>
    %41 = arith.addf %36, %40 : vector<2x26x26xf32>
    %c8 = arith.constant 8 : index
    %42 = memref.load %arg0[%c8] : memref<16xf32, #tpu.memory_space<smem>>
    %43 = vector.extract_strided_slice %31 {offsets = [0, 2, 0], sizes = [2, 26, 26], strides = [1, 1, 1]} : vector<2x28x26xf32> to vector<2x26x26xf32>
    %44 = vector.broadcast %42 : f32 to vector<2x26x26xf32>
    %45 = arith.mulf %44, %43 : vector<2x26x26xf32>
    %46 = arith.addf %41, %45 : vector<2x26x26xf32>
    %c9 = arith.constant 9 : index
    %47 = memref.load %arg0[%c9] : memref<16xf32, #tpu.memory_space<smem>>
    %48 = vector.broadcast %47 : f32 to vector<2x26x26xf32>
    %49 = arith.addf %46, %48 : vector<2x26x26xf32>
    %50 = vector.shape_cast %49 : vector<2x26x26xf32> to vector<1x2x26x26xf32>
    %cst = arith.constant dense<0.000000e+00> : vector<1xf32>
    %51 = vector.multi_reduction <add>, %50, %cst [1, 2, 3] : vector<1x2x26x26xf32> to vector<1xf32>
    %52 = vector.shape_cast %51 : vector<1xf32> to vector<1x1x1x1xf32>
    %53 = vector.extract %52[0, 0, 0, 0] : f32 from vector<1x1x1x1xf32>
    %54 = arith.mulf %49, %49 : vector<2x26x26xf32>
    %55 = vector.shape_cast %54 : vector<2x26x26xf32> to vector<1x2x26x26xf32>
    %cst_9 = arith.constant dense<0.000000e+00> : vector<1xf32>
    %56 = vector.multi_reduction <add>, %55, %cst_9 [1, 2, 3] : vector<1x2x26x26xf32> to vector<1xf32>
    %57 = vector.shape_cast %56 : vector<1xf32> to vector<1x1x1x1xf32>
    %58 = vector.extract %57[0, 0, 0, 0] : f32 from vector<1x1x1x1xf32>
    %cst_10 = arith.constant 7.396450e-04 : f32
    %59 = arith.mulf %53, %cst_10 : f32
    %cst_11 = arith.constant 7.396450e-04 : f32
    %60 = arith.mulf %58, %cst_11 : f32
    %61 = arith.mulf %59, %59 : f32
    %62 = arith.subf %60, %61 : f32
    %c11 = arith.constant 11 : index
    %63 = memref.load %arg0[%c11] : memref<16xf32, #tpu.memory_space<smem>>
    %cst_12 = arith.constant 9.99999974E-6 : f32
    %64 = arith.addf %62, %cst_12 : f32
    %65 = math.rsqrt %64 : f32
    %66 = arith.mulf %63, %65 : f32
    %c12 = arith.constant 12 : index
    %67 = memref.load %arg0[%c12] : memref<16xf32, #tpu.memory_space<smem>>
    %68 = arith.mulf %59, %66 : f32
    %69 = arith.subf %67, %68 : f32
    %70 = vector.broadcast %66 : f32 to vector<2x26x26xf32>
    %71 = arith.mulf %49, %70 : vector<2x26x26xf32>
    %72 = vector.broadcast %69 : f32 to vector<2x26x26xf32>
    %73 = arith.addf %71, %72 : vector<2x26x26xf32>
    %cst_13 = arith.constant 0.000000e+00 : f32
    %74 = vector.broadcast %cst_13 : f32 to vector<2x26x26xf32>
    %75 = arith.maximumf %73, %74 : vector<2x26x26xf32>
    %76 = vector.shape_cast %75 : vector<2x26x26xf32> to vector<1x2x26x26xf32>
    %cst_14 = arith.constant dense<0.000000e+00> : vector<1xf32>
    %77 = vector.multi_reduction <add>, %76, %cst_14 [1, 2, 3] : vector<1x2x26x26xf32> to vector<1xf32>
    %78 = vector.shape_cast %77 : vector<1xf32> to vector<1x1x1x1xf32>
    %79 = vector.extract %78[0, 0, 0, 0] : f32 from vector<1x1x1x1xf32>
    %80 = arith.mulf %75, %75 : vector<2x26x26xf32>
    %81 = vector.shape_cast %80 : vector<2x26x26xf32> to vector<1x2x26x26xf32>
    %cst_15 = arith.constant dense<0.000000e+00> : vector<1xf32>
    %82 = vector.multi_reduction <add>, %81, %cst_15 [1, 2, 3] : vector<1x2x26x26xf32> to vector<1xf32>
    %83 = vector.shape_cast %82 : vector<1xf32> to vector<1x1x1x1xf32>
    %84 = vector.extract %83[0, 0, 0, 0] : f32 from vector<1x1x1x1xf32>
    %cst_16 = arith.constant 7.396450e-04 : f32
    %85 = arith.mulf %79, %cst_16 : f32
    %cst_17 = arith.constant 7.396450e-04 : f32
    %86 = arith.mulf %84, %cst_17 : f32
    %87 = arith.mulf %85, %85 : f32
    %88 = arith.subf %86, %87 : f32
    %c10 = arith.constant 10 : index
    %89 = memref.load %arg0[%c10] : memref<16xf32, #tpu.memory_space<smem>>
    %c13 = arith.constant 13 : index
    %90 = memref.load %arg0[%c13] : memref<16xf32, #tpu.memory_space<smem>>
    %91 = arith.mulf %89, %90 : f32
    %92 = arith.mulf %89, %89 : f32
    %93 = arith.mulf %92, %88 : f32
    %cst_18 = arith.constant 9.99999974E-6 : f32
    %94 = arith.addf %93, %cst_18 : f32
    %95 = math.rsqrt %94 : f32
    %96 = arith.mulf %91, %95 : f32
    %c14 = arith.constant 14 : index
    %97 = memref.load %arg0[%c14] : memref<16xf32, #tpu.memory_space<smem>>
    %98 = arith.mulf %85, %96 : f32
    %99 = arith.subf %97, %98 : f32
    %100 = vector.broadcast %96 : f32 to vector<2x26x26xf32>
    %101 = arith.mulf %75, %100 : vector<2x26x26xf32>
    %102 = vector.broadcast %99 : f32 to vector<2x26x26xf32>
    %103 = arith.addf %101, %102 : vector<2x26x26xf32>
    %c0_19 = arith.constant 0 : index
    %c0_20 = arith.constant 0 : index
    %c0_21 = arith.constant 0 : index
    %104 = vector.load %arg5[%c0_19, %c0_20, %c0_21] : memref<2x26x26xf32, #tpu.memory_space<vmem>>, vector<2x26x26xf32>
    tpu.vector_store %arg5[%c0_19, %c0_20, %c0_21], %103 {strides = array<i32>} : memref<2x26x26xf32, #tpu.memory_space<vmem>>, vector<2x26x26xf32>,
    %cst_22 = arith.constant 0.000000e+00 : f32
    %105 = vector.broadcast %cst_22 : f32 to vector<2x10xf32>
    %c0_23 = arith.constant 0 : index
    %c0_24 = arith.constant 0 : index
    %c0_25 = arith.constant 0 : index
    %106 = vector.load %arg5[%c0_23, %c0_24, %c0_25] : memref<2x26x26xf32, #tpu.memory_space<vmem>>, vector<2x1x26xf32>
    %107 = vector.shape_cast %106 : vector<2x1x26xf32> to vector<2x26xf32>
    %c0_26 = arith.constant 0 : index
    %c0_27 = arith.constant 0 : index
    %c0_28 = arith.constant 0 : index
    %108 = vector.load %arg2[%c0_26, %c0_27, %c0_28] : memref<26x26x10xf32, #tpu.memory_space<vmem>>, vector<1x26x10xf32>
    %109 = vector.shape_cast %108 : vector<1x26x10xf32> to vector<26x10xf32>
    %cst_29 = arith.constant dense<0.000000e+00> : vector<2x10xf32>
    %110 = tpu.matmul %107, %109, %cst_29 {dimension_numbers = #tpu.dot_dimension_numbers<[1], [0], [0], [1], [0, 0, 1, 1], [], []>} : vector<2x26xf32>, vector<26x10xf32>, vector<2x10xf32> -> vector<2x10xf32>
    %111 = arith.addf %105, %110 : vector<2x10xf32>
    %c0_30 = arith.constant 0 : index
    %c1_31 = arith.constant 1 : index
    %c0_32 = arith.constant 0 : index
    %112 = vector.load %arg5[%c0_30, %c1_31, %c0_32] : memref<2x26x26xf32, #tpu.memory_space<vmem>>, vector<2x1x26xf32>
    %113 = vector.shape_cast %112 : vector<2x1x26xf32> to vector<2x26xf32>
    %c1_33 = arith.constant 1 : index
    %c0_34 = arith.constant 0 : index
    %c0_35 = arith.constant 0 : index
    %114 = vector.load %arg2[%c1_33, %c0_34, %c0_35] : memref<26x26x10xf32, #tpu.memory_space<vmem>>, vector<1x26x10xf32>
    %115 = vector.shape_cast %114 : vector<1x26x10xf32> to vector<26x10xf32>
    %cst_36 = arith.constant dense<0.000000e+00> : vector<2x10xf32>
    %116 = tpu.matmul %113, %115, %cst_36 {dimension_numbers = #tpu.dot_dimension_numbers<[1], [0], [0], [1], [0, 0, 1, 1], [], []>} : vector<2x26xf32>, vector<26x10xf32>, vector<2x10xf32> -> vector<2x10xf32>
    %117 = arith.addf %111, %116 : vector<2x10xf32>
    %c0_37 = arith.constant 0 : index
    %c2_38 = arith.constant 2 : index
    %c0_39 = arith.constant 0 : index
    %118 = vector.load %arg5[%c0_37, %c2_38, %c0_39] : memref<2x26x26xf32, #tpu.memory_space<vmem>>, vector<2x1x26xf32>
    %119 = vector.shape_cast %118 : vector<2x1x26xf32> to vector<2x26xf32>
    %c2_40 = arith.constant 2 : index
    %c0_41 = arith.constant 0 : index
    %c0_42 = arith.constant 0 : index
    %120 = vector.load %arg2[%c2_40, %c0_41, %c0_42] : memref<26x26x10xf32, #tpu.memory_space<vmem>>, vector<1x26x10xf32>
    %121 = vector.shape_cast %120 : vector<1x26x10xf32> to vector<26x10xf32>
    %cst_43 = arith.constant dense<0.000000e+00> : vector<2x10xf32>
    %122 = tpu.matmul %119, %121, %cst_43 {dimension_numbers = #tpu.dot_dimension_numbers<[1], [0], [0], [1], [0, 0, 1, 1], [], []>} : vector<2x26xf32>, vector<26x10xf32>, vector<2x10xf32> -> vector<2x10xf32>
    %123 = arith.addf %117, %122 : vector<2x10xf32>
    %c0_44 = arith.constant 0 : index
    %c3_45 = arith.constant 3 : index
    %c0_46 = arith.constant 0 : index
    %124 = vector.load %arg5[%c0_44, %c3_45, %c0_46] : memref<2x26x26xf32, #tpu.memory_space<vmem>>, vector<2x1x26xf32>
    %125 = vector.shape_cast %124 : vector<2x1x26xf32> to vector<2x26xf32>
    %c3_47 = arith.constant 3 : index
    %c0_48 = arith.constant 0 : index
    %c0_49 = arith.constant 0 : index
    %126 = vector.load %arg2[%c3_47, %c0_48, %c0_49] : memref<26x26x10xf32, #tpu.memory_space<vmem>>, vector<1x26x10xf32>
    %127 = vector.shape_cast %126 : vector<1x26x10xf32> to vector<26x10xf32>
    %cst_50 = arith.constant dense<0.000000e+00> : vector<2x10xf32>
    %128 = tpu.matmul %125, %127, %cst_50 {dimension_numbers = #tpu.dot_dimension_numbers<[1], [0], [0], [1], [0, 0, 1, 1], [], []>} : vector<2x26xf32>, vector<26x10xf32>, vector<2x10xf32> -> vector<2x10xf32>
    %129 = arith.addf %123, %128 : vector<2x10xf32>
    %c0_51 = arith.constant 0 : index
    %c4_52 = arith.constant 4 : index
    %c0_53 = arith.constant 0 : index
    %130 = vector.load %arg5[%c0_51, %c4_52, %c0_53] : memref<2x26x26xf32, #tpu.memory_space<vmem>>, vector<2x1x26xf32>
    %131 = vector.shape_cast %130 : vector<2x1x26xf32> to vector<2x26xf32>
    %c4_54 = arith.constant 4 : index
    %c0_55 = arith.constant 0 : index
    %c0_56 = arith.constant 0 : index
    %132 = vector.load %arg2[%c4_54, %c0_55, %c0_56] : memref<26x26x10xf32, #tpu.memory_space<vmem>>, vector<1x26x10xf32>
    %133 = vector.shape_cast %132 : vector<1x26x10xf32> to vector<26x10xf32>
    %cst_57 = arith.constant dense<0.000000e+00> : vector<2x10xf32>
    %134 = tpu.matmul %131, %133, %cst_57 {dimension_numbers = #tpu.dot_dimension_numbers<[1], [0], [0], [1], [0, 0, 1, 1], [], []>} : vector<2x26xf32>, vector<26x10xf32>, vector<2x10xf32> -> vector<2x10xf32>
    %135 = arith.addf %129, %134 : vector<2x10xf32>
    %c0_58 = arith.constant 0 : index
    %c5_59 = arith.constant 5 : index
    %c0_60 = arith.constant 0 : index
    %136 = vector.load %arg5[%c0_58, %c5_59, %c0_60] : memref<2x26x26xf32, #tpu.memory_space<vmem>>, vector<2x1x26xf32>
    %137 = vector.shape_cast %136 : vector<2x1x26xf32> to vector<2x26xf32>
    %c5_61 = arith.constant 5 : index
    %c0_62 = arith.constant 0 : index
    %c0_63 = arith.constant 0 : index
    %138 = vector.load %arg2[%c5_61, %c0_62, %c0_63] : memref<26x26x10xf32, #tpu.memory_space<vmem>>, vector<1x26x10xf32>
    %139 = vector.shape_cast %138 : vector<1x26x10xf32> to vector<26x10xf32>
    %cst_64 = arith.constant dense<0.000000e+00> : vector<2x10xf32>
    %140 = tpu.matmul %137, %139, %cst_64 {dimension_numbers = #tpu.dot_dimension_numbers<[1], [0], [0], [1], [0, 0, 1, 1], [], []>} : vector<2x26xf32>, vector<26x10xf32>, vector<2x10xf32> -> vector<2x10xf32>
    %141 = arith.addf %135, %140 : vector<2x10xf32>
    %c0_65 = arith.constant 0 : index
    %c6_66 = arith.constant 6 : index
    %c0_67 = arith.constant 0 : index
    %142 = vector.load %arg5[%c0_65, %c6_66, %c0_67] : memref<2x26x26xf32, #tpu.memory_space<vmem>>, vector<2x1x26xf32>
    %143 = vector.shape_cast %142 : vector<2x1x26xf32> to vector<2x26xf32>
    %c6_68 = arith.constant 6 : index
    %c0_69 = arith.constant 0 : index
    %c0_70 = arith.constant 0 : index
    %144 = vector.load %arg2[%c6_68, %c0_69, %c0_70] : memref<26x26x10xf32, #tpu.memory_space<vmem>>, vector<1x26x10xf32>
    %145 = vector.shape_cast %144 : vector<1x26x10xf32> to vector<26x10xf32>
    %cst_71 = arith.constant dense<0.000000e+00> : vector<2x10xf32>
    %146 = tpu.matmul %143, %145, %cst_71 {dimension_numbers = #tpu.dot_dimension_numbers<[1], [0], [0], [1], [0, 0, 1, 1], [], []>} : vector<2x26xf32>, vector<26x10xf32>, vector<2x10xf32> -> vector<2x10xf32>
    %147 = arith.addf %141, %146 : vector<2x10xf32>
    %c0_72 = arith.constant 0 : index
    %c7_73 = arith.constant 7 : index
    %c0_74 = arith.constant 0 : index
    %148 = vector.load %arg5[%c0_72, %c7_73, %c0_74] : memref<2x26x26xf32, #tpu.memory_space<vmem>>, vector<2x1x26xf32>
    %149 = vector.shape_cast %148 : vector<2x1x26xf32> to vector<2x26xf32>
    %c7_75 = arith.constant 7 : index
    %c0_76 = arith.constant 0 : index
    %c0_77 = arith.constant 0 : index
    %150 = vector.load %arg2[%c7_75, %c0_76, %c0_77] : memref<26x26x10xf32, #tpu.memory_space<vmem>>, vector<1x26x10xf32>
    %151 = vector.shape_cast %150 : vector<1x26x10xf32> to vector<26x10xf32>
    %cst_78 = arith.constant dense<0.000000e+00> : vector<2x10xf32>
    %152 = tpu.matmul %149, %151, %cst_78 {dimension_numbers = #tpu.dot_dimension_numbers<[1], [0], [0], [1], [0, 0, 1, 1], [], []>} : vector<2x26xf32>, vector<26x10xf32>, vector<2x10xf32> -> vector<2x10xf32>
    %153 = arith.addf %147, %152 : vector<2x10xf32>
    %c0_79 = arith.constant 0 : index
    %c8_80 = arith.constant 8 : index
    %c0_81 = arith.constant 0 : index
    %154 = vector.load %arg5[%c0_79, %c8_80, %c0_81] : memref<2x26x26xf32, #tpu.memory_space<vmem>>, vector<2x1x26xf32>
    %155 = vector.shape_cast %154 : vector<2x1x26xf32> to vector<2x26xf32>
    %c8_82 = arith.constant 8 : index
    %c0_83 = arith.constant 0 : index
    %c0_84 = arith.constant 0 : index
    %156 = vector.load %arg2[%c8_82, %c0_83, %c0_84] : memref<26x26x10xf32, #tpu.memory_space<vmem>>, vector<1x26x10xf32>
    %157 = vector.shape_cast %156 : vector<1x26x10xf32> to vector<26x10xf32>
    %cst_85 = arith.constant dense<0.000000e+00> : vector<2x10xf32>
    %158 = tpu.matmul %155, %157, %cst_85 {dimension_numbers = #tpu.dot_dimension_numbers<[1], [0], [0], [1], [0, 0, 1, 1], [], []>} : vector<2x26xf32>, vector<26x10xf32>, vector<2x10xf32> -> vector<2x10xf32>
    %159 = arith.addf %153, %158 : vector<2x10xf32>
    %c0_86 = arith.constant 0 : index
    %c9_87 = arith.constant 9 : index
    %c0_88 = arith.constant 0 : index
    %160 = vector.load %arg5[%c0_86, %c9_87, %c0_88] : memref<2x26x26xf32, #tpu.memory_space<vmem>>, vector<2x1x26xf32>
    %161 = vector.shape_cast %160 : vector<2x1x26xf32> to vector<2x26xf32>
    %c9_89 = arith.constant 9 : index
    %c0_90 = arith.constant 0 : index
    %c0_91 = arith.constant 0 : index
    %162 = vector.load %arg2[%c9_89, %c0_90, %c0_91] : memref<26x26x10xf32, #tpu.memory_space<vmem>>, vector<1x26x10xf32>
    %163 = vector.shape_cast %162 : vector<1x26x10xf32> to vector<26x10xf32>
    %cst_92 = arith.constant dense<0.000000e+00> : vector<2x10xf32>
    %164 = tpu.matmul %161, %163, %cst_92 {dimension_numbers = #tpu.dot_dimension_numbers<[1], [0], [0], [1], [0, 0, 1, 1], [], []>} : vector<2x26xf32>, vector<26x10xf32>, vector<2x10xf32> -> vector<2x10xf32>
    %165 = arith.addf %159, %164 : vector<2x10xf32>
    %c0_93 = arith.constant 0 : index
    %c10_94 = arith.constant 10 : index
    %c0_95 = arith.constant 0 : index
    %166 = vector.load %arg5[%c0_93, %c10_94, %c0_95] : memref<2x26x26xf32, #tpu.memory_space<vmem>>, vector<2x1x26xf32>
    %167 = vector.shape_cast %166 : vector<2x1x26xf32> to vector<2x26xf32>
    %c10_96 = arith.constant 10 : index
    %c0_97 = arith.constant 0 : index
    %c0_98 = arith.constant 0 : index
    %168 = vector.load %arg2[%c10_96, %c0_97, %c0_98] : memref<26x26x10xf32, #tpu.memory_space<vmem>>, vector<1x26x10xf32>
    %169 = vector.shape_cast %168 : vector<1x26x10xf32> to vector<26x10xf32>
    %cst_99 = arith.constant dense<0.000000e+00> : vector<2x10xf32>
    %170 = tpu.matmul %167, %169, %cst_99 {dimension_numbers = #tpu.dot_dimension_numbers<[1], [0], [0], [1], [0, 0, 1, 1], [], []>} : vector<2x26xf32>, vector<26x10xf32>, vector<2x10xf32> -> vector<2x10xf32>
    %171 = arith.addf %165, %170 : vector<2x10xf32>
    %c0_100 = arith.constant 0 : index
    %c11_101 = arith.constant 11 : index
    %c0_102 = arith.constant 0 : index
    %172 = vector.load %arg5[%c0_100, %c11_101, %c0_102] : memref<2x26x26xf32, #tpu.memory_space<vmem>>, vector<2x1x26xf32>
    %173 = vector.shape_cast %172 : vector<2x1x26xf32> to vector<2x26xf32>
    %c11_103 = arith.constant 11 : index
    %c0_104 = arith.constant 0 : index
    %c0_105 = arith.constant 0 : index
    %174 = vector.load %arg2[%c11_103, %c0_104, %c0_105] : memref<26x26x10xf32, #tpu.memory_space<vmem>>, vector<1x26x10xf32>
    %175 = vector.shape_cast %174 : vector<1x26x10xf32> to vector<26x10xf32>
    %cst_106 = arith.constant dense<0.000000e+00> : vector<2x10xf32>
    %176 = tpu.matmul %173, %175, %cst_106 {dimension_numbers = #tpu.dot_dimension_numbers<[1], [0], [0], [1], [0, 0, 1, 1], [], []>} : vector<2x26xf32>, vector<26x10xf32>, vector<2x10xf32> -> vector<2x10xf32>
    %177 = arith.addf %171, %176 : vector<2x10xf32>
    %c0_107 = arith.constant 0 : index
    %c12_108 = arith.constant 12 : index
    %c0_109 = arith.constant 0 : index
    %178 = vector.load %arg5[%c0_107, %c12_108, %c0_109] : memref<2x26x26xf32, #tpu.memory_space<vmem>>, vector<2x1x26xf32>
    %179 = vector.shape_cast %178 : vector<2x1x26xf32> to vector<2x26xf32>
    %c12_110 = arith.constant 12 : index
    %c0_111 = arith.constant 0 : index
    %c0_112 = arith.constant 0 : index
    %180 = vector.load %arg2[%c12_110, %c0_111, %c0_112] : memref<26x26x10xf32, #tpu.memory_space<vmem>>, vector<1x26x10xf32>
    %181 = vector.shape_cast %180 : vector<1x26x10xf32> to vector<26x10xf32>
    %cst_113 = arith.constant dense<0.000000e+00> : vector<2x10xf32>
    %182 = tpu.matmul %179, %181, %cst_113 {dimension_numbers = #tpu.dot_dimension_numbers<[1], [0], [0], [1], [0, 0, 1, 1], [], []>} : vector<2x26xf32>, vector<26x10xf32>, vector<2x10xf32> -> vector<2x10xf32>
    %183 = arith.addf %177, %182 : vector<2x10xf32>
    %c0_114 = arith.constant 0 : index
    %c13_115 = arith.constant 13 : index
    %c0_116 = arith.constant 0 : index
    %184 = vector.load %arg5[%c0_114, %c13_115, %c0_116] : memref<2x26x26xf32, #tpu.memory_space<vmem>>, vector<2x1x26xf32>
    %185 = vector.shape_cast %184 : vector<2x1x26xf32> to vector<2x26xf32>
    %c13_117 = arith.constant 13 : index
    %c0_118 = arith.constant 0 : index
    %c0_119 = arith.constant 0 : index
    %186 = vector.load %arg2[%c13_117, %c0_118, %c0_119] : memref<26x26x10xf32, #tpu.memory_space<vmem>>, vector<1x26x10xf32>
    %187 = vector.shape_cast %186 : vector<1x26x10xf32> to vector<26x10xf32>
    %cst_120 = arith.constant dense<0.000000e+00> : vector<2x10xf32>
    %188 = tpu.matmul %185, %187, %cst_120 {dimension_numbers = #tpu.dot_dimension_numbers<[1], [0], [0], [1], [0, 0, 1, 1], [], []>} : vector<2x26xf32>, vector<26x10xf32>, vector<2x10xf32> -> vector<2x10xf32>
    %189 = arith.addf %183, %188 : vector<2x10xf32>
    %c0_121 = arith.constant 0 : index
    %c14_122 = arith.constant 14 : index
    %c0_123 = arith.constant 0 : index
    %190 = vector.load %arg5[%c0_121, %c14_122, %c0_123] : memref<2x26x26xf32, #tpu.memory_space<vmem>>, vector<2x1x26xf32>
    %191 = vector.shape_cast %190 : vector<2x1x26xf32> to vector<2x26xf32>
    %c14_124 = arith.constant 14 : index
    %c0_125 = arith.constant 0 : index
    %c0_126 = arith.constant 0 : index
    %192 = vector.load %arg2[%c14_124, %c0_125, %c0_126] : memref<26x26x10xf32, #tpu.memory_space<vmem>>, vector<1x26x10xf32>
    %193 = vector.shape_cast %192 : vector<1x26x10xf32> to vector<26x10xf32>
    %cst_127 = arith.constant dense<0.000000e+00> : vector<2x10xf32>
    %194 = tpu.matmul %191, %193, %cst_127 {dimension_numbers = #tpu.dot_dimension_numbers<[1], [0], [0], [1], [0, 0, 1, 1], [], []>} : vector<2x26xf32>, vector<26x10xf32>, vector<2x10xf32> -> vector<2x10xf32>
    %195 = arith.addf %189, %194 : vector<2x10xf32>
    %c0_128 = arith.constant 0 : index
    %c15 = arith.constant 15 : index
    %c0_129 = arith.constant 0 : index
    %196 = vector.load %arg5[%c0_128, %c15, %c0_129] : memref<2x26x26xf32, #tpu.memory_space<vmem>>, vector<2x1x26xf32>
    %197 = vector.shape_cast %196 : vector<2x1x26xf32> to vector<2x26xf32>
    %c15_130 = arith.constant 15 : index
    %c0_131 = arith.constant 0 : index
    %c0_132 = arith.constant 0 : index
    %198 = vector.load %arg2[%c15_130, %c0_131, %c0_132] : memref<26x26x10xf32, #tpu.memory_space<vmem>>, vector<1x26x10xf32>
    %199 = vector.shape_cast %198 : vector<1x26x10xf32> to vector<26x10xf32>
    %cst_133 = arith.constant dense<0.000000e+00> : vector<2x10xf32>
    %200 = tpu.matmul %197, %199, %cst_133 {dimension_numbers = #tpu.dot_dimension_numbers<[1], [0], [0], [1], [0, 0, 1, 1], [], []>} : vector<2x26xf32>, vector<26x10xf32>, vector<2x10xf32> -> vector<2x10xf32>
    %201 = arith.addf %195, %200 : vector<2x10xf32>
    %c0_134 = arith.constant 0 : index
    %c16 = arith.constant 16 : index
    %c0_135 = arith.constant 0 : index
    %202 = vector.load %arg5[%c0_134, %c16, %c0_135] : memref<2x26x26xf32, #tpu.memory_space<vmem>>, vector<2x1x26xf32>
    %203 = vector.shape_cast %202 : vector<2x1x26xf32> to vector<2x26xf32>
    %c16_136 = arith.constant 16 : index
    %c0_137 = arith.constant 0 : index
    %c0_138 = arith.constant 0 : index
    %204 = vector.load %arg2[%c16_136, %c0_137, %c0_138] : memref<26x26x10xf32, #tpu.memory_space<vmem>>, vector<1x26x10xf32>
    %205 = vector.shape_cast %204 : vector<1x26x10xf32> to vector<26x10xf32>
    %cst_139 = arith.constant dense<0.000000e+00> : vector<2x10xf32>
    %206 = tpu.matmul %203, %205, %cst_139 {dimension_numbers = #tpu.dot_dimension_numbers<[1], [0], [0], [1], [0, 0, 1, 1], [], []>} : vector<2x26xf32>, vector<26x10xf32>, vector<2x10xf32> -> vector<2x10xf32>
    %207 = arith.addf %201, %206 : vector<2x10xf32>
    %c0_140 = arith.constant 0 : index
    %c17 = arith.constant 17 : index
    %c0_141 = arith.constant 0 : index
    %208 = vector.load %arg5[%c0_140, %c17, %c0_141] : memref<2x26x26xf32, #tpu.memory_space<vmem>>, vector<2x1x26xf32>
    %209 = vector.shape_cast %208 : vector<2x1x26xf32> to vector<2x26xf32>
    %c17_142 = arith.constant 17 : index
    %c0_143 = arith.constant 0 : index
    %c0_144 = arith.constant 0 : index
    %210 = vector.load %arg2[%c17_142, %c0_143, %c0_144] : memref<26x26x10xf32, #tpu.memory_space<vmem>>, vector<1x26x10xf32>
    %211 = vector.shape_cast %210 : vector<1x26x10xf32> to vector<26x10xf32>
    %cst_145 = arith.constant dense<0.000000e+00> : vector<2x10xf32>
    %212 = tpu.matmul %209, %211, %cst_145 {dimension_numbers = #tpu.dot_dimension_numbers<[1], [0], [0], [1], [0, 0, 1, 1], [], []>} : vector<2x26xf32>, vector<26x10xf32>, vector<2x10xf32> -> vector<2x10xf32>
    %213 = arith.addf %207, %212 : vector<2x10xf32>
    %c0_146 = arith.constant 0 : index
    %c18 = arith.constant 18 : index
    %c0_147 = arith.constant 0 : index
    %214 = vector.load %arg5[%c0_146, %c18, %c0_147] : memref<2x26x26xf32, #tpu.memory_space<vmem>>, vector<2x1x26xf32>
    %215 = vector.shape_cast %214 : vector<2x1x26xf32> to vector<2x26xf32>
    %c18_148 = arith.constant 18 : index
    %c0_149 = arith.constant 0 : index
    %c0_150 = arith.constant 0 : index
    %216 = vector.load %arg2[%c18_148, %c0_149, %c0_150] : memref<26x26x10xf32, #tpu.memory_space<vmem>>, vector<1x26x10xf32>
    %217 = vector.shape_cast %216 : vector<1x26x10xf32> to vector<26x10xf32>
    %cst_151 = arith.constant dense<0.000000e+00> : vector<2x10xf32>
    %218 = tpu.matmul %215, %217, %cst_151 {dimension_numbers = #tpu.dot_dimension_numbers<[1], [0], [0], [1], [0, 0, 1, 1], [], []>} : vector<2x26xf32>, vector<26x10xf32>, vector<2x10xf32> -> vector<2x10xf32>
    %219 = arith.addf %213, %218 : vector<2x10xf32>
    %c0_152 = arith.constant 0 : index
    %c19 = arith.constant 19 : index
    %c0_153 = arith.constant 0 : index
    %220 = vector.load %arg5[%c0_152, %c19, %c0_153] : memref<2x26x26xf32, #tpu.memory_space<vmem>>, vector<2x1x26xf32>
    %221 = vector.shape_cast %220 : vector<2x1x26xf32> to vector<2x26xf32>
    %c19_154 = arith.constant 19 : index
    %c0_155 = arith.constant 0 : index
    %c0_156 = arith.constant 0 : index
    %222 = vector.load %arg2[%c19_154, %c0_155, %c0_156] : memref<26x26x10xf32, #tpu.memory_space<vmem>>, vector<1x26x10xf32>
    %223 = vector.shape_cast %222 : vector<1x26x10xf32> to vector<26x10xf32>
    %cst_157 = arith.constant dense<0.000000e+00> : vector<2x10xf32>
    %224 = tpu.matmul %221, %223, %cst_157 {dimension_numbers = #tpu.dot_dimension_numbers<[1], [0], [0], [1], [0, 0, 1, 1], [], []>} : vector<2x26xf32>, vector<26x10xf32>, vector<2x10xf32> -> vector<2x10xf32>
    %225 = arith.addf %219, %224 : vector<2x10xf32>
    %c0_158 = arith.constant 0 : index
    %c20 = arith.constant 20 : index
    %c0_159 = arith.constant 0 : index
    %226 = vector.load %arg5[%c0_158, %c20, %c0_159] : memref<2x26x26xf32, #tpu.memory_space<vmem>>, vector<2x1x26xf32>
    %227 = vector.shape_cast %226 : vector<2x1x26xf32> to vector<2x26xf32>
    %c20_160 = arith.constant 20 : index
    %c0_161 = arith.constant 0 : index
    %c0_162 = arith.constant 0 : index
    %228 = vector.load %arg2[%c20_160, %c0_161, %c0_162] : memref<26x26x10xf32, #tpu.memory_space<vmem>>, vector<1x26x10xf32>
    %229 = vector.shape_cast %228 : vector<1x26x10xf32> to vector<26x10xf32>
    %cst_163 = arith.constant dense<0.000000e+00> : vector<2x10xf32>
    %230 = tpu.matmul %227, %229, %cst_163 {dimension_numbers = #tpu.dot_dimension_numbers<[1], [0], [0], [1], [0, 0, 1, 1], [], []>} : vector<2x26xf32>, vector<26x10xf32>, vector<2x10xf32> -> vector<2x10xf32>
    %231 = arith.addf %225, %230 : vector<2x10xf32>
    %c0_164 = arith.constant 0 : index
    %c21 = arith.constant 21 : index
    %c0_165 = arith.constant 0 : index
    %232 = vector.load %arg5[%c0_164, %c21, %c0_165] : memref<2x26x26xf32, #tpu.memory_space<vmem>>, vector<2x1x26xf32>
    %233 = vector.shape_cast %232 : vector<2x1x26xf32> to vector<2x26xf32>
    %c21_166 = arith.constant 21 : index
    %c0_167 = arith.constant 0 : index
    %c0_168 = arith.constant 0 : index
    %234 = vector.load %arg2[%c21_166, %c0_167, %c0_168] : memref<26x26x10xf32, #tpu.memory_space<vmem>>, vector<1x26x10xf32>
    %235 = vector.shape_cast %234 : vector<1x26x10xf32> to vector<26x10xf32>
    %cst_169 = arith.constant dense<0.000000e+00> : vector<2x10xf32>
    %236 = tpu.matmul %233, %235, %cst_169 {dimension_numbers = #tpu.dot_dimension_numbers<[1], [0], [0], [1], [0, 0, 1, 1], [], []>} : vector<2x26xf32>, vector<26x10xf32>, vector<2x10xf32> -> vector<2x10xf32>
    %237 = arith.addf %231, %236 : vector<2x10xf32>
    %c0_170 = arith.constant 0 : index
    %c22 = arith.constant 22 : index
    %c0_171 = arith.constant 0 : index
    %238 = vector.load %arg5[%c0_170, %c22, %c0_171] : memref<2x26x26xf32, #tpu.memory_space<vmem>>, vector<2x1x26xf32>
    %239 = vector.shape_cast %238 : vector<2x1x26xf32> to vector<2x26xf32>
    %c22_172 = arith.constant 22 : index
    %c0_173 = arith.constant 0 : index
    %c0_174 = arith.constant 0 : index
    %240 = vector.load %arg2[%c22_172, %c0_173, %c0_174] : memref<26x26x10xf32, #tpu.memory_space<vmem>>, vector<1x26x10xf32>
    %241 = vector.shape_cast %240 : vector<1x26x10xf32> to vector<26x10xf32>
    %cst_175 = arith.constant dense<0.000000e+00> : vector<2x10xf32>
    %242 = tpu.matmul %239, %241, %cst_175 {dimension_numbers = #tpu.dot_dimension_numbers<[1], [0], [0], [1], [0, 0, 1, 1], [], []>} : vector<2x26xf32>, vector<26x10xf32>, vector<2x10xf32> -> vector<2x10xf32>
    %243 = arith.addf %237, %242 : vector<2x10xf32>
    %c0_176 = arith.constant 0 : index
    %c23 = arith.constant 23 : index
    %c0_177 = arith.constant 0 : index
    %244 = vector.load %arg5[%c0_176, %c23, %c0_177] : memref<2x26x26xf32, #tpu.memory_space<vmem>>, vector<2x1x26xf32>
    %245 = vector.shape_cast %244 : vector<2x1x26xf32> to vector<2x26xf32>
    %c23_178 = arith.constant 23 : index
    %c0_179 = arith.constant 0 : index
    %c0_180 = arith.constant 0 : index
    %246 = vector.load %arg2[%c23_178, %c0_179, %c0_180] : memref<26x26x10xf32, #tpu.memory_space<vmem>>, vector<1x26x10xf32>
    %247 = vector.shape_cast %246 : vector<1x26x10xf32> to vector<26x10xf32>
    %cst_181 = arith.constant dense<0.000000e+00> : vector<2x10xf32>
    %248 = tpu.matmul %245, %247, %cst_181 {dimension_numbers = #tpu.dot_dimension_numbers<[1], [0], [0], [1], [0, 0, 1, 1], [], []>} : vector<2x26xf32>, vector<26x10xf32>, vector<2x10xf32> -> vector<2x10xf32>
    %249 = arith.addf %243, %248 : vector<2x10xf32>
    %c0_182 = arith.constant 0 : index
    %c24 = arith.constant 24 : index
    %c0_183 = arith.constant 0 : index
    %250 = vector.load %arg5[%c0_182, %c24, %c0_183] : memref<2x26x26xf32, #tpu.memory_space<vmem>>, vector<2x1x26xf32>
    %251 = vector.shape_cast %250 : vector<2x1x26xf32> to vector<2x26xf32>
    %c24_184 = arith.constant 24 : index
    %c0_185 = arith.constant 0 : index
    %c0_186 = arith.constant 0 : index
    %252 = vector.load %arg2[%c24_184, %c0_185, %c0_186] : memref<26x26x10xf32, #tpu.memory_space<vmem>>, vector<1x26x10xf32>
    %253 = vector.shape_cast %252 : vector<1x26x10xf32> to vector<26x10xf32>
    %cst_187 = arith.constant dense<0.000000e+00> : vector<2x10xf32>
    %254 = tpu.matmul %251, %253, %cst_187 {dimension_numbers = #tpu.dot_dimension_numbers<[1], [0], [0], [1], [0, 0, 1, 1], [], []>} : vector<2x26xf32>, vector<26x10xf32>, vector<2x10xf32> -> vector<2x10xf32>
    %255 = arith.addf %249, %254 : vector<2x10xf32>
    %c0_188 = arith.constant 0 : index
    %c25 = arith.constant 25 : index
    %c0_189 = arith.constant 0 : index
    %256 = vector.load %arg5[%c0_188, %c25, %c0_189] : memref<2x26x26xf32, #tpu.memory_space<vmem>>, vector<2x1x26xf32>
    %257 = vector.shape_cast %256 : vector<2x1x26xf32> to vector<2x26xf32>
    %c25_190 = arith.constant 25 : index
    %c0_191 = arith.constant 0 : index
    %c0_192 = arith.constant 0 : index
    %258 = vector.load %arg2[%c25_190, %c0_191, %c0_192] : memref<26x26x10xf32, #tpu.memory_space<vmem>>, vector<1x26x10xf32>
    %259 = vector.shape_cast %258 : vector<1x26x10xf32> to vector<26x10xf32>
    %cst_193 = arith.constant dense<0.000000e+00> : vector<2x10xf32>
    %260 = tpu.matmul %257, %259, %cst_193 {dimension_numbers = #tpu.dot_dimension_numbers<[1], [0], [0], [1], [0, 0, 1, 1], [], []>} : vector<2x26xf32>, vector<26x10xf32>, vector<2x10xf32> -> vector<2x10xf32>
    %261 = arith.addf %255, %260 : vector<2x10xf32>
    %c0_194 = arith.constant 0 : index
    %c0_195 = arith.constant 0 : index
    %262 = vector.load %arg3[%c0_194, %c0_195] : memref<1x10xf32, #tpu.memory_space<vmem>>, vector<1x10xf32>
    %263 = vector.broadcast %262 : vector<1x10xf32> to vector<2x10xf32>
    %264 = arith.addf %261, %263 : vector<2x10xf32>
    %cst_196 = arith.constant dense<0xFF800000> : vector<2xf32>
    %265 = vector.multi_reduction <maximumf>, %264, %cst_196 [1] : vector<2x10xf32> to vector<2xf32>
    %266 = vector.shape_cast %265 : vector<2xf32> to vector<2x1xf32>
    %267 = vector.broadcast %266 : vector<2x1xf32> to vector<2x10xf32>
    %268 = arith.subf %264, %267 : vector<2x10xf32>
    %269 = math.exp %268 : vector<2x10xf32>
    %cst_197 = arith.constant dense<0.000000e+00> : vector<2xf32>
    %270 = vector.multi_reduction <add>, %269, %cst_197 [1] : vector<2x10xf32> to vector<2xf32>
    %271 = vector.shape_cast %270 : vector<2xf32> to vector<2x1xf32>
    %272 = vector.broadcast %271 : vector<2x1xf32> to vector<2x10xf32>
    %273 = arith.divf %269, %272 : vector<2x10xf32>
    %c0_198 = arith.constant 0 : index
    %c0_199 = arith.constant 0 : index
    %274 = vector.load %arg4[%c0_198, %c0_199] : memref<2x10xf32, #tpu.memory_space<vmem>>, vector<2x10xf32>
    tpu.vector_store %arg4[%c0_198, %c0_199], %273 {strides = array<i32>} : memref<2x10xf32, #tpu.memory_space<vmem>>, vector<2x10xf32>,
    return
  }
}

</mosaic_0001>

<llo_original>
// kernel: l_forward.1
$region0: #{l_forward.1}
  #allocation0 [shape = 'u32[]', space=smem, size = 0x4, offset = 0x4, fixed_abs, tag = 'smem constant byte address 0x4 - core index']
  #allocation1 [shape = 'u32[144,128]{1,0:T(1,128)}', space=vmem, size = 0x12000, scoped, tag = 'internal scratch']
  #allocation2 [shape = 'f32[2,26,26]{2,1,0:T(8,128)}', space=vmem, size = 0x8000, scoped, tag = 'scratch operand']
  %s0 = inlined_call_operand.vmem [shape: f32[16], index: 0, kind: input, shape index: {}]
  %s1 = inlined_call_operand.vmem [shape: f32[2,28,28], index: 1, kind: input, shape index: {}]
  %s2 = inlined_call_operand.vmem [shape: f32[26,26,10], index: 2, kind: input, shape index: {}]
  %s3 = inlined_call_operand.vmem [shape: f32[1,10], index: 3, kind: input, shape index: {}]
  %s4 = inlined_call_operand.hbm [shape: f32[2,10], index: 4, kind: output, shape index: {}]
  %s5 = sld [smem:[#allocation0]]
  $region30: #{l_forward.1} parent=0
    _
  %s7 = ssub.s32 1, %s5
  %s8 = scalar_select 0, %s7, %s5
  $region1: #{l_forward.1} parent=0
    #allocation3 [shape = 'u8[512]{0}', space=smem, size = 0x200, scoped, tag = 'input window, operand 0, single buffered']
    #allocation4 [shape = 's32[1]{0}', space=sflag, size = 0x4, scoped, tag = 'scoped memory for l_forward.1']
    #allocation5 [shape = 's32[1]{0}', space=sflag, size = 0x4, scoped, tag = 'scoped memory for l_forward.1']
    #allocation6 [shape = 'u8[1024]{0}', space=vmem, size = 0x400, scoped, tag = 'output window, operand 0, single buffered']
    %9 = vsyncpa [#allocation5], 0
    %10 = vsyncpa [#allocation4], 0
    // Predicated region
    $region2: #{l_forward.1} parent=1 // pred_check
      _
    $region3: #{l_forward.1} parent=1 // pred_check_branch
      %12 = sbr.rel (0) target = $region5
    $region4: #{l_forward.1} parent=1 // pred_region
      %s14 = ssub.s32 16, 16
      %15 = vsyncadd [#allocation5], %s14
      %s17 = sshll.u32 %s0, 4
      %s18 = int_to_ptr.vmem [resolvable:$true] %s17
      %20 = dma.vmem_to_smem %s18, 16, [#allocation3], [#allocation5]
    $region5: #{l_forward.1} parent=1 // pred_fallthru
      _
    // Predicated region
    $region6: #{l_forward.1} parent=1 // pred_check
      _
    $region7: #{l_forward.1} parent=1 // pred_check_branch
      %22 = sbr.rel (0) target = $region9
    $region8: #{l_forward.1} parent=1 // pred_region
      _
    $region9: #{l_forward.1} parent=1 // pred_fallthru
      _
    // Predicated region
    $region10: #{l_forward.1} parent=1 // pred_check
      _
    $region11: #{l_forward.1} parent=1 // pred_check_branch
      %24 = sbr.rel (0) target = $region13
    $region12: #{l_forward.1} parent=1 // pred_region
      _
    $region13: #{l_forward.1} parent=1 // pred_fallthru
      _
    // Predicated region
    $region14: #{l_forward.1} parent=1 // pred_check
      _
    $region15: #{l_forward.1} parent=1 // pred_check_branch
      %26 = sbr.rel (0) target = $region17
    $region16: #{l_forward.1} parent=1 // pred_region
      _
    $region17: #{l_forward.1} parent=1 // pred_fallthru
      _
    // Predicated region
    $region18: #{l_forward.1} parent=1 // pred_check
      _
    $region19: #{l_forward.1} parent=1 // pred_check_branch
      %28 = sbr.rel (0) target = $region21
    $region20: #{l_forward.1} parent=1 // pred_region
      %29 = dma.done [#allocation5], 16
    $region21: #{l_forward.1} parent=1 // pred_fallthru
      _
    %30 = sfence
    %v31 = vld [vmem:[%s1] sm:$0xff]
    %v32 = vld [vmem:[%s1 + $0x8] sm:$0xff]
    %v33 = vld [vmem:[%s1 + $0x10] sm:$0xff]
    %v34 = vld [vmem:[%s1 + $0x18] sm:$0xf]
    %v35 = vld [vmem:[%s1 + $0x20] sm:$0xff]
    %v36 = vld [vmem:[%s1 + $0x28] sm:$0xff]
    %v37 = vld [vmem:[%s1 + $0x30] sm:$0xff]
    %v38 = vld [vmem:[%s1 + $0x38] sm:$0xf]
    %s39 = sld [smem:[#allocation3]]
    %v40 = vstv %s39
    %v41 = vmul.f32 %v40, %v31
    %v42 = vmul.f32 %v40, %v32
    %v43 = vmul.f32 %v40, %v33
    %v44 = vmul.f32 %v40, %v34
    %v45 = vmul.f32 %v40, %v35
    %v46 = vmul.f32 %v40, %v36
    %v47 = vmul.f32 %v40, %v37
    %v48 = vmul.f32 %v40, %v38
    %s49 = sld [smem:[#allocation3 + $0x3]]
    %v50 = vstv %s49
    %v51 = vmul.f32 %v50, %v31
    %v52 = vmul.f32 %v50, %v32
    %v53 = vmul.f32 %v50, %v33
    %v54 = vmul.f32 %v50, %v34
    %v55 = vmul.f32 %v50, %v35
    %v56 = vmul.f32 %v50, %v36
    %v57 = vmul.f32 %v50, %v37
    %v58 = vmul.f32 %v50, %v38
    %vm67 = vcmask 1046528
    %v68 = vrot.slane %v51, 1
    %v69 = vrot.slane %v52, 1
    %v70 = vsel %vm67, %v68, %v69
    %v71 = vrot.slane %v53, 1
    %v72 = vsel %vm67, %v69, %v71
    %v73 = vrot.slane %v54, 1
    %v74 = vsel %vm67, %v71, %v73
    %v75 = vrot.slane %v55, 1
    %v76 = vrot.slane %v56, 1
    %v77 = vsel %vm67, %v75, %v76
    %v78 = vrot.slane %v57, 1
    %v79 = vsel %vm67, %v76, %v78
    %v80 = vrot.slane %v58, 1
    %v81 = vsel %vm67, %v78, %v80
    %v90 = vadd.f32 %v41, %v70
    %v91 = vadd.f32 %v42, %v72
    %v92 = vadd.f32 %v43, %v74
    %v93 = vadd.f32 %v44, %v73
    %v94 = vadd.f32 %v45, %v77
    %v95 = vadd.f32 %v46, %v79
    %v96 = vadd.f32 %v47, %v81
    %v97 = vadd.f32 %v48, %v80
    %s98 = sld [smem:[#allocation3 + $0x6]]
    %v99 = vstv %s98
    %v100 = vmul.f32 %v99, %v31
    %v101 = vmul.f32 %v99, %v32
    %v102 = vmul.f32 %v99, %v33
    %v103 = vmul.f32 %v99, %v34
    %v104 = vmul.f32 %v99, %v35
    %v105 = vmul.f32 %v99, %v36
    %v106 = vmul.f32 %v99, %v37
    %v107 = vmul.f32 %v99, %v38
    %vm116 = vcmask 1045504
    %v117 = vrot.slane %v100, 2
    %v118 = vrot.slane %v101, 2
    %v119 = vsel %vm116, %v117, %v118
    %v120 = vrot.slane %v102, 2
    %v121 = vsel %vm116, %v118, %v120
    %v122 = vrot.slane %v103, 2
    %v123 = vsel %vm116, %v120, %v122
    %v124 = vrot.slane %v104, 2
    %v125 = vrot.slane %v105, 2
    %v126 = vsel %vm116, %v124, %v125
    %v127 = vrot.slane %v106, 2
    %v128 = vsel %vm116, %v125, %v127
    %v129 = vrot.slane %v107, 2
    %v130 = vsel %vm116, %v127, %v129
    %v139 = vadd.f32 %v90, %v119
    %v140 = vadd.f32 %v91, %v121
    %v141 = vadd.f32 %v92, %v123
    %v142 = vadd.f32 %v93, %v122
    %v143 = vadd.f32 %v94, %v126
    %v144 = vadd.f32 %v95, %v128
    %v145 = vadd.f32 %v96, %v130
    %v146 = vadd.f32 %v97, %v129
    %s147 = sld [smem:[#allocation3 + $0x1]]
    %v148 = vstv %s147
    %v149 = vmul.f32 %v148, %v31
    %v150 = vmul.f32 %v148, %v32
    %v151 = vmul.f32 %v148, %v33
    %v152 = vmul.f32 %v148, %v34
    %v153 = vmul.f32 %v148, %v35
    %v154 = vmul.f32 %v148, %v36
    %v155 = vmul.f32 %v148, %v37
    %v156 = vmul.f32 %v148, %v38
    %165 = vrot.lane.b32.xlu0 %v149, 127
    %v166 = vpop.permute.xlu0 %165
    %167 = vrot.lane.b32.xlu0 %v150, 127
    %v168 = vpop.permute.xlu0 %167
    %169 = vrot.lane.b32.xlu0 %v151, 127
    %v170 = vpop.permute.xlu0 %169
    %171 = vrot.lane.b32.xlu0 %v152, 127
    %v172 = vpop.permute.xlu0 %171
    %173 = vrot.lane.b32.xlu0 %v153, 127
    %v174 = vpop.permute.xlu0 %173
    %175 = vrot.lane.b32.xlu0 %v154, 127
    %v176 = vpop.permute.xlu0 %175
    %177 = vrot.lane.b32.xlu0 %v155, 127
    %v178 = vpop.permute.xlu0 %177
    %179 = vrot.lane.b32.xlu0 %v156, 127
    %v180 = vpop.permute.xlu0 %179
    %v189 = vadd.f32 %v139, %v166
    %v190 = vadd.f32 %v140, %v168
    %v191 = vadd.f32 %v141, %v170
    %v192 = vadd.f32 %v142, %v172
    %v193 = vadd.f32 %v143, %v174
    %v194 = vadd.f32 %v144, %v176
    %v195 = vadd.f32 %v145, %v178
    %v196 = vadd.f32 %v146, %v180
    %s197 = sld [smem:[#allocation3 + $0x4]]
    %v198 = vstv %s197
    %v199 = vmul.f32 %v198, %v31
    %v200 = vmul.f32 %v198, %v32
    %v201 = vmul.f32 %v198, %v33
    %v202 = vmul.f32 %v198, %v34
    %v203 = vmul.f32 %v198, %v35
    %v204 = vmul.f32 %v198, %v36
    %v205 = vmul.f32 %v198, %v37
    %v206 = vmul.f32 %v198, %v38
    %v215 = vrot.slane %v199, 1
    %v216 = vrot.slane %v200, 1
    %v217 = vsel %vm67, %v215, %v216
    %v218 = vrot.slane %v201, 1
    %v219 = vsel %vm67, %v216, %v218
    %v220 = vrot.slane %v202, 1
    %v221 = vsel %vm67, %v218, %v220
    %v222 = vrot.slane %v203, 1
    %v223 = vrot.slane %v204, 1
    %v224 = vsel %vm67, %v222, %v223
    %v225 = vrot.slane %v205, 1
    %v226 = vsel %vm67, %v223, %v225
    %v227 = vrot.slane %v206, 1
    %v228 = vsel %vm67, %v225, %v227
    %229 = vrot.lane.b32.xlu0 %v217, 127
    %v230 = vpop.permute.xlu0 %229
    %231 = vrot.lane.b32.xlu0 %v219, 127
    %v232 = vpop.permute.xlu0 %231
    %233 = vrot.lane.b32.xlu0 %v221, 127
    %v234 = vpop.permute.xlu0 %233
    %235 = vrot.lane.b32.xlu0 %v220, 127
    %v236 = vpop.permute.xlu0 %235
    %237 = vrot.lane.b32.xlu0 %v224, 127
    %v238 = vpop.permute.xlu0 %237
    %239 = vrot.lane.b32.xlu0 %v226, 127
    %v240 = vpop.permute.xlu0 %239
    %241 = vrot.lane.b32.xlu0 %v228, 127
    %v242 = vpop.permute.xlu0 %241
    %243 = vrot.lane.b32.xlu0 %v227, 127
    %v244 = vpop.permute.xlu0 %243
    %v253 = vadd.f32 %v189, %v230
    %v254 = vadd.f32 %v190, %v232
    %v255 = vadd.f32 %v191, %v234
    %v256 = vadd.f32 %v192, %v236
    %v257 = vadd.f32 %v193, %v238
    %v258 = vadd.f32 %v194, %v240
    %v259 = vadd.f32 %v195, %v242
    %v260 = vadd.f32 %v196, %v244
    %s261 = sld [smem:[#allocation3 + $0x7]]
    %v262 = vstv %s261
    %v263 = vmul.f32 %v262, %v31
    %v264 = vmul.f32 %v262, %v32
    %v265 = vmul.f32 %v262, %v33
    %v266 = vmul.f32 %v262, %v34
    %v267 = vmul.f32 %v262, %v35
    %v268 = vmul.f32 %v262, %v36
    %v269 = vmul.f32 %v262, %v37
    %v270 = vmul.f32 %v262, %v38
    %v279 = vrot.slane %v263, 2
    %v280 = vrot.slane %v264, 2
    %v281 = vsel %vm116, %v279, %v280
    %v282 = vrot.slane %v265, 2
    %v283 = vsel %vm116, %v280, %v282
    %v284 = vrot.slane %v266, 2
    %v285 = vsel %vm116, %v282, %v284
    %v286 = vrot.slane %v267, 2
    %v287 = vrot.slane %v268, 2
    %v288 = vsel %vm116, %v286, %v287
    %v289 = vrot.slane %v269, 2
    %v290 = vsel %vm116, %v287, %v289
    %v291 = vrot.slane %v270, 2
    %v292 = vsel %vm116, %v289, %v291
    %293 = vrot.lane.b32.xlu0 %v281, 127
    %v294 = vpop.permute.xlu0 %293
    %295 = vrot.lane.b32.xlu0 %v283, 127
    %v296 = vpop.permute.xlu0 %295
    %297 = vrot.lane.b32.xlu0 %v285, 127
    %v298 = vpop.permute.xlu0 %297
    %299 = vrot.lane.b32.xlu0 %v284, 127
    %v300 = vpop.permute.xlu0 %299
    %301 = vrot.lane.b32.xlu0 %v288, 127
    %v302 = vpop.permute.xlu0 %301
    %303 = vrot.lane.b32.xlu0 %v290, 127
    %v304 = vpop.permute.xlu0 %303
    %305 = vrot.lane.b32.xlu0 %v292, 127
    %v306 = vpop.permute.xlu0 %305
    %307 = vrot.lane.b32.xlu0 %v291, 127
    %v308 = vpop.permute.xlu0 %307
    %v317 = vadd.f32 %v253, %v294
    %v318 = vadd.f32 %v254, %v296
    %v319 = vadd.f32 %v255, %v298
    %v320 = vadd.f32 %v256, %v300
    %v321 = vadd.f32 %v257, %v302
    %v322 = vadd.f32 %v258, %v304
    %v323 = vadd.f32 %v259, %v306
    %v324 = vadd.f32 %v260, %v308
    %s325 = sld [smem:[#allocation3 + $0x2]]
    %v326 = vstv %s325
    %v327 = vmul.f32 %v326, %v31
    %v328 = vmul.f32 %v326, %v32
    %v329 = vmul.f32 %v326, %v33
    %v330 = vmul.f32 %v326, %v34
    %v331 = vmul.f32 %v326, %v35
    %v332 = vmul.f32 %v326, %v36
    %v333 = vmul.f32 %v326, %v37
    %v334 = vmul.f32 %v326, %v38
    %343 = vrot.lane.b32.xlu0 %v327, 126
    %v344 = vpop.permute.xlu0 %343
    %345 = vrot.lane.b32.xlu0 %v328, 126
    %v346 = vpop.permute.xlu0 %345
    %347 = vrot.lane.b32.xlu0 %v329, 126
    %v348 = vpop.permute.xlu0 %347
    %349 = vrot.lane.b32.xlu0 %v330, 126
    %v350 = vpop.permute.xlu0 %349
    %351 = vrot.lane.b32.xlu0 %v331, 126
    %v352 = vpop.permute.xlu0 %351
    %353 = vrot.lane.b32.xlu0 %v332, 126
    %v354 = vpop.permute.xlu0 %353
    %355 = vrot.lane.b32.xlu0 %v333, 126
    %v356 = vpop.permute.xlu0 %355
    %357 = vrot.lane.b32.xlu0 %v334, 126
    %v358 = vpop.permute.xlu0 %357
    %v367 = vadd.f32 %v317, %v344
    %v368 = vadd.f32 %v318, %v346
    %v369 = vadd.f32 %v319, %v348
    %v370 = vadd.f32 %v320, %v350
    %v371 = vadd.f32 %v321, %v352
    %v372 = vadd.f32 %v322, %v354
    %v373 = vadd.f32 %v323, %v356
    %v374 = vadd.f32 %v324, %v358
    %s375 = sld [smem:[#allocation3 + $0x5]]
    %v376 = vstv %s375
    %v377 = vmul.f32 %v376, %v31
    %v378 = vmul.f32 %v376, %v32
    %v379 = vmul.f32 %v376, %v33
    %v380 = vmul.f32 %v376, %v34
    %v381 = vmul.f32 %v376, %v35
    %v382 = vmul.f32 %v376, %v36
    %v383 = vmul.f32 %v376, %v37
    %v384 = vmul.f32 %v376, %v38
    %v393 = vrot.slane %v377, 1
    %v394 = vrot.slane %v378, 1
    %v395 = vsel %vm67, %v393, %v394
    %v396 = vrot.slane %v379, 1
    %v397 = vsel %vm67, %v394, %v396
    %v398 = vrot.slane %v380, 1
    %v399 = vsel %vm67, %v396, %v398
    %v400 = vrot.slane %v381, 1
    %v401 = vrot.slane %v382, 1
    %v402 = vsel %vm67, %v400, %v401
    %v403 = vrot.slane %v383, 1
    %v404 = vsel %vm67, %v401, %v403
    %v405 = vrot.slane %v384, 1
    %v406 = vsel %vm67, %v403, %v405
    %407 = vrot.lane.b32.xlu0 %v395, 126
    %v408 = vpop.permute.xlu0 %407
    %409 = vrot.lane.b32.xlu0 %v397, 126
    %v410 = vpop.permute.xlu0 %409
    %411 = vrot.lane.b32.xlu0 %v399, 126
    %v412 = vpop.permute.xlu0 %411
    %413 = vrot.lane.b32.xlu0 %v398, 126
    %v414 = vpop.permute.xlu0 %413
    %415 = vrot.lane.b32.xlu0 %v402, 126
    %v416 = vpop.permute.xlu0 %415
    %417 = vrot.lane.b32.xlu0 %v404, 126
    %v418 = vpop.permute.xlu0 %417
    %419 = vrot.lane.b32.xlu0 %v406, 126
    %v420 = vpop.permute.xlu0 %419
    %421 = vrot.lane.b32.xlu0 %v405, 126
    %v422 = vpop.permute.xlu0 %421
    %v431 = vadd.f32 %v367, %v408
    %v432 = vadd.f32 %v368, %v410
    %v433 = vadd.f32 %v369, %v412
    %v434 = vadd.f32 %v370, %v414
    %v435 = vadd.f32 %v371, %v416
    %v436 = vadd.f32 %v372, %v418
    %v437 = vadd.f32 %v373, %v420
    %v438 = vadd.f32 %v374, %v422
    %s439 = sld [smem:[#allocation3 + $0x8]]
    %v440 = vstv %s439
    %v441 = vmul.f32 %v440, %v31
    %v442 = vmul.f32 %v440, %v32
    %v443 = vmul.f32 %v440, %v33
    %v444 = vmul.f32 %v440, %v34
    %v445 = vmul.f32 %v440, %v35
    %v446 = vmul.f32 %v440, %v36
    %v447 = vmul.f32 %v440, %v37
    %v448 = vmul.f32 %v440, %v38
    %v457 = vrot.slane %v441, 2
    %v458 = vrot.slane %v442, 2
    %v459 = vsel %vm116, %v457, %v458
    %v460 = vrot.slane %v443, 2
    %v461 = vsel %vm116, %v458, %v460
    %v462 = vrot.slane %v444, 2
    %v463 = vsel %vm116, %v460, %v462
    %v464 = vrot.slane %v445, 2
    %v465 = vrot.slane %v446, 2
    %v466 = vsel %vm116, %v464, %v465
    %v467 = vrot.slane %v447, 2
    %v468 = vsel %vm116, %v465, %v467
    %v469 = vrot.slane %v448, 2
    %v470 = vsel %vm116, %v467, %v469
    %471 = vrot.lane.b32.xlu0 %v459, 126
    %v472 = vpop.permute.xlu0 %471
    %473 = vrot.lane.b32.xlu0 %v461, 126
    %v474 = vpop.permute.xlu0 %473
    %475 = vrot.lane.b32.xlu0 %v463, 126
    %v476 = vpop.permute.xlu0 %475
    %477 = vrot.lane.b32.xlu0 %v462, 126
    %v478 = vpop.permute.xlu0 %477
    %479 = vrot.lane.b32.xlu0 %v466, 126
    %v480 = vpop.permute.xlu0 %479
    %481 = vrot.lane.b32.xlu0 %v468, 126
    %v482 = vpop.permute.xlu0 %481
    %483 = vrot.lane.b32.xlu0 %v470, 126
    %v484 = vpop.permute.xlu0 %483
    %485 = vrot.lane.b32.xlu0 %v469, 126
    %v486 = vpop.permute.xlu0 %485
    %v495 = vadd.f32 %v431, %v472
    %v496 = vadd.f32 %v432, %v474
    %v497 = vadd.f32 %v433, %v476
    %v498 = vadd.f32 %v434, %v478
    %v499 = vadd.f32 %v435, %v480
    %v500 = vadd.f32 %v436, %v482
    %v501 = vadd.f32 %v437, %v484
    %v502 = vadd.f32 %v438, %v486
    %s503 = sld [smem:[#allocation3 + $0x9]]
    %v504 = vstv %s503
    %v505 = vadd.f32 %v495, %v504
    %v506 = vadd.f32 %v496, %v504
    %v507 = vadd.f32 %v497, %v504
    %v508 = vadd.f32 %v498, %v504
    %v509 = vadd.f32 %v499, %v504
    %v510 = vadd.f32 %v500, %v504
    %v511 = vadd.f32 %v501, %v504
    %v512 = vadd.f32 %v502, %v504
    %vm513 = vcmask 211968
    %v514 = vsel %vm513, %v505, 0.0
    %v515 = vsel %vm513, %v506, 0.0
    %v516 = vadd.f32 %v514, %v515
    %v517 = vsel %vm513, %v507, 0.0
    %v518 = vadd.f32 %v516, %v517
    %vm519 = vcmask 205824
    %v520 = vsel %vm519, %v508, 0.0
    %v521 = vadd.f32 %v518, %v520
    %v522 = vsel %vm513, %v509, 0.0
    %v523 = vadd.f32 %v521, %v522
    %v524 = vsel %vm513, %v510, 0.0
    %v525 = vadd.f32 %v523, %v524
    %v526 = vsel %vm513, %v511, 0.0
    %v527 = vadd.f32 %v525, %v526
    %v528 = vsel %vm519, %v512, 0.0
    %v529 = vadd.f32 %v527, %v528
    %530 = vadd.xlane.f32.xlu0 %v529
    %v531 = vpop.xlane.xlu0 %530
    %v532 = vrot.slane %v531, 4
    %v533 = vadd.f32 %v531, %v532
    %v534 = vrot.slane %v533, 2
    %v535 = vadd.f32 %v533, %v534
    %v536 = vrot.slane %v535, 1
    %v537 = vadd.f32 %v535, %v536
    %s538 = vtos %v537
    %v539 = vmul.f32 %v505, %v505
    %v540 = vmul.f32 %v506, %v506
    %v541 = vmul.f32 %v507, %v507
    %v542 = vmul.f32 %v508, %v508
    %v543 = vmul.f32 %v509, %v509
    %v544 = vmul.f32 %v510, %v510
    %v545 = vmul.f32 %v511, %v511
    %v546 = vmul.f32 %v512, %v512
    %v547 = vsel %vm513, %v539, 0.0
    %v548 = vsel %vm513, %v540, 0.0
    %v549 = vadd.f32 %v547, %v548
    %v550 = vsel %vm513, %v541, 0.0
    %v551 = vadd.f32 %v549, %v550
    %v552 = vsel %vm519, %v542, 0.0
    %v553 = vadd.f32 %v551, %v552
    %v554 = vsel %vm513, %v543, 0.0
    %v555 = vadd.f32 %v553, %v554
    %v556 = vsel %vm513, %v544, 0.0
    %v557 = vadd.f32 %v555, %v556
    %v558 = vsel %vm513, %v545, 0.0
    %v559 = vadd.f32 %v557, %v558
    %v560 = vsel %vm519, %v546, 0.0
    %v561 = vadd.f32 %v559, %v560
    %562 = vadd.xlane.f32.xlu0 %v561
    %v563 = vpop.xlane.xlu0 %562
    %v564 = vrot.slane %v563, 4
    %v565 = vadd.f32 %v563, %v564
    %v566 = vrot.slane %v565, 2
    %v567 = vadd.f32 %v565, %v566
    %v568 = vrot.slane %v567, 1
    %v569 = vadd.f32 %v567, %v568
    %s570 = vtos %v569
    %s571 = smul.f32 %s538, 0.000739645
    %s572 = smul.f32 %s570, 0.000739645
    %s573 = smul.f32 %s571, %s571
    %s574 = ssub.f32 %s572, %s573
    %s575 = sld [smem:[#allocation3 + $0xb]]
    %s576 = sadd.f32 %s574, 1e-05
    %v577 = vstv %s576
    %v578 = vrsqrt.pop %v577
    %s579 = vtos %v578
    %s580 = smul.f32 %s575, %s579
    %s581 = sld [smem:[#allocation3 + $0xc]]
    %s582 = smul.f32 %s571, %s580
    %s583 = ssub.f32 %s581, %s582
    %v584 = vstv %s580
    %v585 = vmul.f32 %v505, %v584
    %v586 = vmul.f32 %v506, %v584
    %v587 = vmul.f32 %v507, %v584
    %v588 = vmul.f32 %v508, %v584
    %v589 = vmul.f32 %v509, %v584
    %v590 = vmul.f32 %v510, %v584
    %v591 = vmul.f32 %v511, %v584
    %v592 = vmul.f32 %v512, %v584
    %v593 = vstv %s583
    %v594 = vadd.f32 %v585, %v593
    %v595 = vadd.f32 %v586, %v593
    %v596 = vadd.f32 %v587, %v593
    %v597 = vadd.f32 %v588, %v593
    %v598 = vadd.f32 %v589, %v593
    %v599 = vadd.f32 %v590, %v593
    %v600 = vadd.f32 %v591, %v593
    %v601 = vadd.f32 %v592, %v593
    %v602 = vmax.f32 %v594, 0.0
    %v603 = vmax.f32 %v595, 0.0
    %v604 = vmax.f32 %v596, 0.0
    %v605 = vmax.f32 %v597, 0.0
    %v606 = vmax.f32 %v598, 0.0
    %v607 = vmax.f32 %v599, 0.0
    %v608 = vmax.f32 %v600, 0.0
    %v609 = vmax.f32 %v601, 0.0
    %v610 = vsel %vm513, %v602, 0.0
    %v611 = vsel %vm513, %v603, 0.0
    %v612 = vadd.f32 %v610, %v611
    %v613 = vsel %vm513, %v604, 0.0
    %v614 = vadd.f32 %v612, %v613
    %v615 = vsel %vm519, %v605, 0.0
    %v616 = vadd.f32 %v614, %v615
    %v617 = vsel %vm513, %v606, 0.0
    %v618 = vadd.f32 %v616, %v617
    %v619 = vsel %vm513, %v607, 0.0
    %v620 = vadd.f32 %v618, %v619
    %v621 = vsel %vm513, %v608, 0.0
    %v622 = vadd.f32 %v620, %v621
    %v623 = vsel %vm519, %v609, 0.0
    %v624 = vadd.f32 %v622, %v623
    %625 = vadd.xlane.f32.xlu0 %v624
    %v626 = vpop.xlane.xlu0 %625
    %v627 = vrot.slane %v626, 4
    %v628 = vadd.f32 %v626, %v627
    %v629 = vrot.slane %v628, 2
    %v630 = vadd.f32 %v628, %v629
    %v631 = vrot.slane %v630, 1
    %v632 = vadd.f32 %v630, %v631
    %s633 = vtos %v632
    %v634 = vmul.f32 %v602, %v602
    %v635 = vmul.f32 %v603, %v603
    %v636 = vmul.f32 %v604, %v604
    %v637 = vmul.f32 %v605, %v605
    %v638 = vmul.f32 %v606, %v606
    %v639 = vmul.f32 %v607, %v607
    %v640 = vmul.f32 %v608, %v608
    %v641 = vmul.f32 %v609, %v609
    %v642 = vsel %vm513, %v634, 0.0
    %v643 = vsel %vm513, %v635, 0.0
    %v644 = vadd.f32 %v642, %v643
    %v645 = vsel %vm513, %v636, 0.0
    %v646 = vadd.f32 %v644, %v645
    %v647 = vsel %vm519, %v637, 0.0
    %v648 = vadd.f32 %v646, %v647
    %v649 = vsel %vm513, %v638, 0.0
    %v650 = vadd.f32 %v648, %v649
    %v651 = vsel %vm513, %v639, 0.0
    %v652 = vadd.f32 %v650, %v651
    %v653 = vsel %vm513, %v640, 0.0
    %v654 = vadd.f32 %v652, %v653
    %v655 = vsel %vm519, %v641, 0.0
    %v656 = vadd.f32 %v654, %v655
    %657 = vadd.xlane.f32.xlu0 %v656
    %v658 = vpop.xlane.xlu0 %657
    %v659 = vrot.slane %v658, 4
    %v660 = vadd.f32 %v658, %v659
    %v661 = vrot.slane %v660, 2
    %v662 = vadd.f32 %v660, %v661
    %v663 = vrot.slane %v662, 1
    %v664 = vadd.f32 %v662, %v663
    %s665 = vtos %v664
    %s666 = smul.f32 %s633, 0.000739645
    %s667 = smul.f32 %s665, 0.000739645
    %s668 = smul.f32 %s666, %s666
    %s669 = ssub.f32 %s667, %s668
    %s670 = sld [smem:[#allocation3 + $0xa]]
    %s671 = sld [smem:[#allocation3 + $0xd]]
    %s672 = smul.f32 %s670, %s671
    %s673 = smul.f32 %s670, %s670
    %s674 = smul.f32 %s673, %s669
    %s675 = sadd.f32 %s674, 1e-05
    %v676 = vstv %s675
    %v677 = vrsqrt.pop %v676
    %s678 = vtos %v677
    %s679 = smul.f32 %s672, %s678
    %s680 = sld [smem:[#allocation3 + $0xe]]
    %s681 = smul.f32 %s666, %s679
    %s682 = ssub.f32 %s680, %s681
    %v683 = vstv %s679
    %v684 = vmul.f32 %v602, %v683
    %v685 = vmul.f32 %v603, %v683
    %v686 = vmul.f32 %v604, %v683
    %v687 = vmul.f32 %v605, %v683
    %v688 = vmul.f32 %v606, %v683
    %v689 = vmul.f32 %v607, %v683
    %v690 = vmul.f32 %v608, %v683
    %v691 = vmul.f32 %v609, %v683
    %v692 = vstv %s682
    %v693 = vadd.f32 %v684, %v692
    %v694 = vadd.f32 %v685, %v692
    %v695 = vadd.f32 %v686, %v692
    %v696 = vadd.f32 %v687, %v692
    %v697 = vadd.f32 %v688, %v692
    %v698 = vadd.f32 %v689, %v692
    %v699 = vadd.f32 %v690, %v692
    %v700 = vadd.f32 %v691, %v692
    %701 = vst.msk [vmem:[#allocation2] sm:$0xff] %vm513, %v693
    %702 = vst.msk [vmem:[#allocation2 + $0x8] sm:$0xff] %vm513, %v694
    %703 = vst.msk [vmem:[#allocation2 + $0x10] sm:$0xff] %vm513, %v695
    %704 = vst.msk [vmem:[#allocation2 + $0x18] sm:$0x3] %vm519, %v696
    %705 = vst.msk [vmem:[#allocation2 + $0x20] sm:$0xff] %vm513, %v697
    %706 = vst.msk [vmem:[#allocation2 + $0x28] sm:$0xff] %vm513, %v698
    %707 = vst.msk [vmem:[#allocation2 + $0x30] sm:$0xff] %vm513, %v699
    %708 = vst.msk [vmem:[#allocation2 + $0x38] sm:$0x3] %vm519, %v700
    %v709 = vld [vmem:[#allocation2] sm:$0x1]
    %v710 = vld [vmem:[#allocation2 + $0x20] sm:$0x1]
    %v711 = vld [vmem:[%s2] sm:$0xff]
    %v712 = vld [vmem:[%s2 + $0x8] sm:$0xff]
    %v713 = vld [vmem:[%s2 + $0x10] sm:$0xff]
    %v714 = vld [vmem:[%s2 + $0x18] sm:$0x3]
    %v715 = vld [vmem:[#allocation2 + $0x1] sm:$0x1]
    %v716 = vld [vmem:[#allocation2 + $0x21] sm:$0x1]
    %s717 = scalar_lea.vmem %s2, 32
    %v718 = vld [vmem:[%s717] sm:$0xff]
    %v719 = vld [vmem:[%s717 + $0x8] sm:$0xff]
    %v720 = vld [vmem:[%s717 + $0x10] sm:$0xff]
    %v721 = vld [vmem:[%s717 + $0x18] sm:$0x3]
    %v724 = vrot.slane %v716, 7
    %vm725 = vcmask 1041409
    %v726 = vsel %vm725, %v724, %v715
    %v727 = vsel %vm513, %v726, 0
    %vm729 = vcmask 1041408
    %v731 = vsel %vm729, %v721, 0
    %733 = vmatprep.subr.mxu0 0.0
    %734 = vmatpush1.msra.mxu0 0.0
    %735 = vmatprep.subr.mxu0 0.0
    %736 = vmatpush1.msra.mxu0 0.0
    %737 = vmatprep.subr.mxu0 0.0
    %738 = vmatpush1.msra.mxu0 0.0
    %739 = vmatprep.subr.mxu0 0.0
    %740 = vmatpush1.msra.mxu0 0.0
    %741 = vmatprep.subr.mxu0 0.0
    %742 = vmatpush1.msra.mxu0 0.0
    %743 = vmatprep.subr.mxu0 0.0
    %744 = vmatpush1.msra.mxu0 0.0
    %745 = vmatprep.subr.mxu0 0.0
    %746 = vmatpush1.msra.mxu0 0.0
    %747 = vmatprep.subr.mxu0 0.0
    %748 = vmatpush1.msra.mxu0 0.0
    %749 = vmatprep.subr.mxu0 0.0
    %750 = vmatpush1.msra.mxu0 0.0
    %751 = vmatprep.subr.mxu0 0.0
    %752 = vmatpush1.msra.mxu0 0.0
    %753 = vmatprep.subr.mxu0 0.0
    %754 = vmatpush1.msra.mxu0 0.0
    %755 = vmatprep.subr.mxu0 0.0
    %756 = vmatpush1.msra.mxu0 0.0
    %757 = vmatprep.subr.mxu0 0.0
    %758 = vmatpush1.msra.mxu0 %v731
    %759 = vmatprep.subr.mxu0 0.0
    %760 = vmatpush1.msra.mxu0 %v720
    %761 = vmatprep.subr.mxu0 0.0
    %762 = vmatpush1.msra.mxu0 %v719
    %763 = vmatprep.subr.mxu0 0.0
    %764 = vmatpush1.msra.mxu0 %v718
    %765 = vmatprep.subr.mxu0 0.0
    %766 = vmatpush2.msra.mxu0 0.0
    %767 = vmatprep.subr.mxu0 0.0
    %768 = vmatpush2.msra.mxu0 0.0
    %769 = vmatprep.subr.mxu0 0.0
    %770 = vmatpush2.msra.mxu0 0.0
    %771 = vmatprep.subr.mxu0 0.0
    %772 = vmatpush2.msra.mxu0 0.0
    %773 = vmatprep.subr.mxu0 0.0
    %774 = vmatpush2.msra.mxu0 0.0
    %775 = vmatprep.subr.mxu0 0.0
    %776 = vmatpush2.msra.mxu0 0.0
    %777 = vmatprep.subr.mxu0 0.0
    %778 = vmatpush2.msra.mxu0 0.0
    %779 = vmatprep.subr.mxu0 0.0
    %780 = vmatpush2.msra.mxu0 0.0
    %781 = vmatprep.subr.mxu0 0.0
    %782 = vmatpush2.msra.mxu0 0.0
    %783 = vmatprep.subr.mxu0 0.0
    %784 = vmatpush2.msra.mxu0 0.0
    %785 = vmatprep.subr.mxu0 0.0
    %786 = vmatpush2.msra.mxu0 0.0
    %787 = vmatprep.subr.mxu0 0.0
    %788 = vmatpush2.msra.mxu0 0.0
    %789 = vmatprep.subr.mxu0 0.0
    %790 = vmatpush2.msra.mxu0 0.0
    %791 = vmatprep.subr.mxu0 0.0
    %792 = vmatpush2.msra.mxu0 0.0
    %793 = vmatprep.subr.mxu0 0.0
    %794 = vmatpush2.msra.mxu0 0.0
    %795 = vmatprep.subr.mxu0 0.0
    %796 = vmatpush2.msra.mxu0 0.0
    %797 = vmatprep.mubr.f32.mxu0 0.0
    %798 = vmatmul.mubr.f32.gmra.mxu0 %v727
    %v799 = vpop.f32.mrf.mxu0
    %v800 = vadd.f32 0.0, %v799
    %v801 = vpop.f32.mrf.mxu0
    %802 = vdwg.mxu0
    %v805 = vrot.slane %v710, 7
    %v806 = vsel %vm725, %v805, %v709
    %v807 = vsel %vm513, %v806, 0
    %v810 = vsel %vm729, %v714, 0
    %812 = vmatprep.subr.mxu0 0.0
    %813 = vmatpush1.msra.mxu0 0.0
    %814 = vmatprep.subr.mxu0 0.0
    %815 = vmatpush1.msra.mxu0 0.0
    %816 = vmatprep.subr.mxu0 0.0
    %817 = vmatpush1.msra.mxu0 0.0
    %818 = vmatprep.subr.mxu0 0.0
    %819 = vmatpush1.msra.mxu0 0.0
    %820 = vmatprep.subr.mxu0 0.0
    %821 = vmatpush1.msra.mxu0 0.0
    %822 = vmatprep.subr.mxu0 0.0
    %823 = vmatpush1.msra.mxu0 0.0
    %824 = vmatprep.subr.mxu0 0.0
    %825 = vmatpush1.msra.mxu0 0.0
    %826 = vmatprep.subr.mxu0 0.0
    %827 = vmatpush1.msra.mxu0 0.0
    %828 = vmatprep.subr.mxu0 0.0
    %829 = vmatpush1.msra.mxu0 0.0
    %830 = vmatprep.subr.mxu0 0.0
    %831 = vmatpush1.msra.mxu0 0.0
    %832 = vmatprep.subr.mxu0 0.0
    %833 = vmatpush1.msra.mxu0 0.0
    %834 = vmatprep.subr.mxu0 0.0
    %835 = vmatpush1.msra.mxu0 0.0
    %836 = vmatprep.subr.mxu0 0.0
    %837 = vmatpush1.msra.mxu0 %v810
    %838 = vmatprep.subr.mxu0 0.0
    %839 = vmatpush1.msra.mxu0 %v713
    %840 = vmatprep.subr.mxu0 0.0
    %841 = vmatpush1.msra.mxu0 %v712
    %842 = vmatprep.subr.mxu0 0.0
    %843 = vmatpush1.msra.mxu0 %v711
    %844 = vmatprep.subr.mxu0 0.0
    %845 = vmatpush2.msra.mxu0 0.0
    %846 = vmatprep.subr.mxu0 0.0
    %847 = vmatpush2.msra.mxu0 0.0
    %848 = vmatprep.subr.mxu0 0.0
    %849 = vmatpush2.msra.mxu0 0.0
    %850 = vmatprep.subr.mxu0 0.0
    %851 = vmatpush2.msra.mxu0 0.0
    %852 = vmatprep.subr.mxu0 0.0
    %853 = vmatpush2.msra.mxu0 0.0
    %854 = vmatprep.subr.mxu0 0.0
    %855 = vmatpush2.msra.mxu0 0.0
    %856 = vmatprep.subr.mxu0 0.0
    %857 = vmatpush2.msra.mxu0 0.0
    %858 = vmatprep.subr.mxu0 0.0
    %859 = vmatpush2.msra.mxu0 0.0
    %860 = vmatprep.subr.mxu0 0.0
    %861 = vmatpush2.msra.mxu0 0.0
    %862 = vmatprep.subr.mxu0 0.0
    %863 = vmatpush2.msra.mxu0 0.0
    %864 = vmatprep.subr.mxu0 0.0
    %865 = vmatpush2.msra.mxu0 0.0
    %866 = vmatprep.subr.mxu0 0.0
    %867 = vmatpush2.msra.mxu0 0.0
    %868 = vmatprep.subr.mxu0 0.0
    %869 = vmatpush2.msra.mxu0 0.0
    %870 = vmatprep.subr.mxu0 0.0
    %871 = vmatpush2.msra.mxu0 0.0
    %872 = vmatprep.subr.mxu0 0.0
    %873 = vmatpush2.msra.mxu0 0.0
    %874 = vmatprep.subr.mxu0 0.0
    %875 = vmatpush2.msra.mxu0 0.0
    %876 = vmatprep.mubr.f32.mxu0 0.0
    %877 = vmatmul.mubr.f32.gmra.mxu0 %v807
    %v878 = vpop.f32.mrf.mxu0
    %v879 = vadd.f32 %v800, %v878
    %v880 = vpop.f32.mrf.mxu0
    %881 = vdwg.mxu0
    %v882 = vld [vmem:[#allocation2 + $0x2] sm:$0x1]
    %v883 = vld [vmem:[#allocation2 + $0x22] sm:$0x1]
    %s884 = scalar_lea.vmem %s2, 64
    %v885 = vld [vmem:[%s884] sm:$0xff]
    %v886 = vld [vmem:[%s884 + $0x8] sm:$0xff]
    %v887 = vld [vmem:[%s884 + $0x10] sm:$0xff]
    %v888 = vld [vmem:[%s884 + $0x18] sm:$0x3]
    %v891 = vrot.slane %v883, 7
    %v892 = vsel %vm725, %v891, %v882
    %v893 = vsel %vm513, %v892, 0
    %v896 = vsel %vm729, %v888, 0
    %898 = vmatprep.subr.mxu0 0.0
    %899 = vmatpush1.msra.mxu0 0.0
    %900 = vmatprep.subr.mxu0 0.0
    %901 = vmatpush1.msra.mxu0 0.0
    %902 = vmatprep.subr.mxu0 0.0
    %903 = vmatpush1.msra.mxu0 0.0
    %904 = vmatprep.subr.mxu0 0.0
    %905 = vmatpush1.msra.mxu0 0.0
    %906 = vmatprep.subr.mxu0 0.0
    %907 = vmatpush1.msra.mxu0 0.0
    %908 = vmatprep.subr.mxu0 0.0
    %909 = vmatpush1.msra.mxu0 0.0
    %910 = vmatprep.subr.mxu0 0.0
    %911 = vmatpush1.msra.mxu0 0.0
    %912 = vmatprep.subr.mxu0 0.0
    %913 = vmatpush1.msra.mxu0 0.0
    %914 = vmatprep.subr.mxu0 0.0
    %915 = vmatpush1.msra.mxu0 0.0
    %916 = vmatprep.subr.mxu0 0.0
    %917 = vmatpush1.msra.mxu0 0.0
    %918 = vmatprep.subr.mxu0 0.0
    %919 = vmatpush1.msra.mxu0 0.0
    %920 = vmatprep.subr.mxu0 0.0
    %921 = vmatpush1.msra.mxu0 0.0
    %922 = vmatprep.subr.mxu0 0.0
    %923 = vmatpush1.msra.mxu0 %v896
    %924 = vmatprep.subr.mxu0 0.0
    %925 = vmatpush1.msra.mxu0 %v887
    %926 = vmatprep.subr.mxu0 0.0
    %927 = vmatpush1.msra.mxu0 %v886
    %928 = vmatprep.subr.mxu0 0.0
    %929 = vmatpush1.msra.mxu0 %v885
    %930 = vmatprep.subr.mxu0 0.0
    %931 = vmatpush2.msra.mxu0 0.0
    %932 = vmatprep.subr.mxu0 0.0
    %933 = vmatpush2.msra.mxu0 0.0
    %934 = vmatprep.subr.mxu0 0.0
    %935 = vmatpush2.msra.mxu0 0.0
    %936 = vmatprep.subr.mxu0 0.0
    %937 = vmatpush2.msra.mxu0 0.0
    %938 = vmatprep.subr.mxu0 0.0
    %939 = vmatpush2.msra.mxu0 0.0
    %940 = vmatprep.subr.mxu0 0.0
    %941 = vmatpush2.msra.mxu0 0.0
    %942 = vmatprep.subr.mxu0 0.0
    %943 = vmatpush2.msra.mxu0 0.0
    %944 = vmatprep.subr.mxu0 0.0
    %945 = vmatpush2.msra.mxu0 0.0
    %946 = vmatprep.subr.mxu0 0.0
    %947 = vmatpush2.msra.mxu0 0.0
    %948 = vmatprep.subr.mxu0 0.0
    %949 = vmatpush2.msra.mxu0 0.0
    %950 = vmatprep.subr.mxu0 0.0
    %951 = vmatpush2.msra.mxu0 0.0
    %952 = vmatprep.subr.mxu0 0.0
    %953 = vmatpush2.msra.mxu0 0.0
    %954 = vmatprep.subr.mxu0 0.0
    %955 = vmatpush2.msra.mxu0 0.0
    %956 = vmatprep.subr.mxu0 0.0
    %957 = vmatpush2.msra.mxu0 0.0
    %958 = vmatprep.subr.mxu0 0.0
    %959 = vmatpush2.msra.mxu0 0.0
    %960 = vmatprep.subr.mxu0 0.0
    %961 = vmatpush2.msra.mxu0 0.0
    %962 = vmatprep.mubr.f32.mxu0 0.0
    %963 = vmatmul.mubr.f32.gmra.mxu0 %v893
    %v964 = vpop.f32.mrf.mxu0
    %v965 = vadd.f32 0.0, %v964
    %v966 = vpop.f32.mrf.mxu0
    %967 = vdwg.mxu0
    %v968 = vadd.f32 %v879, %v965
    %v969 = vld [vmem:[#allocation2 + $0x3] sm:$0x1]
    %v970 = vld [vmem:[#allocation2 + $0x23] sm:$0x1]
    %s971 = scalar_lea.vmem %s2, 96
    %v972 = vld [vmem:[%s971] sm:$0xff]
    %v973 = vld [vmem:[%s971 + $0x8] sm:$0xff]
    %v974 = vld [vmem:[%s971 + $0x10] sm:$0xff]
    %v975 = vld [vmem:[%s971 + $0x18] sm:$0x3]
    %v978 = vrot.slane %v970, 7
    %v979 = vsel %vm725, %v978, %v969
    %v980 = vsel %vm513, %v979, 0
    %v983 = vsel %vm729, %v975, 0
    %985 = vmatprep.subr.mxu0 0.0
    %986 = vmatpush1.msra.mxu0 0.0
    %987 = vmatprep.subr.mxu0 0.0
    %988 = vmatpush1.msra.mxu0 0.0
    %989 = vmatprep.subr.mxu0 0.0
    %990 = vmatpush1.msra.mxu0 0.0
    %991 = vmatprep.subr.mxu0 0.0
    %992 = vmatpush1.msra.mxu0 0.0
    %993 = vmatprep.subr.mxu0 0.0
    %994 = vmatpush1.msra.mxu0 0.0
    %995 = vmatprep.subr.mxu0 0.0
    %996 = vmatpush1.msra.mxu0 0.0
    %997 = vmatprep.subr.mxu0 0.0
    %998 = vmatpush1.msra.mxu0 0.0
    %999 = vmatprep.subr.mxu0 0.0
    %1000 = vmatpush1.msra.mxu0 0.0
    %1001 = vmatprep.subr.mxu0 0.0
    %1002 = vmatpush1.msra.mxu0 0.0
    %1003 = vmatprep.subr.mxu0 0.0
    %1004 = vmatpush1.msra.mxu0 0.0
    %1005 = vmatprep.subr.mxu0 0.0
    %1006 = vmatpush1.msra.mxu0 0.0
    %1007 = vmatprep.subr.mxu0 0.0
    %1008 = vmatpush1.msra.mxu0 0.0
    %1009 = vmatprep.subr.mxu0 0.0
    %1010 = vmatpush1.msra.mxu0 %v983
    %1011 = vmatprep.subr.mxu0 0.0
    %1012 = vmatpush1.msra.mxu0 %v974
    %1013 = vmatprep.subr.mxu0 0.0
    %1014 = vmatpush1.msra.mxu0 %v973
    %1015 = vmatprep.subr.mxu0 0.0
    %1016 = vmatpush1.msra.mxu0 %v972
    %1017 = vmatprep.subr.mxu0 0.0
    %1018 = vmatpush2.msra.mxu0 0.0
    %1019 = vmatprep.subr.mxu0 0.0
    %1020 = vmatpush2.msra.mxu0 0.0
    %1021 = vmatprep.subr.mxu0 0.0
    %1022 = vmatpush2.msra.mxu0 0.0
    %1023 = vmatprep.subr.mxu0 0.0
    %1024 = vmatpush2.msra.mxu0 0.0
    %1025 = vmatprep.subr.mxu0 0.0
    %1026 = vmatpush2.msra.mxu0 0.0
    %1027 = vmatprep.subr.mxu0 0.0
    %1028 = vmatpush2.msra.mxu0 0.0
    %1029 = vmatprep.subr.mxu0 0.0
    %1030 = vmatpush2.msra.mxu0 0.0
    %1031 = vmatprep.subr.mxu0 0.0
    %1032 = vmatpush2.msra.mxu0 0.0
    %1033 = vmatprep.subr.mxu0 0.0
    %1034 = vmatpush2.msra.mxu0 0.0
    %1035 = vmatprep.subr.mxu0 0.0
    %1036 = vmatpush2.msra.mxu0 0.0
    %1037 = vmatprep.subr.mxu0 0.0
    %1038 = vmatpush2.msra.mxu0 0.0
    %1039 = vmatprep.subr.mxu0 0.0
    %1040 = vmatpush2.msra.mxu0 0.0
    %1041 = vmatprep.subr.mxu0 0.0
    %1042 = vmatpush2.msra.mxu0 0.0
    %1043 = vmatprep.subr.mxu0 0.0
    %1044 = vmatpush2.msra.mxu0 0.0
    %1045 = vmatprep.subr.mxu0 0.0
    %1046 = vmatpush2.msra.mxu0 0.0
    %1047 = vmatprep.subr.mxu0 0.0
    %1048 = vmatpush2.msra.mxu0 0.0
    %1049 = vmatprep.mubr.f32.mxu0 0.0
    %1050 = vmatmul.mubr.f32.gmra.mxu0 %v980
    %v1051 = vpop.f32.mrf.mxu0
    %v1052 = vadd.f32 0.0, %v1051
    %v1053 = vpop.f32.mrf.mxu0
    %1054 = vdwg.mxu0
    %v1055 = vadd.f32 %v968, %v1052
    %v1056 = vld [vmem:[#allocation2 + $0x4] sm:$0x1]
    %v1057 = vld [vmem:[#allocation2 + $0x24] sm:$0x1]
    %s1058 = scalar_lea.vmem %s2, 128
    %v1059 = vld [vmem:[%s1058] sm:$0xff]
    %v1060 = vld [vmem:[%s1058 + $0x8] sm:$0xff]
    %v1061 = vld [vmem:[%s1058 + $0x10] sm:$0xff]
    %v1062 = vld [vmem:[%s1058 + $0x18] sm:$0x3]
    %v1065 = vrot.slane %v1057, 7
    %v1066 = vsel %vm725, %v1065, %v1056
    %v1067 = vsel %vm513, %v1066, 0
    %v1070 = vsel %vm729, %v1062, 0
    %1072 = vmatprep.subr.mxu0 0.0
    %1073 = vmatpush1.msra.mxu0 0.0
    %1074 = vmatprep.subr.mxu0 0.0
    %1075 = vmatpush1.msra.mxu0 0.0
    %1076 = vmatprep.subr.mxu0 0.0
    %1077 = vmatpush1.msra.mxu0 0.0
    %1078 = vmatprep.subr.mxu0 0.0
    %1079 = vmatpush1.msra.mxu0 0.0
    %1080 = vmatprep.subr.mxu0 0.0
    %1081 = vmatpush1.msra.mxu0 0.0
    %1082 = vmatprep.subr.mxu0 0.0
    %1083 = vmatpush1.msra.mxu0 0.0
    %1084 = vmatprep.subr.mxu0 0.0
    %1085 = vmatpush1.msra.mxu0 0.0
    %1086 = vmatprep.subr.mxu0 0.0
    %1087 = vmatpush1.msra.mxu0 0.0
    %1088 = vmatprep.subr.mxu0 0.0
    %1089 = vmatpush1.msra.mxu0 0.0
    %1090 = vmatprep.subr.mxu0 0.0
    %1091 = vmatpush1.msra.mxu0 0.0
    %1092 = vmatprep.subr.mxu0 0.0
    %1093 = vmatpush1.msra.mxu0 0.0
    %1094 = vmatprep.subr.mxu0 0.0
    %1095 = vmatpush1.msra.mxu0 0.0
    %1096 = vmatprep.subr.mxu0 0.0
    %1097 = vmatpush1.msra.mxu0 %v1070
    %1098 = vmatprep.subr.mxu0 0.0
    %1099 = vmatpush1.msra.mxu0 %v1061
    %1100 = vmatprep.subr.mxu0 0.0
    %1101 = vmatpush1.msra.mxu0 %v1060
    %1102 = vmatprep.subr.mxu0 0.0
    %1103 = vmatpush1.msra.mxu0 %v1059
    %1104 = vmatprep.subr.mxu0 0.0
    %1105 = vmatpush2.msra.mxu0 0.0
    %1106 = vmatprep.subr.mxu0 0.0
    %1107 = vmatpush2.msra.mxu0 0.0
    %1108 = vmatprep.subr.mxu0 0.0
    %1109 = vmatpush2.msra.mxu0 0.0
    %1110 = vmatprep.subr.mxu0 0.0
    %1111 = vmatpush2.msra.mxu0 0.0
    %1112 = vmatprep.subr.mxu0 0.0
    %1113 = vmatpush2.msra.mxu0 0.0
    %1114 = vmatprep.subr.mxu0 0.0
    %1115 = vmatpush2.msra.mxu0 0.0
    %1116 = vmatprep.subr.mxu0 0.0
    %1117 = vmatpush2.msra.mxu0 0.0
    %1118 = vmatprep.subr.mxu0 0.0
    %1119 = vmatpush2.msra.mxu0 0.0
    %1120 = vmatprep.subr.mxu0 0.0
    %1121 = vmatpush2.msra.mxu0 0.0
    %1122 = vmatprep.subr.mxu0 0.0
    %1123 = vmatpush2.msra.mxu0 0.0
    %1124 = vmatprep.subr.mxu0 0.0
    %1125 = vmatpush2.msra.mxu0 0.0
    %1126 = vmatprep.subr.mxu0 0.0
    %1127 = vmatpush2.msra.mxu0 0.0
    %1128 = vmatprep.subr.mxu0 0.0
    %1129 = vmatpush2.msra.mxu0 0.0
    %1130 = vmatprep.subr.mxu0 0.0
    %1131 = vmatpush2.msra.mxu0 0.0
    %1132 = vmatprep.subr.mxu0 0.0
    %1133 = vmatpush2.msra.mxu0 0.0
    %1134 = vmatprep.subr.mxu0 0.0
    %1135 = vmatpush2.msra.mxu0 0.0
    %1136 = vmatprep.mubr.f32.mxu0 0.0
    %1137 = vmatmul.mubr.f32.gmra.mxu0 %v1067
    %v1138 = vpop.f32.mrf.mxu0
    %v1139 = vadd.f32 0.0, %v1138
    %v1140 = vpop.f32.mrf.mxu0
    %1141 = vdwg.mxu0
    %v1142 = vadd.f32 %v1055, %v1139
    %v1143 = vld [vmem:[#allocation2 + $0x5] sm:$0x1]
    %v1144 = vld [vmem:[#allocation2 + $0x25] sm:$0x1]
    %s1145 = scalar_lea.vmem %s2, 160
    %v1146 = vld [vmem:[%s1145] sm:$0xff]
    %v1147 = vld [vmem:[%s1145 + $0x8] sm:$0xff]
    %v1148 = vld [vmem:[%s1145 + $0x10] sm:$0xff]
    %v1149 = vld [vmem:[%s1145 + $0x18] sm:$0x3]
    %v1152 = vrot.slane %v1144, 7
    %v1153 = vsel %vm725, %v1152, %v1143
    %v1154 = vsel %vm513, %v1153, 0
    %v1157 = vsel %vm729, %v1149, 0
    %1159 = vmatprep.subr.mxu0 0.0
    %1160 = vmatpush1.msra.mxu0 0.0
    %1161 = vmatprep.subr.mxu0 0.0
    %1162 = vmatpush1.msra.mxu0 0.0
    %1163 = vmatprep.subr.mxu0 0.0
    %1164 = vmatpush1.msra.mxu0 0.0
    %1165 = vmatprep.subr.mxu0 0.0
    %1166 = vmatpush1.msra.mxu0 0.0
    %1167 = vmatprep.subr.mxu0 0.0
    %1168 = vmatpush1.msra.mxu0 0.0
    %1169 = vmatprep.subr.mxu0 0.0
    %1170 = vmatpush1.msra.mxu0 0.0
    %1171 = vmatprep.subr.mxu0 0.0
    %1172 = vmatpush1.msra.mxu0 0.0
    %1173 = vmatprep.subr.mxu0 0.0
    %1174 = vmatpush1.msra.mxu0 0.0
    %1175 = vmatprep.subr.mxu0 0.0
    %1176 = vmatpush1.msra.mxu0 0.0
    %1177 = vmatprep.subr.mxu0 0.0
    %1178 = vmatpush1.msra.mxu0 0.0
    %1179 = vmatprep.subr.mxu0 0.0
    %1180 = vmatpush1.msra.mxu0 0.0
    %1181 = vmatprep.subr.mxu0 0.0
    %1182 = vmatpush1.msra.mxu0 0.0
    %1183 = vmatprep.subr.mxu0 0.0
    %1184 = vmatpush1.msra.mxu0 %v1157
    %1185 = vmatprep.subr.mxu0 0.0
    %1186 = vmatpush1.msra.mxu0 %v1148
    %1187 = vmatprep.subr.mxu0 0.0
    %1188 = vmatpush1.msra.mxu0 %v1147
    %1189 = vmatprep.subr.mxu0 0.0
    %1190 = vmatpush1.msra.mxu0 %v1146
    %1191 = vmatprep.subr.mxu0 0.0
    %1192 = vmatpush2.msra.mxu0 0.0
    %1193 = vmatprep.subr.mxu0 0.0
    %1194 = vmatpush2.msra.mxu0 0.0
    %1195 = vmatprep.subr.mxu0 0.0
    %1196 = vmatpush2.msra.mxu0 0.0
    %1197 = vmatprep.subr.mxu0 0.0
    %1198 = vmatpush2.msra.mxu0 0.0
    %1199 = vmatprep.subr.mxu0 0.0
    %1200 = vmatpush2.msra.mxu0 0.0
    %1201 = vmatprep.subr.mxu0 0.0
    %1202 = vmatpush2.msra.mxu0 0.0
    %1203 = vmatprep.subr.mxu0 0.0
    %1204 = vmatpush2.msra.mxu0 0.0
    %1205 = vmatprep.subr.mxu0 0.0
    %1206 = vmatpush2.msra.mxu0 0.0
    %1207 = vmatprep.subr.mxu0 0.0
    %1208 = vmatpush2.msra.mxu0 0.0
    %1209 = vmatprep.subr.mxu0 0.0
    %1210 = vmatpush2.msra.mxu0 0.0
    %1211 = vmatprep.subr.mxu0 0.0
    %1212 = vmatpush2.msra.mxu0 0.0
    %1213 = vmatprep.subr.mxu0 0.0
    %1214 = vmatpush2.msra.mxu0 0.0
    %1215 = vmatprep.subr.mxu0 0.0
    %1216 = vmatpush2.msra.mxu0 0.0
    %1217 = vmatprep.subr.mxu0 0.0
    %1218 = vmatpush2.msra.mxu0 0.0
    %1219 = vmatprep.subr.mxu0 0.0
    %1220 = vmatpush2.msra.mxu0 0.0
    %1221 = vmatprep.subr.mxu0 0.0
    %1222 = vmatpush2.msra.mxu0 0.0
    %1223 = vmatprep.mubr.f32.mxu0 0.0
    %1224 = vmatmul.mubr.f32.gmra.mxu0 %v1154
    %v1225 = vpop.f32.mrf.mxu0
    %v1226 = vadd.f32 0.0, %v1225
    %v1227 = vpop.f32.mrf.mxu0
    %1228 = vdwg.mxu0
    %v1229 = vadd.f32 %v1142, %v1226
    %v1230 = vld [vmem:[#allocation2 + $0x6] sm:$0x1]
    %v1231 = vld [vmem:[#allocation2 + $0x26] sm:$0x1]
    %s1232 = scalar_lea.vmem %s2, 192
    %v1233 = vld [vmem:[%s1232] sm:$0xff]
    %v1234 = vld [vmem:[%s1232 + $0x8] sm:$0xff]
    %v1235 = vld [vmem:[%s1232 + $0x10] sm:$0xff]
    %v1236 = vld [vmem:[%s1232 + $0x18] sm:$0x3]
    %v1239 = vrot.slane %v1231, 7
    %v1240 = vsel %vm725, %v1239, %v1230
    %v1241 = vsel %vm513, %v1240, 0
    %v1244 = vsel %vm729, %v1236, 0
    %1246 = vmatprep.subr.mxu0 0.0
    %1247 = vmatpush1.msra.mxu0 0.0
    %1248 = vmatprep.subr.mxu0 0.0
    %1249 = vmatpush1.msra.mxu0 0.0
    %1250 = vmatprep.subr.mxu0 0.0
    %1251 = vmatpush1.msra.mxu0 0.0
    %1252 = vmatprep.subr.mxu0 0.0
    %1253 = vmatpush1.msra.mxu0 0.0
    %1254 = vmatprep.subr.mxu0 0.0
    %1255 = vmatpush1.msra.mxu0 0.0
    %1256 = vmatprep.subr.mxu0 0.0
    %1257 = vmatpush1.msra.mxu0 0.0
    %1258 = vmatprep.subr.mxu0 0.0
    %1259 = vmatpush1.msra.mxu0 0.0
    %1260 = vmatprep.subr.mxu0 0.0
    %1261 = vmatpush1.msra.mxu0 0.0
    %1262 = vmatprep.subr.mxu0 0.0
    %1263 = vmatpush1.msra.mxu0 0.0
    %1264 = vmatprep.subr.mxu0 0.0
    %1265 = vmatpush1.msra.mxu0 0.0
    %1266 = vmatprep.subr.mxu0 0.0
    %1267 = vmatpush1.msra.mxu0 0.0
    %1268 = vmatprep.subr.mxu0 0.0
    %1269 = vmatpush1.msra.mxu0 0.0
    %1270 = vmatprep.subr.mxu0 0.0
    %1271 = vmatpush1.msra.mxu0 %v1244
    %1272 = vmatprep.subr.mxu0 0.0
    %1273 = vmatpush1.msra.mxu0 %v1235
    %1274 = vmatprep.subr.mxu0 0.0
    %1275 = vmatpush1.msra.mxu0 %v1234
    %1276 = vmatprep.subr.mxu0 0.0
    %1277 = vmatpush1.msra.mxu0 %v1233
    %1278 = vmatprep.subr.mxu0 0.0
    %1279 = vmatpush2.msra.mxu0 0.0
    %1280 = vmatprep.subr.mxu0 0.0
    %1281 = vmatpush2.msra.mxu0 0.0
    %1282 = vmatprep.subr.mxu0 0.0
    %1283 = vmatpush2.msra.mxu0 0.0
    %1284 = vmatprep.subr.mxu0 0.0
    %1285 = vmatpush2.msra.mxu0 0.0
    %1286 = vmatprep.subr.mxu0 0.0
    %1287 = vmatpush2.msra.mxu0 0.0
    %1288 = vmatprep.subr.mxu0 0.0
    %1289 = vmatpush2.msra.mxu0 0.0
    %1290 = vmatprep.subr.mxu0 0.0
    %1291 = vmatpush2.msra.mxu0 0.0
    %1292 = vmatprep.subr.mxu0 0.0
    %1293 = vmatpush2.msra.mxu0 0.0
    %1294 = vmatprep.subr.mxu0 0.0
    %1295 = vmatpush2.msra.mxu0 0.0
    %1296 = vmatprep.subr.mxu0 0.0
    %1297 = vmatpush2.msra.mxu0 0.0
    %1298 = vmatprep.subr.mxu0 0.0
    %1299 = vmatpush2.msra.mxu0 0.0
    %1300 = vmatprep.subr.mxu0 0.0
    %1301 = vmatpush2.msra.mxu0 0.0
    %1302 = vmatprep.subr.mxu0 0.0
    %1303 = vmatpush2.msra.mxu0 0.0
    %1304 = vmatprep.subr.mxu0 0.0
    %1305 = vmatpush2.msra.mxu0 0.0
    %1306 = vmatprep.subr.mxu0 0.0
    %1307 = vmatpush2.msra.mxu0 0.0
    %1308 = vmatprep.subr.mxu0 0.0
    %1309 = vmatpush2.msra.mxu0 0.0
    %1310 = vmatprep.mubr.f32.mxu0 0.0
    %1311 = vmatmul.mubr.f32.gmra.mxu0 %v1241
    %v1312 = vpop.f32.mrf.mxu0
    %v1313 = vadd.f32 0.0, %v1312
    %v1314 = vpop.f32.mrf.mxu0
    %1315 = vdwg.mxu0
    %v1316 = vadd.f32 %v1229, %v1313
    %v1317 = vld [vmem:[#allocation2 + $0x7] sm:$0x1]
    %v1318 = vld [vmem:[#allocation2 + $0x27] sm:$0x1]
    %s1319 = scalar_lea.vmem %s2, 224
    %v1320 = vld [vmem:[%s1319] sm:$0xff]
    %v1321 = vld [vmem:[%s1319 + $0x8] sm:$0xff]
    %v1322 = vld [vmem:[%s1319 + $0x10] sm:$0xff]
    %v1323 = vld [vmem:[%s1319 + $0x18] sm:$0x3]
    %v1326 = vrot.slane %v1318, 7
    %v1327 = vsel %vm725, %v1326, %v1317
    %v1328 = vsel %vm513, %v1327, 0
    %v1331 = vsel %vm729, %v1323, 0
    %1333 = vmatprep.subr.mxu0 0.0
    %1334 = vmatpush1.msra.mxu0 0.0
    %1335 = vmatprep.subr.mxu0 0.0
    %1336 = vmatpush1.msra.mxu0 0.0
    %1337 = vmatprep.subr.mxu0 0.0
    %1338 = vmatpush1.msra.mxu0 0.0
    %1339 = vmatprep.subr.mxu0 0.0
    %1340 = vmatpush1.msra.mxu0 0.0
    %1341 = vmatprep.subr.mxu0 0.0
    %1342 = vmatpush1.msra.mxu0 0.0
    %1343 = vmatprep.subr.mxu0 0.0
    %1344 = vmatpush1.msra.mxu0 0.0
    %1345 = vmatprep.subr.mxu0 0.0
    %1346 = vmatpush1.msra.mxu0 0.0
    %1347 = vmatprep.subr.mxu0 0.0
    %1348 = vmatpush1.msra.mxu0 0.0
    %1349 = vmatprep.subr.mxu0 0.0
    %1350 = vmatpush1.msra.mxu0 0.0
    %1351 = vmatprep.subr.mxu0 0.0
    %1352 = vmatpush1.msra.mxu0 0.0
    %1353 = vmatprep.subr.mxu0 0.0
    %1354 = vmatpush1.msra.mxu0 0.0
    %1355 = vmatprep.subr.mxu0 0.0
    %1356 = vmatpush1.msra.mxu0 0.0
    %1357 = vmatprep.subr.mxu0 0.0
    %1358 = vmatpush1.msra.mxu0 %v1331
    %1359 = vmatprep.subr.mxu0 0.0
    %1360 = vmatpush1.msra.mxu0 %v1322
    %1361 = vmatprep.subr.mxu0 0.0
    %1362 = vmatpush1.msra.mxu0 %v1321
    %1363 = vmatprep.subr.mxu0 0.0
    %1364 = vmatpush1.msra.mxu0 %v1320
    %1365 = vmatprep.subr.mxu0 0.0
    %1366 = vmatpush2.msra.mxu0 0.0
    %1367 = vmatprep.subr.mxu0 0.0
    %1368 = vmatpush2.msra.mxu0 0.0
    %1369 = vmatprep.subr.mxu0 0.0
    %1370 = vmatpush2.msra.mxu0 0.0
    %1371 = vmatprep.subr.mxu0 0.0
    %1372 = vmatpush2.msra.mxu0 0.0
    %1373 = vmatprep.subr.mxu0 0.0
    %1374 = vmatpush2.msra.mxu0 0.0
    %1375 = vmatprep.subr.mxu0 0.0
    %1376 = vmatpush2.msra.mxu0 0.0
    %1377 = vmatprep.subr.mxu0 0.0
    %1378 = vmatpush2.msra.mxu0 0.0
    %1379 = vmatprep.subr.mxu0 0.0
    %1380 = vmatpush2.msra.mxu0 0.0
    %1381 = vmatprep.subr.mxu0 0.0
    %1382 = vmatpush2.msra.mxu0 0.0
    %1383 = vmatprep.subr.mxu0 0.0
    %1384 = vmatpush2.msra.mxu0 0.0
    %1385 = vmatprep.subr.mxu0 0.0
    %1386 = vmatpush2.msra.mxu0 0.0
    %1387 = vmatprep.subr.mxu0 0.0
    %1388 = vmatpush2.msra.mxu0 0.0
    %1389 = vmatprep.subr.mxu0 0.0
    %1390 = vmatpush2.msra.mxu0 0.0
    %1391 = vmatprep.subr.mxu0 0.0
    %1392 = vmatpush2.msra.mxu0 0.0
    %1393 = vmatprep.subr.mxu0 0.0
    %1394 = vmatpush2.msra.mxu0 0.0
    %1395 = vmatprep.subr.mxu0 0.0
    %1396 = vmatpush2.msra.mxu0 0.0
    %1397 = vmatprep.mubr.f32.mxu0 0.0
    %1398 = vmatmul.mubr.f32.gmra.mxu0 %v1328
    %v1399 = vpop.f32.mrf.mxu0
    %v1400 = vadd.f32 0.0, %v1399
    %v1401 = vpop.f32.mrf.mxu0
    %1402 = vdwg.mxu0
    %v1403 = vadd.f32 %v1316, %v1400
    %v1404 = vld [vmem:[#allocation2 + $0x8] sm:$0x1]
    %v1405 = vld [vmem:[#allocation2 + $0x28] sm:$0x1]
    %s1406 = scalar_lea.vmem %s2, 256
    %v1407 = vld [vmem:[%s1406] sm:$0xff]
    %v1408 = vld [vmem:[%s1406 + $0x8] sm:$0xff]
    %v1409 = vld [vmem:[%s1406 + $0x10] sm:$0xff]
    %v1410 = vld [vmem:[%s1406 + $0x18] sm:$0x3]
    %v1413 = vrot.slane %v1405, 7
    %v1414 = vsel %vm725, %v1413, %v1404
    %v1415 = vsel %vm513, %v1414, 0
    %v1418 = vsel %vm729, %v1410, 0
    %1420 = vmatprep.subr.mxu0 0.0
    %1421 = vmatpush1.msra.mxu0 0.0
    %1422 = vmatprep.subr.mxu0 0.0
    %1423 = vmatpush1.msra.mxu0 0.0
    %1424 = vmatprep.subr.mxu0 0.0
    %1425 = vmatpush1.msra.mxu0 0.0
    %1426 = vmatprep.subr.mxu0 0.0
    %1427 = vmatpush1.msra.mxu0 0.0
    %1428 = vmatprep.subr.mxu0 0.0
    %1429 = vmatpush1.msra.mxu0 0.0
    %1430 = vmatprep.subr.mxu0 0.0
    %1431 = vmatpush1.msra.mxu0 0.0
    %1432 = vmatprep.subr.mxu0 0.0
    %1433 = vmatpush1.msra.mxu0 0.0
    %1434 = vmatprep.subr.mxu0 0.0
    %1435 = vmatpush1.msra.mxu0 0.0
    %1436 = vmatprep.subr.mxu0 0.0
    %1437 = vmatpush1.msra.mxu0 0.0
    %1438 = vmatprep.subr.mxu0 0.0
    %1439 = vmatpush1.msra.mxu0 0.0
    %1440 = vmatprep.subr.mxu0 0.0
    %1441 = vmatpush1.msra.mxu0 0.0
    %1442 = vmatprep.subr.mxu0 0.0
    %1443 = vmatpush1.msra.mxu0 0.0
    %1444 = vmatprep.subr.mxu0 0.0
    %1445 = vmatpush1.msra.mxu0 %v1418
    %1446 = vmatprep.subr.mxu0 0.0
    %1447 = vmatpush1.msra.mxu0 %v1409
    %1448 = vmatprep.subr.mxu0 0.0
    %1449 = vmatpush1.msra.mxu0 %v1408
    %1450 = vmatprep.subr.mxu0 0.0
    %1451 = vmatpush1.msra.mxu0 %v1407
    %1452 = vmatprep.subr.mxu0 0.0
    %1453 = vmatpush2.msra.mxu0 0.0
    %1454 = vmatprep.subr.mxu0 0.0
    %1455 = vmatpush2.msra.mxu0 0.0
    %1456 = vmatprep.subr.mxu0 0.0
    %1457 = vmatpush2.msra.mxu0 0.0
    %1458 = vmatprep.subr.mxu0 0.0
    %1459 = vmatpush2.msra.mxu0 0.0
    %1460 = vmatprep.subr.mxu0 0.0
    %1461 = vmatpush2.msra.mxu0 0.0
    %1462 = vmatprep.subr.mxu0 0.0
    %1463 = vmatpush2.msra.mxu0 0.0
    %1464 = vmatprep.subr.mxu0 0.0
    %1465 = vmatpush2.msra.mxu0 0.0
    %1466 = vmatprep.subr.mxu0 0.0
    %1467 = vmatpush2.msra.mxu0 0.0
    %1468 = vmatprep.subr.mxu0 0.0
    %1469 = vmatpush2.msra.mxu0 0.0
    %1470 = vmatprep.subr.mxu0 0.0
    %1471 = vmatpush2.msra.mxu0 0.0
    %1472 = vmatprep.subr.mxu0 0.0
    %1473 = vmatpush2.msra.mxu0 0.0
    %1474 = vmatprep.subr.mxu0 0.0
    %1475 = vmatpush2.msra.mxu0 0.0
    %1476 = vmatprep.subr.mxu0 0.0
    %1477 = vmatpush2.msra.mxu0 0.0
    %1478 = vmatprep.subr.mxu0 0.0
    %1479 = vmatpush2.msra.mxu0 0.0
    %1480 = vmatprep.subr.mxu0 0.0
    %1481 = vmatpush2.msra.mxu0 0.0
    %1482 = vmatprep.subr.mxu0 0.0
    %1483 = vmatpush2.msra.mxu0 0.0
    %1484 = vmatprep.mubr.f32.mxu0 0.0
    %1485 = vmatmul.mubr.f32.gmra.mxu0 %v1415
    %v1486 = vpop.f32.mrf.mxu0
    %v1487 = vadd.f32 0.0, %v1486
    %v1488 = vpop.f32.mrf.mxu0
    %1489 = vdwg.mxu0
    %v1490 = vadd.f32 %v1403, %v1487
    %v1491 = vld [vmem:[#allocation2 + $0x9] sm:$0x1]
    %v1492 = vld [vmem:[#allocation2 + $0x29] sm:$0x1]
    %s1493 = scalar_lea.vmem %s2, 288
    %v1494 = vld [vmem:[%s1493] sm:$0xff]
    %v1495 = vld [vmem:[%s1493 + $0x8] sm:$0xff]
    %v1496 = vld [vmem:[%s1493 + $0x10] sm:$0xff]
    %v1497 = vld [vmem:[%s1493 + $0x18] sm:$0x3]
    %v1500 = vrot.slane %v1492, 7
    %v1501 = vsel %vm725, %v1500, %v1491
    %v1502 = vsel %vm513, %v1501, 0
    %v1505 = vsel %vm729, %v1497, 0
    %1507 = vmatprep.subr.mxu0 0.0
    %1508 = vmatpush1.msra.mxu0 0.0
    %1509 = vmatprep.subr.mxu0 0.0
    %1510 = vmatpush1.msra.mxu0 0.0
    %1511 = vmatprep.subr.mxu0 0.0
    %1512 = vmatpush1.msra.mxu0 0.0
    %1513 = vmatprep.subr.mxu0 0.0
    %1514 = vmatpush1.msra.mxu0 0.0
    %1515 = vmatprep.subr.mxu0 0.0
    %1516 = vmatpush1.msra.mxu0 0.0
    %1517 = vmatprep.subr.mxu0 0.0
    %1518 = vmatpush1.msra.mxu0 0.0
    %1519 = vmatprep.subr.mxu0 0.0
    %1520 = vmatpush1.msra.mxu0 0.0
    %1521 = vmatprep.subr.mxu0 0.0
    %1522 = vmatpush1.msra.mxu0 0.0
    %1523 = vmatprep.subr.mxu0 0.0
    %1524 = vmatpush1.msra.mxu0 0.0
    %1525 = vmatprep.subr.mxu0 0.0
    %1526 = vmatpush1.msra.mxu0 0.0
    %1527 = vmatprep.subr.mxu0 0.0
    %1528 = vmatpush1.msra.mxu0 0.0
    %1529 = vmatprep.subr.mxu0 0.0
    %1530 = vmatpush1.msra.mxu0 0.0
    %1531 = vmatprep.subr.mxu0 0.0
    %1532 = vmatpush1.msra.mxu0 %v1505
    %1533 = vmatprep.subr.mxu0 0.0
    %1534 = vmatpush1.msra.mxu0 %v1496
    %1535 = vmatprep.subr.mxu0 0.0
    %1536 = vmatpush1.msra.mxu0 %v1495
    %1537 = vmatprep.subr.mxu0 0.0
    %1538 = vmatpush1.msra.mxu0 %v1494
    %1539 = vmatprep.subr.mxu0 0.0
    %1540 = vmatpush2.msra.mxu0 0.0
    %1541 = vmatprep.subr.mxu0 0.0
    %1542 = vmatpush2.msra.mxu0 0.0
    %1543 = vmatprep.subr.mxu0 0.0
    %1544 = vmatpush2.msra.mxu0 0.0
    %1545 = vmatprep.subr.mxu0 0.0
    %1546 = vmatpush2.msra.mxu0 0.0
    %1547 = vmatprep.subr.mxu0 0.0
    %1548 = vmatpush2.msra.mxu0 0.0
    %1549 = vmatprep.subr.mxu0 0.0
    %1550 = vmatpush2.msra.mxu0 0.0
    %1551 = vmatprep.subr.mxu0 0.0
    %1552 = vmatpush2.msra.mxu0 0.0
    %1553 = vmatprep.subr.mxu0 0.0
    %1554 = vmatpush2.msra.mxu0 0.0
    %1555 = vmatprep.subr.mxu0 0.0
    %1556 = vmatpush2.msra.mxu0 0.0
    %1557 = vmatprep.subr.mxu0 0.0
    %1558 = vmatpush2.msra.mxu0 0.0
    %1559 = vmatprep.subr.mxu0 0.0
    %1560 = vmatpush2.msra.mxu0 0.0
    %1561 = vmatprep.subr.mxu0 0.0
    %1562 = vmatpush2.msra.mxu0 0.0
    %1563 = vmatprep.subr.mxu0 0.0
    %1564 = vmatpush2.msra.mxu0 0.0
    %1565 = vmatprep.subr.mxu0 0.0
    %1566 = vmatpush2.msra.mxu0 0.0
    %1567 = vmatprep.subr.mxu0 0.0
    %1568 = vmatpush2.msra.mxu0 0.0
    %1569 = vmatprep.subr.mxu0 0.0
    %1570 = vmatpush2.msra.mxu0 0.0
    %1571 = vmatprep.mubr.f32.mxu0 0.0
    %1572 = vmatmul.mubr.f32.gmra.mxu0 %v1502
    %v1573 = vpop.f32.mrf.mxu0
    %v1574 = vadd.f32 0.0, %v1573
    %v1575 = vpop.f32.mrf.mxu0
    %1576 = vdwg.mxu0
    %v1577 = vadd.f32 %v1490, %v1574
    %v1578 = vld [vmem:[#allocation2 + $0xa] sm:$0x1]
    %v1579 = vld [vmem:[#allocation2 + $0x2a] sm:$0x1]
    %s1580 = scalar_lea.vmem %s2, 320
    %v1581 = vld [vmem:[%s1580] sm:$0xff]
    %v1582 = vld [vmem:[%s1580 + $0x8] sm:$0xff]
    %v1583 = vld [vmem:[%s1580 + $0x10] sm:$0xff]
    %v1584 = vld [vmem:[%s1580 + $0x18] sm:$0x3]
    %v1587 = vrot.slane %v1579, 7
    %v1588 = vsel %vm725, %v1587, %v1578
    %v1589 = vsel %vm513, %v1588, 0
    %v1592 = vsel %vm729, %v1584, 0
    %1594 = vmatprep.subr.mxu0 0.0
    %1595 = vmatpush1.msra.mxu0 0.0
    %1596 = vmatprep.subr.mxu0 0.0
    %1597 = vmatpush1.msra.mxu0 0.0
    %1598 = vmatprep.subr.mxu0 0.0
    %1599 = vmatpush1.msra.mxu0 0.0
    %1600 = vmatprep.subr.mxu0 0.0
    %1601 = vmatpush1.msra.mxu0 0.0
    %1602 = vmatprep.subr.mxu0 0.0
    %1603 = vmatpush1.msra.mxu0 0.0
    %1604 = vmatprep.subr.mxu0 0.0
    %1605 = vmatpush1.msra.mxu0 0.0
    %1606 = vmatprep.subr.mxu0 0.0
    %1607 = vmatpush1.msra.mxu0 0.0
    %1608 = vmatprep.subr.mxu0 0.0
    %1609 = vmatpush1.msra.mxu0 0.0
    %1610 = vmatprep.subr.mxu0 0.0
    %1611 = vmatpush1.msra.mxu0 0.0
    %1612 = vmatprep.subr.mxu0 0.0
    %1613 = vmatpush1.msra.mxu0 0.0
    %1614 = vmatprep.subr.mxu0 0.0
    %1615 = vmatpush1.msra.mxu0 0.0
    %1616 = vmatprep.subr.mxu0 0.0
    %1617 = vmatpush1.msra.mxu0 0.0
    %1618 = vmatprep.subr.mxu0 0.0
    %1619 = vmatpush1.msra.mxu0 %v1592
    %1620 = vmatprep.subr.mxu0 0.0
    %1621 = vmatpush1.msra.mxu0 %v1583
    %1622 = vmatprep.subr.mxu0 0.0
    %1623 = vmatpush1.msra.mxu0 %v1582
    %1624 = vmatprep.subr.mxu0 0.0
    %1625 = vmatpush1.msra.mxu0 %v1581
    %1626 = vmatprep.subr.mxu0 0.0
    %1627 = vmatpush2.msra.mxu0 0.0
    %1628 = vmatprep.subr.mxu0 0.0
    %1629 = vmatpush2.msra.mxu0 0.0
    %1630 = vmatprep.subr.mxu0 0.0
    %1631 = vmatpush2.msra.mxu0 0.0
    %1632 = vmatprep.subr.mxu0 0.0
    %1633 = vmatpush2.msra.mxu0 0.0
    %1634 = vmatprep.subr.mxu0 0.0
    %1635 = vmatpush2.msra.mxu0 0.0
    %1636 = vmatprep.subr.mxu0 0.0
    %1637 = vmatpush2.msra.mxu0 0.0
    %1638 = vmatprep.subr.mxu0 0.0
    %1639 = vmatpush2.msra.mxu0 0.0
    %1640 = vmatprep.subr.mxu0 0.0
    %1641 = vmatpush2.msra.mxu0 0.0
    %1642 = vmatprep.subr.mxu0 0.0
    %1643 = vmatpush2.msra.mxu0 0.0
    %1644 = vmatprep.subr.mxu0 0.0
    %1645 = vmatpush2.msra.mxu0 0.0
    %1646 = vmatprep.subr.mxu0 0.0
    %1647 = vmatpush2.msra.mxu0 0.0
    %1648 = vmatprep.subr.mxu0 0.0
    %1649 = vmatpush2.msra.mxu0 0.0
    %1650 = vmatprep.subr.mxu0 0.0
    %1651 = vmatpush2.msra.mxu0 0.0
    %1652 = vmatprep.subr.mxu0 0.0
    %1653 = vmatpush2.msra.mxu0 0.0
    %1654 = vmatprep.subr.mxu0 0.0
    %1655 = vmatpush2.msra.mxu0 0.0
    %1656 = vmatprep.subr.mxu0 0.0
    %1657 = vmatpush2.msra.mxu0 0.0
    %1658 = vmatprep.mubr.f32.mxu0 0.0
    %1659 = vmatmul.mubr.f32.gmra.mxu0 %v1589
    %v1660 = vpop.f32.mrf.mxu0
    %v1661 = vadd.f32 0.0, %v1660
    %v1662 = vpop.f32.mrf.mxu0
    %1663 = vdwg.mxu0
    %v1664 = vadd.f32 %v1577, %v1661
    %v1665 = vld [vmem:[#allocation2 + $0xb] sm:$0x1]
    %v1666 = vld [vmem:[#allocation2 + $0x2b] sm:$0x1]
    %s1667 = scalar_lea.vmem %s2, 352
    %v1668 = vld [vmem:[%s1667] sm:$0xff]
    %v1669 = vld [vmem:[%s1667 + $0x8] sm:$0xff]
    %v1670 = vld [vmem:[%s1667 + $0x10] sm:$0xff]
    %v1671 = vld [vmem:[%s1667 + $0x18] sm:$0x3]
    %v1674 = vrot.slane %v1666, 7
    %v1675 = vsel %vm725, %v1674, %v1665
    %v1676 = vsel %vm513, %v1675, 0
    %v1679 = vsel %vm729, %v1671, 0
    %1681 = vmatprep.subr.mxu0 0.0
    %1682 = vmatpush1.msra.mxu0 0.0
    %1683 = vmatprep.subr.mxu0 0.0
    %1684 = vmatpush1.msra.mxu0 0.0
    %1685 = vmatprep.subr.mxu0 0.0
    %1686 = vmatpush1.msra.mxu0 0.0
    %1687 = vmatprep.subr.mxu0 0.0
    %1688 = vmatpush1.msra.mxu0 0.0
    %1689 = vmatprep.subr.mxu0 0.0
    %1690 = vmatpush1.msra.mxu0 0.0
    %1691 = vmatprep.subr.mxu0 0.0
    %1692 = vmatpush1.msra.mxu0 0.0
    %1693 = vmatprep.subr.mxu0 0.0
    %1694 = vmatpush1.msra.mxu0 0.0
    %1695 = vmatprep.subr.mxu0 0.0
    %1696 = vmatpush1.msra.mxu0 0.0
    %1697 = vmatprep.subr.mxu0 0.0
    %1698 = vmatpush1.msra.mxu0 0.0
    %1699 = vmatprep.subr.mxu0 0.0
    %1700 = vmatpush1.msra.mxu0 0.0
    %1701 = vmatprep.subr.mxu0 0.0
    %1702 = vmatpush1.msra.mxu0 0.0
    %1703 = vmatprep.subr.mxu0 0.0
    %1704 = vmatpush1.msra.mxu0 0.0
    %1705 = vmatprep.subr.mxu0 0.0
    %1706 = vmatpush1.msra.mxu0 %v1679
    %1707 = vmatprep.subr.mxu0 0.0
    %1708 = vmatpush1.msra.mxu0 %v1670
    %1709 = vmatprep.subr.mxu0 0.0
    %1710 = vmatpush1.msra.mxu0 %v1669
    %1711 = vmatprep.subr.mxu0 0.0
    %1712 = vmatpush1.msra.mxu0 %v1668
    %1713 = vmatprep.subr.mxu0 0.0
    %1714 = vmatpush2.msra.mxu0 0.0
    %1715 = vmatprep.subr.mxu0 0.0
    %1716 = vmatpush2.msra.mxu0 0.0
    %1717 = vmatprep.subr.mxu0 0.0
    %1718 = vmatpush2.msra.mxu0 0.0
    %1719 = vmatprep.subr.mxu0 0.0
    %1720 = vmatpush2.msra.mxu0 0.0
    %1721 = vmatprep.subr.mxu0 0.0
    %1722 = vmatpush2.msra.mxu0 0.0
    %1723 = vmatprep.subr.mxu0 0.0
    %1724 = vmatpush2.msra.mxu0 0.0
    %1725 = vmatprep.subr.mxu0 0.0
    %1726 = vmatpush2.msra.mxu0 0.0
    %1727 = vmatprep.subr.mxu0 0.0
    %1728 = vmatpush2.msra.mxu0 0.0
    %1729 = vmatprep.subr.mxu0 0.0
    %1730 = vmatpush2.msra.mxu0 0.0
    %1731 = vmatprep.subr.mxu0 0.0
    %1732 = vmatpush2.msra.mxu0 0.0
    %1733 = vmatprep.subr.mxu0 0.0
    %1734 = vmatpush2.msra.mxu0 0.0
    %1735 = vmatprep.subr.mxu0 0.0
    %1736 = vmatpush2.msra.mxu0 0.0
    %1737 = vmatprep.subr.mxu0 0.0
    %1738 = vmatpush2.msra.mxu0 0.0
    %1739 = vmatprep.subr.mxu0 0.0
    %1740 = vmatpush2.msra.mxu0 0.0
    %1741 = vmatprep.subr.mxu0 0.0
    %1742 = vmatpush2.msra.mxu0 0.0
    %1743 = vmatprep.subr.mxu0 0.0
    %1744 = vmatpush2.msra.mxu0 0.0
    %1745 = vmatprep.mubr.f32.mxu0 0.0
    %1746 = vmatmul.mubr.f32.gmra.mxu0 %v1676
    %v1747 = vpop.f32.mrf.mxu0
    %v1748 = vadd.f32 0.0, %v1747
    %v1749 = vpop.f32.mrf.mxu0
    %1750 = vdwg.mxu0
    %v1751 = vadd.f32 %v1664, %v1748
    %v1752 = vld [vmem:[#allocation2 + $0xc] sm:$0x1]
    %v1753 = vld [vmem:[#allocation2 + $0x2c] sm:$0x1]
    %s1754 = scalar_lea.vmem %s2, 384
    %v1755 = vld [vmem:[%s1754] sm:$0xff]
    %v1756 = vld [vmem:[%s1754 + $0x8] sm:$0xff]
    %v1757 = vld [vmem:[%s1754 + $0x10] sm:$0xff]
    %v1758 = vld [vmem:[%s1754 + $0x18] sm:$0x3]
    %v1761 = vrot.slane %v1753, 7
    %v1762 = vsel %vm725, %v1761, %v1752
    %v1763 = vsel %vm513, %v1762, 0
    %v1766 = vsel %vm729, %v1758, 0
    %1768 = vmatprep.subr.mxu0 0.0
    %1769 = vmatpush1.msra.mxu0 0.0
    %1770 = vmatprep.subr.mxu0 0.0
    %1771 = vmatpush1.msra.mxu0 0.0
    %1772 = vmatprep.subr.mxu0 0.0
    %1773 = vmatpush1.msra.mxu0 0.0
    %1774 = vmatprep.subr.mxu0 0.0
    %1775 = vmatpush1.msra.mxu0 0.0
    %1776 = vmatprep.subr.mxu0 0.0
    %1777 = vmatpush1.msra.mxu0 0.0
    %1778 = vmatprep.subr.mxu0 0.0
    %1779 = vmatpush1.msra.mxu0 0.0
    %1780 = vmatprep.subr.mxu0 0.0
    %1781 = vmatpush1.msra.mxu0 0.0
    %1782 = vmatprep.subr.mxu0 0.0
    %1783 = vmatpush1.msra.mxu0 0.0
    %1784 = vmatprep.subr.mxu0 0.0
    %1785 = vmatpush1.msra.mxu0 0.0
    %1786 = vmatprep.subr.mxu0 0.0
    %1787 = vmatpush1.msra.mxu0 0.0
    %1788 = vmatprep.subr.mxu0 0.0
    %1789 = vmatpush1.msra.mxu0 0.0
    %1790 = vmatprep.subr.mxu0 0.0
    %1791 = vmatpush1.msra.mxu0 0.0
    %1792 = vmatprep.subr.mxu0 0.0
    %1793 = vmatpush1.msra.mxu0 %v1766
    %1794 = vmatprep.subr.mxu0 0.0
    %1795 = vmatpush1.msra.mxu0 %v1757
    %1796 = vmatprep.subr.mxu0 0.0
    %1797 = vmatpush1.msra.mxu0 %v1756
    %1798 = vmatprep.subr.mxu0 0.0
    %1799 = vmatpush1.msra.mxu0 %v1755
    %1800 = vmatprep.subr.mxu0 0.0
    %1801 = vmatpush2.msra.mxu0 0.0
    %1802 = vmatprep.subr.mxu0 0.0
    %1803 = vmatpush2.msra.mxu0 0.0
    %1804 = vmatprep.subr.mxu0 0.0
    %1805 = vmatpush2.msra.mxu0 0.0
    %1806 = vmatprep.subr.mxu0 0.0
    %1807 = vmatpush2.msra.mxu0 0.0
    %1808 = vmatprep.subr.mxu0 0.0
    %1809 = vmatpush2.msra.mxu0 0.0
    %1810 = vmatprep.subr.mxu0 0.0
    %1811 = vmatpush2.msra.mxu0 0.0
    %1812 = vmatprep.subr.mxu0 0.0
    %1813 = vmatpush2.msra.mxu0 0.0
    %1814 = vmatprep.subr.mxu0 0.0
    %1815 = vmatpush2.msra.mxu0 0.0
    %1816 = vmatprep.subr.mxu0 0.0
    %1817 = vmatpush2.msra.mxu0 0.0
    %1818 = vmatprep.subr.mxu0 0.0
    %1819 = vmatpush2.msra.mxu0 0.0
    %1820 = vmatprep.subr.mxu0 0.0
    %1821 = vmatpush2.msra.mxu0 0.0
    %1822 = vmatprep.subr.mxu0 0.0
    %1823 = vmatpush2.msra.mxu0 0.0
    %1824 = vmatprep.subr.mxu0 0.0
    %1825 = vmatpush2.msra.mxu0 0.0
    %1826 = vmatprep.subr.mxu0 0.0
    %1827 = vmatpush2.msra.mxu0 0.0
    %1828 = vmatprep.subr.mxu0 0.0
    %1829 = vmatpush2.msra.mxu0 0.0
    %1830 = vmatprep.subr.mxu0 0.0
    %1831 = vmatpush2.msra.mxu0 0.0
    %1832 = vmatprep.mubr.f32.mxu0 0.0
    %1833 = vmatmul.mubr.f32.gmra.mxu0 %v1763
    %v1834 = vpop.f32.mrf.mxu0
    %v1835 = vadd.f32 0.0, %v1834
    %v1836 = vpop.f32.mrf.mxu0
    %1837 = vdwg.mxu0
    %v1838 = vadd.f32 %v1751, %v1835
    %v1839 = vld [vmem:[#allocation2 + $0xd] sm:$0x1]
    %v1840 = vld [vmem:[#allocation2 + $0x2d] sm:$0x1]
    %s1841 = scalar_lea.vmem %s2, 416
    %v1842 = vld [vmem:[%s1841] sm:$0xff]
    %v1843 = vld [vmem:[%s1841 + $0x8] sm:$0xff]
    %v1844 = vld [vmem:[%s1841 + $0x10] sm:$0xff]
    %v1845 = vld [vmem:[%s1841 + $0x18] sm:$0x3]
    %v1848 = vrot.slane %v1840, 7
    %v1849 = vsel %vm725, %v1848, %v1839
    %v1850 = vsel %vm513, %v1849, 0
    %v1853 = vsel %vm729, %v1845, 0
    %1855 = vmatprep.subr.mxu0 0.0
    %1856 = vmatpush1.msra.mxu0 0.0
    %1857 = vmatprep.subr.mxu0 0.0
    %1858 = vmatpush1.msra.mxu0 0.0
    %1859 = vmatprep.subr.mxu0 0.0
    %1860 = vmatpush1.msra.mxu0 0.0
    %1861 = vmatprep.subr.mxu0 0.0
    %1862 = vmatpush1.msra.mxu0 0.0
    %1863 = vmatprep.subr.mxu0 0.0
    %1864 = vmatpush1.msra.mxu0 0.0
    %1865 = vmatprep.subr.mxu0 0.0
    %1866 = vmatpush1.msra.mxu0 0.0
    %1867 = vmatprep.subr.mxu0 0.0
    %1868 = vmatpush1.msra.mxu0 0.0
    %1869 = vmatprep.subr.mxu0 0.0
    %1870 = vmatpush1.msra.mxu0 0.0
    %1871 = vmatprep.subr.mxu0 0.0
    %1872 = vmatpush1.msra.mxu0 0.0
    %1873 = vmatprep.subr.mxu0 0.0
    %1874 = vmatpush1.msra.mxu0 0.0
    %1875 = vmatprep.subr.mxu0 0.0
    %1876 = vmatpush1.msra.mxu0 0.0
    %1877 = vmatprep.subr.mxu0 0.0
    %1878 = vmatpush1.msra.mxu0 0.0
    %1879 = vmatprep.subr.mxu0 0.0
    %1880 = vmatpush1.msra.mxu0 %v1853
    %1881 = vmatprep.subr.mxu0 0.0
    %1882 = vmatpush1.msra.mxu0 %v1844
    %1883 = vmatprep.subr.mxu0 0.0
    %1884 = vmatpush1.msra.mxu0 %v1843
    %1885 = vmatprep.subr.mxu0 0.0
    %1886 = vmatpush1.msra.mxu0 %v1842
    %1887 = vmatprep.subr.mxu0 0.0
    %1888 = vmatpush2.msra.mxu0 0.0
    %1889 = vmatprep.subr.mxu0 0.0
    %1890 = vmatpush2.msra.mxu0 0.0
    %1891 = vmatprep.subr.mxu0 0.0
    %1892 = vmatpush2.msra.mxu0 0.0
    %1893 = vmatprep.subr.mxu0 0.0
    %1894 = vmatpush2.msra.mxu0 0.0
    %1895 = vmatprep.subr.mxu0 0.0
    %1896 = vmatpush2.msra.mxu0 0.0
    %1897 = vmatprep.subr.mxu0 0.0
    %1898 = vmatpush2.msra.mxu0 0.0
    %1899 = vmatprep.subr.mxu0 0.0
    %1900 = vmatpush2.msra.mxu0 0.0
    %1901 = vmatprep.subr.mxu0 0.0
    %1902 = vmatpush2.msra.mxu0 0.0
    %1903 = vmatprep.subr.mxu0 0.0
    %1904 = vmatpush2.msra.mxu0 0.0
    %1905 = vmatprep.subr.mxu0 0.0
    %1906 = vmatpush2.msra.mxu0 0.0
    %1907 = vmatprep.subr.mxu0 0.0
    %1908 = vmatpush2.msra.mxu0 0.0
    %1909 = vmatprep.subr.mxu0 0.0
    %1910 = vmatpush2.msra.mxu0 0.0
    %1911 = vmatprep.subr.mxu0 0.0
    %1912 = vmatpush2.msra.mxu0 0.0
    %1913 = vmatprep.subr.mxu0 0.0
    %1914 = vmatpush2.msra.mxu0 0.0
    %1915 = vmatprep.subr.mxu0 0.0
    %1916 = vmatpush2.msra.mxu0 0.0
    %1917 = vmatprep.subr.mxu0 0.0
    %1918 = vmatpush2.msra.mxu0 0.0
    %1919 = vmatprep.mubr.f32.mxu0 0.0
    %1920 = vmatmul.mubr.f32.gmra.mxu0 %v1850
    %v1921 = vpop.f32.mrf.mxu0
    %v1922 = vadd.f32 0.0, %v1921
    %v1923 = vpop.f32.mrf.mxu0
    %1924 = vdwg.mxu0
    %v1925 = vadd.f32 %v1838, %v1922
    %v1926 = vld [vmem:[#allocation2 + $0xe] sm:$0x1]
    %v1927 = vld [vmem:[#allocation2 + $0x2e] sm:$0x1]
    %s1928 = scalar_lea.vmem %s2, 448
    %v1929 = vld [vmem:[%s1928] sm:$0xff]
    %v1930 = vld [vmem:[%s1928 + $0x8] sm:$0xff]
    %v1931 = vld [vmem:[%s1928 + $0x10] sm:$0xff]
    %v1932 = vld [vmem:[%s1928 + $0x18] sm:$0x3]
    %v1935 = vrot.slane %v1927, 7
    %v1936 = vsel %vm725, %v1935, %v1926
    %v1937 = vsel %vm513, %v1936, 0
    %v1940 = vsel %vm729, %v1932, 0
    %1942 = vmatprep.subr.mxu0 0.0
    %1943 = vmatpush1.msra.mxu0 0.0
    %1944 = vmatprep.subr.mxu0 0.0
    %1945 = vmatpush1.msra.mxu0 0.0
    %1946 = vmatprep.subr.mxu0 0.0
    %1947 = vmatpush1.msra.mxu0 0.0
    %1948 = vmatprep.subr.mxu0 0.0
    %1949 = vmatpush1.msra.mxu0 0.0
    %1950 = vmatprep.subr.mxu0 0.0
    %1951 = vmatpush1.msra.mxu0 0.0
    %1952 = vmatprep.subr.mxu0 0.0
    %1953 = vmatpush1.msra.mxu0 0.0
    %1954 = vmatprep.subr.mxu0 0.0
    %1955 = vmatpush1.msra.mxu0 0.0
    %1956 = vmatprep.subr.mxu0 0.0
    %1957 = vmatpush1.msra.mxu0 0.0
    %1958 = vmatprep.subr.mxu0 0.0
    %1959 = vmatpush1.msra.mxu0 0.0
    %1960 = vmatprep.subr.mxu0 0.0
    %1961 = vmatpush1.msra.mxu0 0.0
    %1962 = vmatprep.subr.mxu0 0.0
    %1963 = vmatpush1.msra.mxu0 0.0
    %1964 = vmatprep.subr.mxu0 0.0
    %1965 = vmatpush1.msra.mxu0 0.0
    %1966 = vmatprep.subr.mxu0 0.0
    %1967 = vmatpush1.msra.mxu0 %v1940
    %1968 = vmatprep.subr.mxu0 0.0
    %1969 = vmatpush1.msra.mxu0 %v1931
    %1970 = vmatprep.subr.mxu0 0.0
    %1971 = vmatpush1.msra.mxu0 %v1930
    %1972 = vmatprep.subr.mxu0 0.0
    %1973 = vmatpush1.msra.mxu0 %v1929
    %1974 = vmatprep.subr.mxu0 0.0
    %1975 = vmatpush2.msra.mxu0 0.0
    %1976 = vmatprep.subr.mxu0 0.0
    %1977 = vmatpush2.msra.mxu0 0.0
    %1978 = vmatprep.subr.mxu0 0.0
    %1979 = vmatpush2.msra.mxu0 0.0
    %1980 = vmatprep.subr.mxu0 0.0
    %1981 = vmatpush2.msra.mxu0 0.0
    %1982 = vmatprep.subr.mxu0 0.0
    %1983 = vmatpush2.msra.mxu0 0.0
    %1984 = vmatprep.subr.mxu0 0.0
    %1985 = vmatpush2.msra.mxu0 0.0
    %1986 = vmatprep.subr.mxu0 0.0
    %1987 = vmatpush2.msra.mxu0 0.0
    %1988 = vmatprep.subr.mxu0 0.0
    %1989 = vmatpush2.msra.mxu0 0.0
    %1990 = vmatprep.subr.mxu0 0.0
    %1991 = vmatpush2.msra.mxu0 0.0
    %1992 = vmatprep.subr.mxu0 0.0
    %1993 = vmatpush2.msra.mxu0 0.0
    %1994 = vmatprep.subr.mxu0 0.0
    %1995 = vmatpush2.msra.mxu0 0.0
    %1996 = vmatprep.subr.mxu0 0.0
    %1997 = vmatpush2.msra.mxu0 0.0
    %1998 = vmatprep.subr.mxu0 0.0
    %1999 = vmatpush2.msra.mxu0 0.0
    %2000 = vmatprep.subr.mxu0 0.0
    %2001 = vmatpush2.msra.mxu0 0.0
    %2002 = vmatprep.subr.mxu0 0.0
    %2003 = vmatpush2.msra.mxu0 0.0
    %2004 = vmatprep.subr.mxu0 0.0
    %2005 = vmatpush2.msra.mxu0 0.0
    %2006 = vmatprep.mubr.f32.mxu0 0.0
    %2007 = vmatmul.mubr.f32.gmra.mxu0 %v1937
    %v2008 = vpop.f32.mrf.mxu0
    %v2009 = vadd.f32 0.0, %v2008
    %v2010 = vpop.f32.mrf.mxu0
    %2011 = vdwg.mxu0
    %v2012 = vadd.f32 %v1925, %v2009
    %v2013 = vld [vmem:[#allocation2 + $0xf] sm:$0x1]
    %v2014 = vld [vmem:[#allocation2 + $0x2f] sm:$0x1]
    %s2015 = scalar_lea.vmem %s2, 480
    %v2016 = vld [vmem:[%s2015] sm:$0xff]
    %v2017 = vld [vmem:[%s2015 + $0x8] sm:$0xff]
    %v2018 = vld [vmem:[%s2015 + $0x10] sm:$0xff]
    %v2019 = vld [vmem:[%s2015 + $0x18] sm:$0x3]
    %v2022 = vrot.slane %v2014, 7
    %v2023 = vsel %vm725, %v2022, %v2013
    %v2024 = vsel %vm513, %v2023, 0
    %v2027 = vsel %vm729, %v2019, 0
    %2029 = vmatprep.subr.mxu0 0.0
    %2030 = vmatpush1.msra.mxu0 0.0
    %2031 = vmatprep.subr.mxu0 0.0
    %2032 = vmatpush1.msra.mxu0 0.0
    %2033 = vmatprep.subr.mxu0 0.0
    %2034 = vmatpush1.msra.mxu0 0.0
    %2035 = vmatprep.subr.mxu0 0.0
    %2036 = vmatpush1.msra.mxu0 0.0
    %2037 = vmatprep.subr.mxu0 0.0
    %2038 = vmatpush1.msra.mxu0 0.0
    %2039 = vmatprep.subr.mxu0 0.0
    %2040 = vmatpush1.msra.mxu0 0.0
    %2041 = vmatprep.subr.mxu0 0.0
    %2042 = vmatpush1.msra.mxu0 0.0
    %2043 = vmatprep.subr.mxu0 0.0
    %2044 = vmatpush1.msra.mxu0 0.0
    %2045 = vmatprep.subr.mxu0 0.0
    %2046 = vmatpush1.msra.mxu0 0.0
    %2047 = vmatprep.subr.mxu0 0.0
    %2048 = vmatpush1.msra.mxu0 0.0
    %2049 = vmatprep.subr.mxu0 0.0
    %2050 = vmatpush1.msra.mxu0 0.0
    %2051 = vmatprep.subr.mxu0 0.0
    %2052 = vmatpush1.msra.mxu0 0.0
    %2053 = vmatprep.subr.mxu0 0.0
    %2054 = vmatpush1.msra.mxu0 %v2027
    %2055 = vmatprep.subr.mxu0 0.0
    %2056 = vmatpush1.msra.mxu0 %v2018
    %2057 = vmatprep.subr.mxu0 0.0
    %2058 = vmatpush1.msra.mxu0 %v2017
    %2059 = vmatprep.subr.mxu0 0.0
    %2060 = vmatpush1.msra.mxu0 %v2016
    %2061 = vmatprep.subr.mxu0 0.0
    %2062 = vmatpush2.msra.mxu0 0.0
    %2063 = vmatprep.subr.mxu0 0.0
    %2064 = vmatpush2.msra.mxu0 0.0
    %2065 = vmatprep.subr.mxu0 0.0
    %2066 = vmatpush2.msra.mxu0 0.0
    %2067 = vmatprep.subr.mxu0 0.0
    %2068 = vmatpush2.msra.mxu0 0.0
    %2069 = vmatprep.subr.mxu0 0.0
    %2070 = vmatpush2.msra.mxu0 0.0
    %2071 = vmatprep.subr.mxu0 0.0
    %2072 = vmatpush2.msra.mxu0 0.0
    %2073 = vmatprep.subr.mxu0 0.0
    %2074 = vmatpush2.msra.mxu0 0.0
    %2075 = vmatprep.subr.mxu0 0.0
    %2076 = vmatpush2.msra.mxu0 0.0
    %2077 = vmatprep.subr.mxu0 0.0
    %2078 = vmatpush2.msra.mxu0 0.0
    %2079 = vmatprep.subr.mxu0 0.0
    %2080 = vmatpush2.msra.mxu0 0.0
    %2081 = vmatprep.subr.mxu0 0.0
    %2082 = vmatpush2.msra.mxu0 0.0
    %2083 = vmatprep.subr.mxu0 0.0
    %2084 = vmatpush2.msra.mxu0 0.0
    %2085 = vmatprep.subr.mxu0 0.0
    %2086 = vmatpush2.msra.mxu0 0.0
    %2087 = vmatprep.subr.mxu0 0.0
    %2088 = vmatpush2.msra.mxu0 0.0
    %2089 = vmatprep.subr.mxu0 0.0
    %2090 = vmatpush2.msra.mxu0 0.0
    %2091 = vmatprep.subr.mxu0 0.0
    %2092 = vmatpush2.msra.mxu0 0.0
    %2093 = vmatprep.mubr.f32.mxu0 0.0
    %2094 = vmatmul.mubr.f32.gmra.mxu0 %v2024
    %v2095 = vpop.f32.mrf.mxu0
    %v2096 = vadd.f32 0.0, %v2095
    %v2097 = vpop.f32.mrf.mxu0
    %2098 = vdwg.mxu0
    %v2099 = vadd.f32 %v2012, %v2096
    %v2100 = vld [vmem:[#allocation2 + $0x10] sm:$0x1]
    %v2101 = vld [vmem:[#allocation2 + $0x30] sm:$0x1]
    %s2102 = scalar_lea.vmem %s2, 512
    %v2103 = vld [vmem:[%s2102] sm:$0xff]
    %v2104 = vld [vmem:[%s2102 + $0x8] sm:$0xff]
    %v2105 = vld [vmem:[%s2102 + $0x10] sm:$0xff]
    %v2106 = vld [vmem:[%s2102 + $0x18] sm:$0x3]
    %v2109 = vrot.slane %v2101, 7
    %v2110 = vsel %vm725, %v2109, %v2100
    %v2111 = vsel %vm513, %v2110, 0
    %v2114 = vsel %vm729, %v2106, 0
    %2116 = vmatprep.subr.mxu0 0.0
    %2117 = vmatpush1.msra.mxu0 0.0
    %2118 = vmatprep.subr.mxu0 0.0
    %2119 = vmatpush1.msra.mxu0 0.0
    %2120 = vmatprep.subr.mxu0 0.0
    %2121 = vmatpush1.msra.mxu0 0.0
    %2122 = vmatprep.subr.mxu0 0.0
    %2123 = vmatpush1.msra.mxu0 0.0
    %2124 = vmatprep.subr.mxu0 0.0
    %2125 = vmatpush1.msra.mxu0 0.0
    %2126 = vmatprep.subr.mxu0 0.0
    %2127 = vmatpush1.msra.mxu0 0.0
    %2128 = vmatprep.subr.mxu0 0.0
    %2129 = vmatpush1.msra.mxu0 0.0
    %2130 = vmatprep.subr.mxu0 0.0
    %2131 = vmatpush1.msra.mxu0 0.0
    %2132 = vmatprep.subr.mxu0 0.0
    %2133 = vmatpush1.msra.mxu0 0.0
    %2134 = vmatprep.subr.mxu0 0.0
    %2135 = vmatpush1.msra.mxu0 0.0
    %2136 = vmatprep.subr.mxu0 0.0
    %2137 = vmatpush1.msra.mxu0 0.0
    %2138 = vmatprep.subr.mxu0 0.0
    %2139 = vmatpush1.msra.mxu0 0.0
    %2140 = vmatprep.subr.mxu0 0.0
    %2141 = vmatpush1.msra.mxu0 %v2114
    %2142 = vmatprep.subr.mxu0 0.0
    %2143 = vmatpush1.msra.mxu0 %v2105
    %2144 = vmatprep.subr.mxu0 0.0
    %2145 = vmatpush1.msra.mxu0 %v2104
    %2146 = vmatprep.subr.mxu0 0.0
    %2147 = vmatpush1.msra.mxu0 %v2103
    %2148 = vmatprep.subr.mxu0 0.0
    %2149 = vmatpush2.msra.mxu0 0.0
    %2150 = vmatprep.subr.mxu0 0.0
    %2151 = vmatpush2.msra.mxu0 0.0
    %2152 = vmatprep.subr.mxu0 0.0
    %2153 = vmatpush2.msra.mxu0 0.0
    %2154 = vmatprep.subr.mxu0 0.0
    %2155 = vmatpush2.msra.mxu0 0.0
    %2156 = vmatprep.subr.mxu0 0.0
    %2157 = vmatpush2.msra.mxu0 0.0
    %2158 = vmatprep.subr.mxu0 0.0
    %2159 = vmatpush2.msra.mxu0 0.0
    %2160 = vmatprep.subr.mxu0 0.0
    %2161 = vmatpush2.msra.mxu0 0.0
    %2162 = vmatprep.subr.mxu0 0.0
    %2163 = vmatpush2.msra.mxu0 0.0
    %2164 = vmatprep.subr.mxu0 0.0
    %2165 = vmatpush2.msra.mxu0 0.0
    %2166 = vmatprep.subr.mxu0 0.0
    %2167 = vmatpush2.msra.mxu0 0.0
    %2168 = vmatprep.subr.mxu0 0.0
    %2169 = vmatpush2.msra.mxu0 0.0
    %2170 = vmatprep.subr.mxu0 0.0
    %2171 = vmatpush2.msra.mxu0 0.0
    %2172 = vmatprep.subr.mxu0 0.0
    %2173 = vmatpush2.msra.mxu0 0.0
    %2174 = vmatprep.subr.mxu0 0.0
    %2175 = vmatpush2.msra.mxu0 0.0
    %2176 = vmatprep.subr.mxu0 0.0
    %2177 = vmatpush2.msra.mxu0 0.0
    %2178 = vmatprep.subr.mxu0 0.0
    %2179 = vmatpush2.msra.mxu0 0.0
    %2180 = vmatprep.mubr.f32.mxu0 0.0
    %2181 = vmatmul.mubr.f32.gmra.mxu0 %v2111
    %v2182 = vpop.f32.mrf.mxu0
    %v2183 = vadd.f32 0.0, %v2182
    %v2184 = vpop.f32.mrf.mxu0
    %2185 = vdwg.mxu0
    %v2186 = vadd.f32 %v2099, %v2183
    %v2187 = vld [vmem:[#allocation2 + $0x11] sm:$0x1]
    %v2188 = vld [vmem:[#allocation2 + $0x31] sm:$0x1]
    %s2189 = scalar_lea.vmem %s2, 544
    %v2190 = vld [vmem:[%s2189] sm:$0xff]
    %v2191 = vld [vmem:[%s2189 + $0x8] sm:$0xff]
    %v2192 = vld [vmem:[%s2189 + $0x10] sm:$0xff]
    %v2193 = vld [vmem:[%s2189 + $0x18] sm:$0x3]
    %v2196 = vrot.slane %v2188, 7
    %v2197 = vsel %vm725, %v2196, %v2187
    %v2198 = vsel %vm513, %v2197, 0
    %v2201 = vsel %vm729, %v2193, 0
    %2203 = vmatprep.subr.mxu0 0.0
    %2204 = vmatpush1.msra.mxu0 0.0
    %2205 = vmatprep.subr.mxu0 0.0
    %2206 = vmatpush1.msra.mxu0 0.0
    %2207 = vmatprep.subr.mxu0 0.0
    %2208 = vmatpush1.msra.mxu0 0.0
    %2209 = vmatprep.subr.mxu0 0.0
    %2210 = vmatpush1.msra.mxu0 0.0
    %2211 = vmatprep.subr.mxu0 0.0
    %2212 = vmatpush1.msra.mxu0 0.0
    %2213 = vmatprep.subr.mxu0 0.0
    %2214 = vmatpush1.msra.mxu0 0.0
    %2215 = vmatprep.subr.mxu0 0.0
    %2216 = vmatpush1.msra.mxu0 0.0
    %2217 = vmatprep.subr.mxu0 0.0
    %2218 = vmatpush1.msra.mxu0 0.0
    %2219 = vmatprep.subr.mxu0 0.0
    %2220 = vmatpush1.msra.mxu0 0.0
    %2221 = vmatprep.subr.mxu0 0.0
    %2222 = vmatpush1.msra.mxu0 0.0
    %2223 = vmatprep.subr.mxu0 0.0
    %2224 = vmatpush1.msra.mxu0 0.0
    %2225 = vmatprep.subr.mxu0 0.0
    %2226 = vmatpush1.msra.mxu0 0.0
    %2227 = vmatprep.subr.mxu0 0.0
    %2228 = vmatpush1.msra.mxu0 %v2201
    %2229 = vmatprep.subr.mxu0 0.0
    %2230 = vmatpush1.msra.mxu0 %v2192
    %2231 = vmatprep.subr.mxu0 0.0
    %2232 = vmatpush1.msra.mxu0 %v2191
    %2233 = vmatprep.subr.mxu0 0.0
    %2234 = vmatpush1.msra.mxu0 %v2190
    %2235 = vmatprep.subr.mxu0 0.0
    %2236 = vmatpush2.msra.mxu0 0.0
    %2237 = vmatprep.subr.mxu0 0.0
    %2238 = vmatpush2.msra.mxu0 0.0
    %2239 = vmatprep.subr.mxu0 0.0
    %2240 = vmatpush2.msra.mxu0 0.0
    %2241 = vmatprep.subr.mxu0 0.0
    %2242 = vmatpush2.msra.mxu0 0.0
    %2243 = vmatprep.subr.mxu0 0.0
    %2244 = vmatpush2.msra.mxu0 0.0
    %2245 = vmatprep.subr.mxu0 0.0
    %2246 = vmatpush2.msra.mxu0 0.0
    %2247 = vmatprep.subr.mxu0 0.0
    %2248 = vmatpush2.msra.mxu0 0.0
    %2249 = vmatprep.subr.mxu0 0.0
    %2250 = vmatpush2.msra.mxu0 0.0
    %2251 = vmatprep.subr.mxu0 0.0
    %2252 = vmatpush2.msra.mxu0 0.0
    %2253 = vmatprep.subr.mxu0 0.0
    %2254 = vmatpush2.msra.mxu0 0.0
    %2255 = vmatprep.subr.mxu0 0.0
    %2256 = vmatpush2.msra.mxu0 0.0
    %2257 = vmatprep.subr.mxu0 0.0
    %2258 = vmatpush2.msra.mxu0 0.0
    %2259 = vmatprep.subr.mxu0 0.0
    %2260 = vmatpush2.msra.mxu0 0.0
    %2261 = vmatprep.subr.mxu0 0.0
    %2262 = vmatpush2.msra.mxu0 0.0
    %2263 = vmatprep.subr.mxu0 0.0
    %2264 = vmatpush2.msra.mxu0 0.0
    %2265 = vmatprep.subr.mxu0 0.0
    %2266 = vmatpush2.msra.mxu0 0.0
    %2267 = vmatprep.mubr.f32.mxu0 0.0
    %2268 = vmatmul.mubr.f32.gmra.mxu0 %v2198
    %v2269 = vpop.f32.mrf.mxu0
    %v2270 = vadd.f32 0.0, %v2269
    %v2271 = vpop.f32.mrf.mxu0
    %2272 = vdwg.mxu0
    %v2273 = vadd.f32 %v2186, %v2270
    %v2274 = vld [vmem:[#allocation2 + $0x12] sm:$0x1]
    %v2275 = vld [vmem:[#allocation2 + $0x32] sm:$0x1]
    %s2276 = scalar_lea.vmem %s2, 576
    %v2277 = vld [vmem:[%s2276] sm:$0xff]
    %v2278 = vld [vmem:[%s2276 + $0x8] sm:$0xff]
    %v2279 = vld [vmem:[%s2276 + $0x10] sm:$0xff]
    %v2280 = vld [vmem:[%s2276 + $0x18] sm:$0x3]
    %v2283 = vrot.slane %v2275, 7
    %v2284 = vsel %vm725, %v2283, %v2274
    %v2285 = vsel %vm513, %v2284, 0
    %v2288 = vsel %vm729, %v2280, 0
    %2290 = vmatprep.subr.mxu0 0.0
    %2291 = vmatpush1.msra.mxu0 0.0
    %2292 = vmatprep.subr.mxu0 0.0
    %2293 = vmatpush1.msra.mxu0 0.0
    %2294 = vmatprep.subr.mxu0 0.0
    %2295 = vmatpush1.msra.mxu0 0.0
    %2296 = vmatprep.subr.mxu0 0.0
    %2297 = vmatpush1.msra.mxu0 0.0
    %2298 = vmatprep.subr.mxu0 0.0
    %2299 = vmatpush1.msra.mxu0 0.0
    %2300 = vmatprep.subr.mxu0 0.0
    %2301 = vmatpush1.msra.mxu0 0.0
    %2302 = vmatprep.subr.mxu0 0.0
    %2303 = vmatpush1.msra.mxu0 0.0
    %2304 = vmatprep.subr.mxu0 0.0
    %2305 = vmatpush1.msra.mxu0 0.0
    %2306 = vmatprep.subr.mxu0 0.0
    %2307 = vmatpush1.msra.mxu0 0.0
    %2308 = vmatprep.subr.mxu0 0.0
    %2309 = vmatpush1.msra.mxu0 0.0
    %2310 = vmatprep.subr.mxu0 0.0
    %2311 = vmatpush1.msra.mxu0 0.0
    %2312 = vmatprep.subr.mxu0 0.0
    %2313 = vmatpush1.msra.mxu0 0.0
    %2314 = vmatprep.subr.mxu0 0.0
    %2315 = vmatpush1.msra.mxu0 %v2288
    %2316 = vmatprep.subr.mxu0 0.0
    %2317 = vmatpush1.msra.mxu0 %v2279
    %2318 = vmatprep.subr.mxu0 0.0
    %2319 = vmatpush1.msra.mxu0 %v2278
    %2320 = vmatprep.subr.mxu0 0.0
    %2321 = vmatpush1.msra.mxu0 %v2277
    %2322 = vmatprep.subr.mxu0 0.0
    %2323 = vmatpush2.msra.mxu0 0.0
    %2324 = vmatprep.subr.mxu0 0.0
    %2325 = vmatpush2.msra.mxu0 0.0
    %2326 = vmatprep.subr.mxu0 0.0
    %2327 = vmatpush2.msra.mxu0 0.0
    %2328 = vmatprep.subr.mxu0 0.0
    %2329 = vmatpush2.msra.mxu0 0.0
    %2330 = vmatprep.subr.mxu0 0.0
    %2331 = vmatpush2.msra.mxu0 0.0
    %2332 = vmatprep.subr.mxu0 0.0
    %2333 = vmatpush2.msra.mxu0 0.0
    %2334 = vmatprep.subr.mxu0 0.0
    %2335 = vmatpush2.msra.mxu0 0.0
    %2336 = vmatprep.subr.mxu0 0.0
    %2337 = vmatpush2.msra.mxu0 0.0
    %2338 = vmatprep.subr.mxu0 0.0
    %2339 = vmatpush2.msra.mxu0 0.0
    %2340 = vmatprep.subr.mxu0 0.0
    %2341 = vmatpush2.msra.mxu0 0.0
    %2342 = vmatprep.subr.mxu0 0.0
    %2343 = vmatpush2.msra.mxu0 0.0
    %2344 = vmatprep.subr.mxu0 0.0
    %2345 = vmatpush2.msra.mxu0 0.0
    %2346 = vmatprep.subr.mxu0 0.0
    %2347 = vmatpush2.msra.mxu0 0.0
    %2348 = vmatprep.subr.mxu0 0.0
    %2349 = vmatpush2.msra.mxu0 0.0
    %2350 = vmatprep.subr.mxu0 0.0
    %2351 = vmatpush2.msra.mxu0 0.0
    %2352 = vmatprep.subr.mxu0 0.0
    %2353 = vmatpush2.msra.mxu0 0.0
    %2354 = vmatprep.mubr.f32.mxu0 0.0
    %2355 = vmatmul.mubr.f32.gmra.mxu0 %v2285
    %v2356 = vpop.f32.mrf.mxu0
    %v2357 = vadd.f32 0.0, %v2356
    %v2358 = vpop.f32.mrf.mxu0
    %2359 = vdwg.mxu0
    %v2360 = vadd.f32 %v2273, %v2357
    %v2361 = vld [vmem:[#allocation2 + $0x13] sm:$0x1]
    %v2362 = vld [vmem:[#allocation2 + $0x33] sm:$0x1]
    %s2363 = scalar_lea.vmem %s2, 608
    %v2364 = vld [vmem:[%s2363] sm:$0xff]
    %v2365 = vld [vmem:[%s2363 + $0x8] sm:$0xff]
    %v2366 = vld [vmem:[%s2363 + $0x10] sm:$0xff]
    %v2367 = vld [vmem:[%s2363 + $0x18] sm:$0x3]
    %v2370 = vrot.slane %v2362, 7
    %v2371 = vsel %vm725, %v2370, %v2361
    %v2372 = vsel %vm513, %v2371, 0
    %v2375 = vsel %vm729, %v2367, 0
    %2377 = vmatprep.subr.mxu0 0.0
    %2378 = vmatpush1.msra.mxu0 0.0
    %2379 = vmatprep.subr.mxu0 0.0
    %2380 = vmatpush1.msra.mxu0 0.0
    %2381 = vmatprep.subr.mxu0 0.0
    %2382 = vmatpush1.msra.mxu0 0.0
    %2383 = vmatprep.subr.mxu0 0.0
    %2384 = vmatpush1.msra.mxu0 0.0
    %2385 = vmatprep.subr.mxu0 0.0
    %2386 = vmatpush1.msra.mxu0 0.0
    %2387 = vmatprep.subr.mxu0 0.0
    %2388 = vmatpush1.msra.mxu0 0.0
    %2389 = vmatprep.subr.mxu0 0.0
    %2390 = vmatpush1.msra.mxu0 0.0
    %2391 = vmatprep.subr.mxu0 0.0
    %2392 = vmatpush1.msra.mxu0 0.0
    %2393 = vmatprep.subr.mxu0 0.0
    %2394 = vmatpush1.msra.mxu0 0.0
    %2395 = vmatprep.subr.mxu0 0.0
    %2396 = vmatpush1.msra.mxu0 0.0
    %2397 = vmatprep.subr.mxu0 0.0
    %2398 = vmatpush1.msra.mxu0 0.0
    %2399 = vmatprep.subr.mxu0 0.0
    %2400 = vmatpush1.msra.mxu0 0.0
    %2401 = vmatprep.subr.mxu0 0.0
    %2402 = vmatpush1.msra.mxu0 %v2375
    %2403 = vmatprep.subr.mxu0 0.0
    %2404 = vmatpush1.msra.mxu0 %v2366
    %2405 = vmatprep.subr.mxu0 0.0
    %2406 = vmatpush1.msra.mxu0 %v2365
    %2407 = vmatprep.subr.mxu0 0.0
    %2408 = vmatpush1.msra.mxu0 %v2364
    %2409 = vmatprep.subr.mxu0 0.0
    %2410 = vmatpush2.msra.mxu0 0.0
    %2411 = vmatprep.subr.mxu0 0.0
    %2412 = vmatpush2.msra.mxu0 0.0
    %2413 = vmatprep.subr.mxu0 0.0
    %2414 = vmatpush2.msra.mxu0 0.0
    %2415 = vmatprep.subr.mxu0 0.0
    %2416 = vmatpush2.msra.mxu0 0.0
    %2417 = vmatprep.subr.mxu0 0.0
    %2418 = vmatpush2.msra.mxu0 0.0
    %2419 = vmatprep.subr.mxu0 0.0
    %2420 = vmatpush2.msra.mxu0 0.0
    %2421 = vmatprep.subr.mxu0 0.0
    %2422 = vmatpush2.msra.mxu0 0.0
    %2423 = vmatprep.subr.mxu0 0.0
    %2424 = vmatpush2.msra.mxu0 0.0
    %2425 = vmatprep.subr.mxu0 0.0
    %2426 = vmatpush2.msra.mxu0 0.0
    %2427 = vmatprep.subr.mxu0 0.0
    %2428 = vmatpush2.msra.mxu0 0.0
    %2429 = vmatprep.subr.mxu0 0.0
    %2430 = vmatpush2.msra.mxu0 0.0
    %2431 = vmatprep.subr.mxu0 0.0
    %2432 = vmatpush2.msra.mxu0 0.0
    %2433 = vmatprep.subr.mxu0 0.0
    %2434 = vmatpush2.msra.mxu0 0.0
    %2435 = vmatprep.subr.mxu0 0.0
    %2436 = vmatpush2.msra.mxu0 0.0
    %2437 = vmatprep.subr.mxu0 0.0
    %2438 = vmatpush2.msra.mxu0 0.0
    %2439 = vmatprep.subr.mxu0 0.0
    %2440 = vmatpush2.msra.mxu0 0.0
    %2441 = vmatprep.mubr.f32.mxu0 0.0
    %2442 = vmatmul.mubr.f32.gmra.mxu0 %v2372
    %v2443 = vpop.f32.mrf.mxu0
    %v2444 = vadd.f32 0.0, %v2443
    %v2445 = vpop.f32.mrf.mxu0
    %2446 = vdwg.mxu0
    %v2447 = vadd.f32 %v2360, %v2444
    %v2448 = vld [vmem:[#allocation2 + $0x14] sm:$0x1]
    %v2449 = vld [vmem:[#allocation2 + $0x34] sm:$0x1]
    %s2450 = scalar_lea.vmem %s2, 640
    %v2451 = vld [vmem:[%s2450] sm:$0xff]
    %v2452 = vld [vmem:[%s2450 + $0x8] sm:$0xff]
    %v2453 = vld [vmem:[%s2450 + $0x10] sm:$0xff]
    %v2454 = vld [vmem:[%s2450 + $0x18] sm:$0x3]
    %v2457 = vrot.slane %v2449, 7
    %v2458 = vsel %vm725, %v2457, %v2448
    %v2459 = vsel %vm513, %v2458, 0
    %v2462 = vsel %vm729, %v2454, 0
    %2464 = vmatprep.subr.mxu0 0.0
    %2465 = vmatpush1.msra.mxu0 0.0
    %2466 = vmatprep.subr.mxu0 0.0
    %2467 = vmatpush1.msra.mxu0 0.0
    %2468 = vmatprep.subr.mxu0 0.0
    %2469 = vmatpush1.msra.mxu0 0.0
    %2470 = vmatprep.subr.mxu0 0.0
    %2471 = vmatpush1.msra.mxu0 0.0
    %2472 = vmatprep.subr.mxu0 0.0
    %2473 = vmatpush1.msra.mxu0 0.0
    %2474 = vmatprep.subr.mxu0 0.0
    %2475 = vmatpush1.msra.mxu0 0.0
    %2476 = vmatprep.subr.mxu0 0.0
    %2477 = vmatpush1.msra.mxu0 0.0
    %2478 = vmatprep.subr.mxu0 0.0
    %2479 = vmatpush1.msra.mxu0 0.0
    %2480 = vmatprep.subr.mxu0 0.0
    %2481 = vmatpush1.msra.mxu0 0.0
    %2482 = vmatprep.subr.mxu0 0.0
    %2483 = vmatpush1.msra.mxu0 0.0
    %2484 = vmatprep.subr.mxu0 0.0
    %2485 = vmatpush1.msra.mxu0 0.0
    %2486 = vmatprep.subr.mxu0 0.0
    %2487 = vmatpush1.msra.mxu0 0.0
    %2488 = vmatprep.subr.mxu0 0.0
    %2489 = vmatpush1.msra.mxu0 %v2462
    %2490 = vmatprep.subr.mxu0 0.0
    %2491 = vmatpush1.msra.mxu0 %v2453
    %2492 = vmatprep.subr.mxu0 0.0
    %2493 = vmatpush1.msra.mxu0 %v2452
    %2494 = vmatprep.subr.mxu0 0.0
    %2495 = vmatpush1.msra.mxu0 %v2451
    %2496 = vmatprep.subr.mxu0 0.0
    %2497 = vmatpush2.msra.mxu0 0.0
    %2498 = vmatprep.subr.mxu0 0.0
    %2499 = vmatpush2.msra.mxu0 0.0
    %2500 = vmatprep.subr.mxu0 0.0
    %2501 = vmatpush2.msra.mxu0 0.0
    %2502 = vmatprep.subr.mxu0 0.0
    %2503 = vmatpush2.msra.mxu0 0.0
    %2504 = vmatprep.subr.mxu0 0.0
    %2505 = vmatpush2.msra.mxu0 0.0
    %2506 = vmatprep.subr.mxu0 0.0
    %2507 = vmatpush2.msra.mxu0 0.0
    %2508 = vmatprep.subr.mxu0 0.0
    %2509 = vmatpush2.msra.mxu0 0.0
    %2510 = vmatprep.subr.mxu0 0.0
    %2511 = vmatpush2.msra.mxu0 0.0
    %2512 = vmatprep.subr.mxu0 0.0
    %2513 = vmatpush2.msra.mxu0 0.0
    %2514 = vmatprep.subr.mxu0 0.0
    %2515 = vmatpush2.msra.mxu0 0.0
    %2516 = vmatprep.subr.mxu0 0.0
    %2517 = vmatpush2.msra.mxu0 0.0
    %2518 = vmatprep.subr.mxu0 0.0
    %2519 = vmatpush2.msra.mxu0 0.0
    %2520 = vmatprep.subr.mxu0 0.0
    %2521 = vmatpush2.msra.mxu0 0.0
    %2522 = vmatprep.subr.mxu0 0.0
    %2523 = vmatpush2.msra.mxu0 0.0
    %2524 = vmatprep.subr.mxu0 0.0
    %2525 = vmatpush2.msra.mxu0 0.0
    %2526 = vmatprep.subr.mxu0 0.0
    %2527 = vmatpush2.msra.mxu0 0.0
    %2528 = vmatprep.mubr.f32.mxu0 0.0
    %2529 = vmatmul.mubr.f32.gmra.mxu0 %v2459
    %v2530 = vpop.f32.mrf.mxu0
    %v2531 = vadd.f32 0.0, %v2530
    %v2532 = vpop.f32.mrf.mxu0
    %2533 = vdwg.mxu0
    %v2534 = vadd.f32 %v2447, %v2531
    %v2535 = vld [vmem:[#allocation2 + $0x15] sm:$0x1]
    %v2536 = vld [vmem:[#allocation2 + $0x35] sm:$0x1]
    %s2537 = scalar_lea.vmem %s2, 672
    %v2538 = vld [vmem:[%s2537] sm:$0xff]
    %v2539 = vld [vmem:[%s2537 + $0x8] sm:$0xff]
    %v2540 = vld [vmem:[%s2537 + $0x10] sm:$0xff]
    %v2541 = vld [vmem:[%s2537 + $0x18] sm:$0x3]
    %v2544 = vrot.slane %v2536, 7
    %v2545 = vsel %vm725, %v2544, %v2535
    %v2546 = vsel %vm513, %v2545, 0
    %v2549 = vsel %vm729, %v2541, 0
    %2551 = vmatprep.subr.mxu0 0.0
    %2552 = vmatpush1.msra.mxu0 0.0
    %2553 = vmatprep.subr.mxu0 0.0
    %2554 = vmatpush1.msra.mxu0 0.0
    %2555 = vmatprep.subr.mxu0 0.0
    %2556 = vmatpush1.msra.mxu0 0.0
    %2557 = vmatprep.subr.mxu0 0.0
    %2558 = vmatpush1.msra.mxu0 0.0
    %2559 = vmatprep.subr.mxu0 0.0
    %2560 = vmatpush1.msra.mxu0 0.0
    %2561 = vmatprep.subr.mxu0 0.0
    %2562 = vmatpush1.msra.mxu0 0.0
    %2563 = vmatprep.subr.mxu0 0.0
    %2564 = vmatpush1.msra.mxu0 0.0
    %2565 = vmatprep.subr.mxu0 0.0
    %2566 = vmatpush1.msra.mxu0 0.0
    %2567 = vmatprep.subr.mxu0 0.0
    %2568 = vmatpush1.msra.mxu0 0.0
    %2569 = vmatprep.subr.mxu0 0.0
    %2570 = vmatpush1.msra.mxu0 0.0
    %2571 = vmatprep.subr.mxu0 0.0
    %2572 = vmatpush1.msra.mxu0 0.0
    %2573 = vmatprep.subr.mxu0 0.0
    %2574 = vmatpush1.msra.mxu0 0.0
    %2575 = vmatprep.subr.mxu0 0.0
    %2576 = vmatpush1.msra.mxu0 %v2549
    %2577 = vmatprep.subr.mxu0 0.0
    %2578 = vmatpush1.msra.mxu0 %v2540
    %2579 = vmatprep.subr.mxu0 0.0
    %2580 = vmatpush1.msra.mxu0 %v2539
    %2581 = vmatprep.subr.mxu0 0.0
    %2582 = vmatpush1.msra.mxu0 %v2538
    %2583 = vmatprep.subr.mxu0 0.0
    %2584 = vmatpush2.msra.mxu0 0.0
    %2585 = vmatprep.subr.mxu0 0.0
    %2586 = vmatpush2.msra.mxu0 0.0
    %2587 = vmatprep.subr.mxu0 0.0
    %2588 = vmatpush2.msra.mxu0 0.0
    %2589 = vmatprep.subr.mxu0 0.0
    %2590 = vmatpush2.msra.mxu0 0.0
    %2591 = vmatprep.subr.mxu0 0.0
    %2592 = vmatpush2.msra.mxu0 0.0
    %2593 = vmatprep.subr.mxu0 0.0
    %2594 = vmatpush2.msra.mxu0 0.0
    %2595 = vmatprep.subr.mxu0 0.0
    %2596 = vmatpush2.msra.mxu0 0.0
    %2597 = vmatprep.subr.mxu0 0.0
    %2598 = vmatpush2.msra.mxu0 0.0
    %2599 = vmatprep.subr.mxu0 0.0
    %2600 = vmatpush2.msra.mxu0 0.0
    %2601 = vmatprep.subr.mxu0 0.0
    %2602 = vmatpush2.msra.mxu0 0.0
    %2603 = vmatprep.subr.mxu0 0.0
    %2604 = vmatpush2.msra.mxu0 0.0
    %2605 = vmatprep.subr.mxu0 0.0
    %2606 = vmatpush2.msra.mxu0 0.0
    %2607 = vmatprep.subr.mxu0 0.0
    %2608 = vmatpush2.msra.mxu0 0.0
    %2609 = vmatprep.subr.mxu0 0.0
    %2610 = vmatpush2.msra.mxu0 0.0
    %2611 = vmatprep.subr.mxu0 0.0
    %2612 = vmatpush2.msra.mxu0 0.0
    %2613 = vmatprep.subr.mxu0 0.0
    %2614 = vmatpush2.msra.mxu0 0.0
    %2615 = vmatprep.mubr.f32.mxu0 0.0
    %2616 = vmatmul.mubr.f32.gmra.mxu0 %v2546
    %v2617 = vpop.f32.mrf.mxu0
    %v2618 = vadd.f32 0.0, %v2617
    %v2619 = vpop.f32.mrf.mxu0
    %2620 = vdwg.mxu0
    %v2621 = vadd.f32 %v2534, %v2618
    %v2622 = vld [vmem:[#allocation2 + $0x16] sm:$0x1]
    %v2623 = vld [vmem:[#allocation2 + $0x36] sm:$0x1]
    %s2624 = scalar_lea.vmem %s2, 704
    %v2625 = vld [vmem:[%s2624] sm:$0xff]
    %v2626 = vld [vmem:[%s2624 + $0x8] sm:$0xff]
    %v2627 = vld [vmem:[%s2624 + $0x10] sm:$0xff]
    %v2628 = vld [vmem:[%s2624 + $0x18] sm:$0x3]
    %v2631 = vrot.slane %v2623, 7
    %v2632 = vsel %vm725, %v2631, %v2622
    %v2633 = vsel %vm513, %v2632, 0
    %v2636 = vsel %vm729, %v2628, 0
    %2638 = vmatprep.subr.mxu0 0.0
    %2639 = vmatpush1.msra.mxu0 0.0
    %2640 = vmatprep.subr.mxu0 0.0
    %2641 = vmatpush1.msra.mxu0 0.0
    %2642 = vmatprep.subr.mxu0 0.0
    %2643 = vmatpush1.msra.mxu0 0.0
    %2644 = vmatprep.subr.mxu0 0.0
    %2645 = vmatpush1.msra.mxu0 0.0
    %2646 = vmatprep.subr.mxu0 0.0
    %2647 = vmatpush1.msra.mxu0 0.0
    %2648 = vmatprep.subr.mxu0 0.0
    %2649 = vmatpush1.msra.mxu0 0.0
    %2650 = vmatprep.subr.mxu0 0.0
    %2651 = vmatpush1.msra.mxu0 0.0
    %2652 = vmatprep.subr.mxu0 0.0
    %2653 = vmatpush1.msra.mxu0 0.0
    %2654 = vmatprep.subr.mxu0 0.0
    %2655 = vmatpush1.msra.mxu0 0.0
    %2656 = vmatprep.subr.mxu0 0.0
    %2657 = vmatpush1.msra.mxu0 0.0
    %2658 = vmatprep.subr.mxu0 0.0
    %2659 = vmatpush1.msra.mxu0 0.0
    %2660 = vmatprep.subr.mxu0 0.0
    %2661 = vmatpush1.msra.mxu0 0.0
    %2662 = vmatprep.subr.mxu0 0.0
    %2663 = vmatpush1.msra.mxu0 %v2636
    %2664 = vmatprep.subr.mxu0 0.0
    %2665 = vmatpush1.msra.mxu0 %v2627
    %2666 = vmatprep.subr.mxu0 0.0
    %2667 = vmatpush1.msra.mxu0 %v2626
    %2668 = vmatprep.subr.mxu0 0.0
    %2669 = vmatpush1.msra.mxu0 %v2625
    %2670 = vmatprep.subr.mxu0 0.0
    %2671 = vmatpush2.msra.mxu0 0.0
    %2672 = vmatprep.subr.mxu0 0.0
    %2673 = vmatpush2.msra.mxu0 0.0
    %2674 = vmatprep.subr.mxu0 0.0
    %2675 = vmatpush2.msra.mxu0 0.0
    %2676 = vmatprep.subr.mxu0 0.0
    %2677 = vmatpush2.msra.mxu0 0.0
    %2678 = vmatprep.subr.mxu0 0.0
    %2679 = vmatpush2.msra.mxu0 0.0
    %2680 = vmatprep.subr.mxu0 0.0
    %2681 = vmatpush2.msra.mxu0 0.0
    %2682 = vmatprep.subr.mxu0 0.0
    %2683 = vmatpush2.msra.mxu0 0.0
    %2684 = vmatprep.subr.mxu0 0.0
    %2685 = vmatpush2.msra.mxu0 0.0
    %2686 = vmatprep.subr.mxu0 0.0
    %2687 = vmatpush2.msra.mxu0 0.0
    %2688 = vmatprep.subr.mxu0 0.0
    %2689 = vmatpush2.msra.mxu0 0.0
    %2690 = vmatprep.subr.mxu0 0.0
    %2691 = vmatpush2.msra.mxu0 0.0
    %2692 = vmatprep.subr.mxu0 0.0
    %2693 = vmatpush2.msra.mxu0 0.0
    %2694 = vmatprep.subr.mxu0 0.0
    %2695 = vmatpush2.msra.mxu0 0.0
    %2696 = vmatprep.subr.mxu0 0.0
    %2697 = vmatpush2.msra.mxu0 0.0
    %2698 = vmatprep.subr.mxu0 0.0
    %2699 = vmatpush2.msra.mxu0 0.0
    %2700 = vmatprep.subr.mxu0 0.0
    %2701 = vmatpush2.msra.mxu0 0.0
    %2702 = vmatprep.mubr.f32.mxu0 0.0
    %2703 = vmatmul.mubr.f32.gmra.mxu0 %v2633
    %v2704 = vpop.f32.mrf.mxu0
    %v2705 = vadd.f32 0.0, %v2704
    %v2706 = vpop.f32.mrf.mxu0
    %2707 = vdwg.mxu0
    %v2708 = vadd.f32 %v2621, %v2705
    %v2709 = vld [vmem:[#allocation2 + $0x17] sm:$0x1]
    %v2710 = vld [vmem:[#allocation2 + $0x37] sm:$0x1]
    %s2711 = scalar_lea.vmem %s2, 736
    %v2712 = vld [vmem:[%s2711] sm:$0xff]
    %v2713 = vld [vmem:[%s2711 + $0x8] sm:$0xff]
    %v2714 = vld [vmem:[%s2711 + $0x10] sm:$0xff]
    %v2715 = vld [vmem:[%s2711 + $0x18] sm:$0x3]
    %v2718 = vrot.slane %v2710, 7
    %v2719 = vsel %vm725, %v2718, %v2709
    %v2720 = vsel %vm513, %v2719, 0
    %v2723 = vsel %vm729, %v2715, 0
    %2725 = vmatprep.subr.mxu0 0.0
    %2726 = vmatpush1.msra.mxu0 0.0
    %2727 = vmatprep.subr.mxu0 0.0
    %2728 = vmatpush1.msra.mxu0 0.0
    %2729 = vmatprep.subr.mxu0 0.0
    %2730 = vmatpush1.msra.mxu0 0.0
    %2731 = vmatprep.subr.mxu0 0.0
    %2732 = vmatpush1.msra.mxu0 0.0
    %2733 = vmatprep.subr.mxu0 0.0
    %2734 = vmatpush1.msra.mxu0 0.0
    %2735 = vmatprep.subr.mxu0 0.0
    %2736 = vmatpush1.msra.mxu0 0.0
    %2737 = vmatprep.subr.mxu0 0.0
    %2738 = vmatpush1.msra.mxu0 0.0
    %2739 = vmatprep.subr.mxu0 0.0
    %2740 = vmatpush1.msra.mxu0 0.0
    %2741 = vmatprep.subr.mxu0 0.0
    %2742 = vmatpush1.msra.mxu0 0.0
    %2743 = vmatprep.subr.mxu0 0.0
    %2744 = vmatpush1.msra.mxu0 0.0
    %2745 = vmatprep.subr.mxu0 0.0
    %2746 = vmatpush1.msra.mxu0 0.0
    %2747 = vmatprep.subr.mxu0 0.0
    %2748 = vmatpush1.msra.mxu0 0.0
    %2749 = vmatprep.subr.mxu0 0.0
    %2750 = vmatpush1.msra.mxu0 %v2723
    %2751 = vmatprep.subr.mxu0 0.0
    %2752 = vmatpush1.msra.mxu0 %v2714
    %2753 = vmatprep.subr.mxu0 0.0
    %2754 = vmatpush1.msra.mxu0 %v2713
    %2755 = vmatprep.subr.mxu0 0.0
    %2756 = vmatpush1.msra.mxu0 %v2712
    %2757 = vmatprep.subr.mxu0 0.0
    %2758 = vmatpush2.msra.mxu0 0.0
    %2759 = vmatprep.subr.mxu0 0.0
    %2760 = vmatpush2.msra.mxu0 0.0
    %2761 = vmatprep.subr.mxu0 0.0
    %2762 = vmatpush2.msra.mxu0 0.0
    %2763 = vmatprep.subr.mxu0 0.0
    %2764 = vmatpush2.msra.mxu0 0.0
    %2765 = vmatprep.subr.mxu0 0.0
    %2766 = vmatpush2.msra.mxu0 0.0
    %2767 = vmatprep.subr.mxu0 0.0
    %2768 = vmatpush2.msra.mxu0 0.0
    %2769 = vmatprep.subr.mxu0 0.0
    %2770 = vmatpush2.msra.mxu0 0.0
    %2771 = vmatprep.subr.mxu0 0.0
    %2772 = vmatpush2.msra.mxu0 0.0
    %2773 = vmatprep.subr.mxu0 0.0
    %2774 = vmatpush2.msra.mxu0 0.0
    %2775 = vmatprep.subr.mxu0 0.0
    %2776 = vmatpush2.msra.mxu0 0.0
    %2777 = vmatprep.subr.mxu0 0.0
    %2778 = vmatpush2.msra.mxu0 0.0
    %2779 = vmatprep.subr.mxu0 0.0
    %2780 = vmatpush2.msra.mxu0 0.0
    %2781 = vmatprep.subr.mxu0 0.0
    %2782 = vmatpush2.msra.mxu0 0.0
    %2783 = vmatprep.subr.mxu0 0.0
    %2784 = vmatpush2.msra.mxu0 0.0
    %2785 = vmatprep.subr.mxu0 0.0
    %2786 = vmatpush2.msra.mxu0 0.0
    %2787 = vmatprep.subr.mxu0 0.0
    %2788 = vmatpush2.msra.mxu0 0.0
    %2789 = vmatprep.mubr.f32.mxu0 0.0
    %2790 = vmatmul.mubr.f32.gmra.mxu0 %v2720
    %v2791 = vpop.f32.mrf.mxu0
    %v2792 = vadd.f32 0.0, %v2791
    %v2793 = vpop.f32.mrf.mxu0
    %2794 = vdwg.mxu0
    %v2795 = vadd.f32 %v2708, %v2792
    %v2796 = vld [vmem:[#allocation2 + $0x18] sm:$0x1]
    %v2797 = vld [vmem:[#allocation2 + $0x38] sm:$0x1]
    %s2798 = scalar_lea.vmem %s2, 768
    %v2799 = vld [vmem:[%s2798] sm:$0xff]
    %v2800 = vld [vmem:[%s2798 + $0x8] sm:$0xff]
    %v2801 = vld [vmem:[%s2798 + $0x10] sm:$0xff]
    %v2802 = vld [vmem:[%s2798 + $0x18] sm:$0x3]
    %v2805 = vrot.slane %v2797, 7
    %v2806 = vsel %vm725, %v2805, %v2796
    %v2807 = vsel %vm513, %v2806, 0
    %v2810 = vsel %vm729, %v2802, 0
    %2812 = vmatprep.subr.mxu0 0.0
    %2813 = vmatpush1.msra.mxu0 0.0
    %2814 = vmatprep.subr.mxu0 0.0
    %2815 = vmatpush1.msra.mxu0 0.0
    %2816 = vmatprep.subr.mxu0 0.0
    %2817 = vmatpush1.msra.mxu0 0.0
    %2818 = vmatprep.subr.mxu0 0.0
    %2819 = vmatpush1.msra.mxu0 0.0
    %2820 = vmatprep.subr.mxu0 0.0
    %2821 = vmatpush1.msra.mxu0 0.0
    %2822 = vmatprep.subr.mxu0 0.0
    %2823 = vmatpush1.msra.mxu0 0.0
    %2824 = vmatprep.subr.mxu0 0.0
    %2825 = vmatpush1.msra.mxu0 0.0
    %2826 = vmatprep.subr.mxu0 0.0
    %2827 = vmatpush1.msra.mxu0 0.0
    %2828 = vmatprep.subr.mxu0 0.0
    %2829 = vmatpush1.msra.mxu0 0.0
    %2830 = vmatprep.subr.mxu0 0.0
    %2831 = vmatpush1.msra.mxu0 0.0
    %2832 = vmatprep.subr.mxu0 0.0
    %2833 = vmatpush1.msra.mxu0 0.0
    %2834 = vmatprep.subr.mxu0 0.0
    %2835 = vmatpush1.msra.mxu0 0.0
    %2836 = vmatprep.subr.mxu0 0.0
    %2837 = vmatpush1.msra.mxu0 %v2810
    %2838 = vmatprep.subr.mxu0 0.0
    %2839 = vmatpush1.msra.mxu0 %v2801
    %2840 = vmatprep.subr.mxu0 0.0
    %2841 = vmatpush1.msra.mxu0 %v2800
    %2842 = vmatprep.subr.mxu0 0.0
    %2843 = vmatpush1.msra.mxu0 %v2799
    %2844 = vmatprep.subr.mxu0 0.0
    %2845 = vmatpush2.msra.mxu0 0.0
    %2846 = vmatprep.subr.mxu0 0.0
    %2847 = vmatpush2.msra.mxu0 0.0
    %2848 = vmatprep.subr.mxu0 0.0
    %2849 = vmatpush2.msra.mxu0 0.0
    %2850 = vmatprep.subr.mxu0 0.0
    %2851 = vmatpush2.msra.mxu0 0.0
    %2852 = vmatprep.subr.mxu0 0.0
    %2853 = vmatpush2.msra.mxu0 0.0
    %2854 = vmatprep.subr.mxu0 0.0
    %2855 = vmatpush2.msra.mxu0 0.0
    %2856 = vmatprep.subr.mxu0 0.0
    %2857 = vmatpush2.msra.mxu0 0.0
    %2858 = vmatprep.subr.mxu0 0.0
    %2859 = vmatpush2.msra.mxu0 0.0
    %2860 = vmatprep.subr.mxu0 0.0
    %2861 = vmatpush2.msra.mxu0 0.0
    %2862 = vmatprep.subr.mxu0 0.0
    %2863 = vmatpush2.msra.mxu0 0.0
    %2864 = vmatprep.subr.mxu0 0.0
    %2865 = vmatpush2.msra.mxu0 0.0
    %2866 = vmatprep.subr.mxu0 0.0
    %2867 = vmatpush2.msra.mxu0 0.0
    %2868 = vmatprep.subr.mxu0 0.0
    %2869 = vmatpush2.msra.mxu0 0.0
    %2870 = vmatprep.subr.mxu0 0.0
    %2871 = vmatpush2.msra.mxu0 0.0
    %2872 = vmatprep.subr.mxu0 0.0
    %2873 = vmatpush2.msra.mxu0 0.0
    %2874 = vmatprep.subr.mxu0 0.0
    %2875 = vmatpush2.msra.mxu0 0.0
    %2876 = vmatprep.mubr.f32.mxu0 0.0
    %2877 = vmatmul.mubr.f32.gmra.mxu0 %v2807
    %v2878 = vpop.f32.mrf.mxu0
    %v2879 = vadd.f32 0.0, %v2878
    %v2880 = vpop.f32.mrf.mxu0
    %2881 = vdwg.mxu0
    %v2882 = vadd.f32 %v2795, %v2879
    %v2883 = vld [vmem:[#allocation2 + $0x19] sm:$0x1]
    %v2884 = vld [vmem:[#allocation2 + $0x39] sm:$0x1]
    %s2885 = scalar_lea.vmem %s2, 800
    %v2886 = vld [vmem:[%s2885] sm:$0xff]
    %v2887 = vld [vmem:[%s2885 + $0x8] sm:$0xff]
    %v2888 = vld [vmem:[%s2885 + $0x10] sm:$0xff]
    %v2889 = vld [vmem:[%s2885 + $0x18] sm:$0x3]
    %v2892 = vrot.slane %v2884, 7
    %v2893 = vsel %vm725, %v2892, %v2883
    %v2894 = vsel %vm513, %v2893, 0
    %v2897 = vsel %vm729, %v2889, 0
    %2899 = vmatprep.subr.mxu0 0.0
    %2900 = vmatpush1.msra.mxu0 0.0
    %2901 = vmatprep.subr.mxu0 0.0
    %2902 = vmatpush1.msra.mxu0 0.0
    %2903 = vmatprep.subr.mxu0 0.0
    %2904 = vmatpush1.msra.mxu0 0.0
    %2905 = vmatprep.subr.mxu0 0.0
    %2906 = vmatpush1.msra.mxu0 0.0
    %2907 = vmatprep.subr.mxu0 0.0
    %2908 = vmatpush1.msra.mxu0 0.0
    %2909 = vmatprep.subr.mxu0 0.0
    %2910 = vmatpush1.msra.mxu0 0.0
    %2911 = vmatprep.subr.mxu0 0.0
    %2912 = vmatpush1.msra.mxu0 0.0
    %2913 = vmatprep.subr.mxu0 0.0
    %2914 = vmatpush1.msra.mxu0 0.0
    %2915 = vmatprep.subr.mxu0 0.0
    %2916 = vmatpush1.msra.mxu0 0.0
    %2917 = vmatprep.subr.mxu0 0.0
    %2918 = vmatpush1.msra.mxu0 0.0
    %2919 = vmatprep.subr.mxu0 0.0
    %2920 = vmatpush1.msra.mxu0 0.0
    %2921 = vmatprep.subr.mxu0 0.0
    %2922 = vmatpush1.msra.mxu0 0.0
    %2923 = vmatprep.subr.mxu0 0.0
    %2924 = vmatpush1.msra.mxu0 %v2897
    %2925 = vmatprep.subr.mxu0 0.0
    %2926 = vmatpush1.msra.mxu0 %v2888
    %2927 = vmatprep.subr.mxu0 0.0
    %2928 = vmatpush1.msra.mxu0 %v2887
    %2929 = vmatprep.subr.mxu0 0.0
    %2930 = vmatpush1.msra.mxu0 %v2886
    %2931 = vmatprep.subr.mxu0 0.0
    %2932 = vmatpush2.msra.mxu0 0.0
    %2933 = vmatprep.subr.mxu0 0.0
    %2934 = vmatpush2.msra.mxu0 0.0
    %2935 = vmatprep.subr.mxu0 0.0
    %2936 = vmatpush2.msra.mxu0 0.0
    %2937 = vmatprep.subr.mxu0 0.0
    %2938 = vmatpush2.msra.mxu0 0.0
    %2939 = vmatprep.subr.mxu0 0.0
    %2940 = vmatpush2.msra.mxu0 0.0
    %2941 = vmatprep.subr.mxu0 0.0
    %2942 = vmatpush2.msra.mxu0 0.0
    %2943 = vmatprep.subr.mxu0 0.0
    %2944 = vmatpush2.msra.mxu0 0.0
    %2945 = vmatprep.subr.mxu0 0.0
    %2946 = vmatpush2.msra.mxu0 0.0
    %2947 = vmatprep.subr.mxu0 0.0
    %2948 = vmatpush2.msra.mxu0 0.0
    %2949 = vmatprep.subr.mxu0 0.0
    %2950 = vmatpush2.msra.mxu0 0.0
    %2951 = vmatprep.subr.mxu0 0.0
    %2952 = vmatpush2.msra.mxu0 0.0
    %2953 = vmatprep.subr.mxu0 0.0
    %2954 = vmatpush2.msra.mxu0 0.0
    %2955 = vmatprep.subr.mxu0 0.0
    %2956 = vmatpush2.msra.mxu0 0.0
    %2957 = vmatprep.subr.mxu0 0.0
    %2958 = vmatpush2.msra.mxu0 0.0
    %2959 = vmatprep.subr.mxu0 0.0
    %2960 = vmatpush2.msra.mxu0 0.0
    %2961 = vmatprep.subr.mxu0 0.0
    %2962 = vmatpush2.msra.mxu0 0.0
    %2963 = vmatprep.mubr.f32.mxu0 0.0
    %2964 = vmatmul.mubr.f32.gmra.mxu0 %v2894
    %v2965 = vpop.f32.mrf.mxu0
    %v2966 = vadd.f32 0.0, %v2965
    %v2967 = vpop.f32.mrf.mxu0
    %2968 = vdwg.mxu0
    %v2969 = vadd.f32 %v2882, %v2966
    %v2970 = vld [vmem:[%s3] sm:$0x1]
    %v2972 = vlaneseq
    %v2973 = vshrl.u32 %v2972, 7
    %v2974 = vsub.s32 0, %v2973
    %v2975 = vrot.slane %v2970, %v2974
    %v2977 = vadd.f32 %v2969, %v2975
    %vm2978 = vcmask 74752
    %v2979 = vsel %vm2978, %v2977, -inf
    %2980 = vmax.xlane.f32.xlu0 %v2979
    %v2981 = vpop.xlane.xlu0 %2980
    %v2982 = vsub.f32 %v2977, %v2981
    %v2983 = vmul.f32 %v2982, 1.442695
    %v2984 = vpow.pop %v2983
    %v2985 = vsel %vm2978, %v2984, 0.0
    %2986 = vadd.xlane.f32.xlu0 %v2985
    %v2987 = vpop.xlane.xlu0 %2986
    %v2988 = vrcp.pop %v2987
    %v2989 = vmul.f32 %v2984, %v2988
    %2990 = vst.msk [vmem:[#allocation6] sm:$0x3] %vm2978, %v2989
    // Predicated region
    $region22: #{l_forward.1} parent=1 // pred_check
      _
    $region23: #{l_forward.1} parent=1 // pred_check_branch
      %2992 = sbr.rel (0) target = $region25
    $region24: #{l_forward.1} parent=1 // pred_region
      %s2994 = ssub.s32 32, 32
      %2995 = vsyncadd [#allocation4], %s2994
      %s2997 = sshll.u32 [#allocation6], 4
      %s2998 = int_to_ptr.vmem [resolvable:$true] %s2997
      %3000 = dma.vmem_to_hbm [thread:$0]  %s2998, 32, %s4, [#allocation4]
    $region25: #{l_forward.1} parent=1 // pred_fallthru
      _
    // Predicated region
    $region26: #{l_forward.1} parent=1 // pred_check
      _
    $region27: #{l_forward.1} parent=1 // pred_check_branch
      %3002 = sbr.rel (0) target = $region29
    $region28: #{l_forward.1} parent=1 // pred_region
      %3003 = dma.done [#allocation4], 32
    $region29: #{l_forward.1} parent=1 // pred_fallthru
      _
    %3004 = vsyncpa [#allocation4], 1
    %3005 = vsyncpa [#allocation5], 1

</llo_original>
